<compile_context>
chip_gen: v7x
topology: tpu7x:2x2x1
jax: 0.10.0
libtpu: 0.0.40
codegen_flags: <defaults>
</compile_context>

<pallas_src>
import functools

import numpy as np

import jax
import jax.numpy as jnp
from jax import lax
from jax.experimental import pallas as pl
from jax.experimental.pallas import tpu as pltpu


def _round_up(x, m):
    return ((x + m - 1) // m) * m


# ----------------------------------------------------------------------------
# Fused encoder kernel: one grid step == one tile of TILE_BT samples.
# ----------------------------------------------------------------------------
def _encoder_kernel(x_ref, w1_ref, b1_ref, w2_ref, b2_ref, w3_ref, bfc_ref,
                    out_ref, *, H1, W1, H2, W2, C1, C2):
    f32, bf16 = jnp.float32, jnp.bfloat16
    tile_bt = x_ref.shape[0]

    # ---- conv1 + ReLU : ONE dense GEMM (im2col folded into the weight) -----
    #   (TILE_BT, C*H*W) @ (C*H*W, H1*W1*C1)
    y1 = jnp.dot(x_ref[...].astype(bf16), w1_ref[...],
                 preferred_element_type=f32)
    y1 = jnp.maximum(y1 + b1_ref[...], 0.0).astype(bf16)     # (T, H1*W1*C1)

    # ---- conv2 + ReLU : static 32-lane slices gather the 3x3/stride-2 ------
    # windows of y1; the 9 taps are fused into a single K = 9*C1 contraction.
    zero_blk = jnp.zeros((tile_bt, C1), bf16)
    rows = []
    for i2 in range(H2):
        for j2 in range(W2):
            taps = []
            for dh in range(3):
                for dw in range(3):
                    r, c = 2 * i2 + dh - 1, 2 * j2 + dw - 1
                    if 0 <= r < H1 and 0 <= c < W1:
                        p = r * W1 + c
                        taps.append(y1[:, p * C1:(p + 1) * C1])
                    else:
                        taps.append(zero_blk)                 # zero padding
            rows.append(jnp.concatenate(taps, axis=1))        # (T, 9*C1)
    lhs = jnp.concatenate(rows, axis=0)                       # (H2*W2*T, 9*C1)

    z = jnp.dot(lhs, w2_ref[...], preferred_element_type=f32)
    z = jnp.maximum(z + b2_ref[...], 0.0).astype(bf16)        # (H2*W2*T, C2)

    # ---- FC (+ folded "cat ones") : ONE (T, n_pos*C2) @ (.., 128) GEMM ------
    n_pos = H2 * W2
    z = z.reshape(n_pos, tile_bt, C2)
    y2 = jnp.concatenate([z[s] for s in range(n_pos)], axis=1)  # (T, n_pos*C2)
    out = jnp.dot(y2, w3_ref[...], preferred_element_type=f32) + bfc_ref[...]
    out_ref[...] = out.astype(out_ref.dtype)


# ----------------------------------------------------------------------------
# Host wrapper
# ----------------------------------------------------------------------------
@jax.jit
def wall_encoder_forward(x, params):
    """x: (B, T, C, H, W) float32 -> (B, T, repr_dim) float32."""
    B, T, C, H, W = x.shape
    BT = B * T
    H1, W1 = (H - 1) // 2 + 1, (W - 1) // 2 + 1
    H2, W2 = (H1 - 1) // 2 + 1, (W1 - 1) // 2 + 1
    C1, C2 = 32, 64
    n_pos = H2 * W2
    repr_dim = params["b_fc_aug"].shape[0]
    out_lanes = params["bfc_pad"].shape[-1]

    # Sample tiling: big-M tiles (<=256); multi-step "parallel" grid when BT
    # is large enough (v7x megacore), single full-batch step for tiny BT.
    tile_bt = min(256, _round_up(BT, 8))
    n_steps = pl.cdiv(BT, tile_bt)
    bt_pad = n_steps * tile_bt

    xf = x.reshape(BT, C * H * W).astype(jnp.float32)
    if bt_pad != BT:
        xf = jnp.pad(xf, ((0, bt_pad - BT), (0, 0)))

    w1d = params["w1_dense"].astype(jnp.bfloat16)             # (CHW, H1*W1*32)
    b1 = params["b1_row"].astype(jnp.float32)                 # (1, H1*W1*32)
    w2 = params["w2_k"].astype(jnp.bfloat16)                  # (288, 64)
    b2 = params["b2_row"].astype(jnp.float32)                 # (1, 64)
    w3 = params["w3_pad"].astype(jnp.bfloat16)                # (n_pos*64, 128)
    bfc = params["bfc_pad"].astype(jnp.float32)               # (1, 128)

    k1 = C * H * W
    n1 = H1 * W1 * C1
    kernel = functools.partial(_encoder_kernel, H1=H1, W1=W1, H2=H2, W2=W2,
                               C1=C1, C2=C2)

    macs = k1 * n1 + n_pos * (9 * C1) * C2 + n_pos * C2 * out_lanes
    cost = pl.CostEstimate(
        flops=2 * bt_pad * macs, transcendentals=0,
        bytes_accessed=int(xf.size * 4 + bt_pad * out_lanes * 4
                           + w1d.size * 2 + w2.size * 2 + w3.size * 2
                           + b1.size * 4 + b2.size * 4 + bfc.size * 4))

    out = pl.pallas_call(
        kernel,
        out_shape=jax.ShapeDtypeStruct((bt_pad, out_lanes), jnp.float32),
        grid=(n_steps,),
        in_specs=[
            pl.BlockSpec((tile_bt, k1), lambda i: (i, 0)),
            pl.BlockSpec((k1, n1), lambda i: (0, 0)),
            pl.BlockSpec((1, n1), lambda i: (0, 0)),
            pl.BlockSpec((9 * C1, C2), lambda i: (0, 0)),
            pl.BlockSpec((1, C2), lambda i: (0, 0)),
            pl.BlockSpec((n_pos * C2, out_lanes), lambda i: (0, 0)),
            pl.BlockSpec((1, out_lanes), lambda i: (0, 0)),
        ],
        out_specs=pl.BlockSpec((tile_bt, out_lanes), lambda i: (i, 0)),
        compiler_params=pltpu.CompilerParams(
            dimension_semantics=("parallel",),
            vmem_limit_bytes=48 * 1024 * 1024,
        ),
        cost_estimate=cost,
    )(xf, w1d, b1, w2, b2, w3, bfc)
    return out[:BT, :repr_dim].reshape(B, T, repr_dim)


# ----------------------------------------------------------------------------
# Pure-JAX reference (lax.conv) for correctness checking.
# ----------------------------------------------------------------------------
def wall_encoder_reference(x, params):
    B, T, C, H, W = x.shape
    xf = x.reshape(B * T, C, H, W)

    def conv(z, w_hwio, b):
        w_oihw = jnp.transpose(w_hwio, (3, 2, 0, 1))
        z = lax.conv_general_dilated(
            z, w_oihw, window_strides=(2, 2), padding=((1, 1), (1, 1)),
            dimension_numbers=("NCHW", "OIHW", "NCHW"),
            precision=lax.Precision.HIGHEST)
        return jnp.maximum(z + b[None, :, None, None], 0.0)

    y = conv(xf, params["w1_conv"], params["b1"])
    y = conv(y, params["w2_conv"], params["b2"])
    flat = y.reshape(B * T, -1)
    out = jnp.dot(flat, params["w_fc"],
                  precision=lax.Precision.HIGHEST) + params["b_fc"]
    out = out.reshape(B, T, -1)
    ones = jnp.ones((B, T, 1), dtype=out.dtype)
    return jnp.concatenate([out, ones], axis=-1)


# ----------------------------------------------------------------------------
# Parameter init (+ folded / permuted kernel-form weights).
# ----------------------------------------------------------------------------
def init_params(key, C, H, W, repr_dim):
    H1, W1 = (H - 1) // 2 + 1, (W - 1) // 2 + 1
    H2, W2 = (H1 - 1) // 2 + 1, (W1 - 1) // 2 + 1
    C1, C2 = 32, 64
    n_pos = H2 * W2
    fc_in = n_pos * C2
    out_lanes = _round_up(repr_dim, 128)

    k1, k2, k3, k4, k5, k6 = jax.random.split(key, 6)
    w1 = 0.1 * jax.random.normal(k1, (3, 3, C, C1), jnp.float32)   # (kh,kw,ci,co)
    b1 = 0.1 * jax.random.normal(k2, (C1,), jnp.float32)
    w2 = 0.05 * jax.random.normal(k3, (3, 3, C1, C2), jnp.float32)
    b2 = 0.05 * jax.random.normal(k4, (C2,), jnp.float32)
    w_fc = 0.02 * jax.random.normal(k5, (fc_in, repr_dim - 1), jnp.float32)
    b_fc = 0.02 * jax.random.normal(k6, (repr_dim - 1,), jnp.float32)

    # ---- conv1 im2col folded into a dense GEMM weight (exact copy/0 fold) --
    w1_np = np.asarray(w1)
    w1_dense = np.zeros((C * H * W, H1 * W1 * C1), np.float32)
    for i1 in range(H1):
        for j1 in range(W1):
            s1 = i1 * W1 + j1
            for dh in range(3):
                for dw in range(3):
                    r, c = 2 * i1 + dh - 1, 2 * j1 + dw - 1
                    if 0 <= r < H and 0 <= c < W:
                        for ci in range(C):
                            w1_dense[ci * H * W + r * W + c,
                                     s1 * C1:(s1 + 1) * C1] += w1_np[dh, dw, ci]
    b1_row = np.tile(np.asarray(b1), H1 * W1)[None, :]              # (1, n1)

    # ---- conv2: fuse the 9 taps into one K = 9*32 contraction --------------
    w2_k = np.asarray(w2).reshape(9 * C1, C2)                       # row=t*32+ci

    # ---- FC: fold "cat ones", bake in the flatten order, pad output lanes --
    w_fc_aug = np.concatenate(
        [np.asarray(w_fc), np.zeros((fc_in, 1), np.float32)], axis=1)
    b_fc_aug = np.concatenate(
        [np.asarray(b_fc), np.ones((1,), np.float32)], axis=0)       # (R,)
    # kernel flatten order is (spatial-major, channel-minor); PyTorch's
    # nn.Flatten order is (channel-major, spatial-minor) -> permute rows.
    w3_perm = w_fc_aug.reshape(C2, n_pos, repr_dim).transpose(1, 0, 2)
    w3_perm = w3_perm.reshape(n_pos * C2, repr_dim)
    w3_pad = np.zeros((n_pos * C2, out_lanes), np.float32)
    w3_pad[:, :repr_dim] = w3_perm
    bfc_pad = np.zeros((1, out_lanes), np.float32)
    bfc_pad[0, :repr_dim] = b_fc_aug

    return dict(
        # kernel-form params
        w1_dense=jnp.asarray(w1_dense), b1_row=jnp.asarray(b1_row),
        w2_k=jnp.asarray(w2_k), b2_row=jnp.asarray(np.asarray(b2)[None, :]),
        w3_pad=jnp.asarray(w3_pad), bfc_pad=jnp.asarray(bfc_pad),
        b_fc_aug=jnp.asarray(b_fc_aug),
        # reference-form params
        w1_conv=w1, b1=b1, w2_conv=w2, b2=b2, w_fc=w_fc, b_fc=b_fc,
    )


if __name__ == "__main__":
    # Small config consistent with the module: input_shape=(1, 17, 17), repr_dim=32
    C, H, W, repr_dim = 1, 17, 17, 32
    key = jax.random.PRNGKey(0)
    kx, kp, kx2 = jax.random.split(key, 3)
    params = init_params(kp, C, H, W, repr_dim)

    # -- tiny correctness check (single grid step) ---------------------------
    B, T = 2, 2
    x = jax.random.normal(kx, (B, T, C, H, W), jnp.float32)
    out = jax.block_until_ready(wall_encoder_forward(x, params))
    ref = jax.block_until_ready(wall_encoder_reference(x, params))
    assert out.shape == (B, T, repr_dim), out.shape
    assert jnp.allclose(out, ref, atol=2e-2, rtol=2e-2), (
        float(jnp.max(jnp.abs(out - ref))))
    assert jnp.allclose(out[..., -1], 1.0, atol=1e-6)

    # -- batched check: TILE_BT=256, 2 grid steps (the real perf path) -------
    B2, T2 = 4, 72                      # BT = 288 -> padded to 512, 2 steps
    x2 = jax.random.normal(kx2, (B2, T2, C, H, W), jnp.float32)
    out2 = jax.block_until_ready(wall_encoder_forward(x2, params))
    ref2 = jax.block_until_ready(wall_encoder_reference(x2, params))
    assert out2.shape == (B2, T2, repr_dim), out2.shape
    assert jnp.allclose(out2, ref2, atol=2e-2, rtol=2e-2), (
        float(jnp.max(jnp.abs(out2 - ref2))))
    assert jnp.allclose(out2[..., -1], 1.0, atol=1e-6)

    print("KERNEL_OK")
</pallas_src>

<mosaic_0001>
module attributes {stable_mosaic.version = 11 : i64} {
  func.func @_encoder_kernel(%arg0: i32, %arg1: memref<8x289xf32, #tpu.memory_space<vmem>>, %arg2: memref<289x2592xbf16, #tpu.memory_space<vmem>>, %arg3: memref<1x2592xf32, #tpu.memory_space<vmem>>, %arg4: memref<288x64xbf16, #tpu.memory_space<vmem>>, %arg5: memref<1x64xf32, #tpu.memory_space<vmem>>, %arg6: memref<1600x128xbf16, #tpu.memory_space<vmem>>, %arg7: memref<1x128xf32, #tpu.memory_space<vmem>>, %arg8: memref<8x128xf32, #tpu.memory_space<vmem>>) attributes {dimension_semantics = [#tpu.dimension_semantics<parallel>], iteration_bounds = array<i64: 1>, scalar_prefetch = 0 : i64, scratch_operands = 0 : i64, tpu.core_type = #tpu.core_type<tc>, window_params = [{transform_indices = @transform_0, window_bounds = array<i64: 8, 289>}, {pipeline_mode = #tpu.pipeline_mode<synchronous>, transform_indices = @transform_1, window_bounds = array<i64: 289, 2592>}, {pipeline_mode = #tpu.pipeline_mode<synchronous>, transform_indices = @transform_2, window_bounds = array<i64: 1, 2592>}, {pipeline_mode = #tpu.pipeline_mode<synchronous>, transform_indices = @transform_3, window_bounds = array<i64: 288, 64>}, {pipeline_mode = #tpu.pipeline_mode<synchronous>, transform_indices = @transform_4, window_bounds = array<i64: 1, 64>}, {pipeline_mode = #tpu.pipeline_mode<synchronous>, transform_indices = @transform_5, window_bounds = array<i64: 1600, 128>}, {pipeline_mode = #tpu.pipeline_mode<synchronous>, transform_indices = @transform_6, window_bounds = array<i64: 1, 128>}, {transform_indices = @transform_7, window_bounds = array<i64: 8, 128>}]} {
    %c0 = arith.constant 0 : index
    %c0_0 = arith.constant 0 : index
    %0 = vector.load %arg1[%c0, %c0_0] : memref<8x289xf32, #tpu.memory_space<vmem>>, vector<8x289xf32>
    %1 = arith.truncf %0 : vector<8x289xf32> to vector<8x289xbf16>
    %c0_1 = arith.constant 0 : index
    %c0_2 = arith.constant 0 : index
    %2 = vector.load %arg2[%c0_1, %c0_2] : memref<289x2592xbf16, #tpu.memory_space<vmem>>, vector<289x2592xbf16>
    %cst = arith.constant dense<0.000000e+00> : vector<8x2592xf32>
    %3 = tpu.matmul %1, %2, %cst {dimension_numbers = #tpu.dot_dimension_numbers<[1], [0], [0], [1], [0, 0, 1, 1], [], []>} : vector<8x289xbf16>, vector<289x2592xbf16>, vector<8x2592xf32> -> vector<8x2592xf32>
    %c0_3 = arith.constant 0 : index
    %c0_4 = arith.constant 0 : index
    %4 = vector.load %arg3[%c0_3, %c0_4] : memref<1x2592xf32, #tpu.memory_space<vmem>>, vector<1x2592xf32>
    %5 = vector.broadcast %4 : vector<1x2592xf32> to vector<8x2592xf32>
    %6 = arith.addf %3, %5 : vector<8x2592xf32>
    %cst_5 = arith.constant 0.000000e+00 : f32
    %7 = vector.broadcast %cst_5 : f32 to vector<8x2592xf32>
    %8 = arith.maximumf %6, %7 : vector<8x2592xf32>
    %9 = arith.truncf %8 : vector<8x2592xf32> to vector<8x2592xbf16>
    %cst_6 = arith.constant 0.000000e+00 : bf16
    %10 = vector.broadcast %cst_6 : bf16 to vector<8x32xbf16>
    %11 = vector.extract_strided_slice %9 {offsets = [0, 0], sizes = [8, 32], strides = [1, 1]} : vector<8x2592xbf16> to vector<8x32xbf16>
    %12 = vector.extract_strided_slice %9 {offsets = [0, 32], sizes = [8, 32], strides = [1, 1]} : vector<8x2592xbf16> to vector<8x32xbf16>
    %13 = vector.extract_strided_slice %9 {offsets = [0, 288], sizes = [8, 32], strides = [1, 1]} : vector<8x2592xbf16> to vector<8x32xbf16>
    %14 = vector.extract_strided_slice %9 {offsets = [0, 320], sizes = [8, 32], strides = [1, 1]} : vector<8x2592xbf16> to vector<8x32xbf16>
    %15 = tpu.concatenate %10, %10, %10, %10, %11, %12, %10, %13, %14 in 1 : vector<8x32xbf16>, vector<8x32xbf16>, vector<8x32xbf16>, vector<8x32xbf16>, vector<8x32xbf16>, vector<8x32xbf16>, vector<8x32xbf16>, vector<8x32xbf16>, vector<8x32xbf16> -> vector<8x288xbf16>
    %16 = vector.extract_strided_slice %9 {offsets = [0, 32], sizes = [8, 32], strides = [1, 1]} : vector<8x2592xbf16> to vector<8x32xbf16>
    %17 = vector.extract_strided_slice %9 {offsets = [0, 64], sizes = [8, 32], strides = [1, 1]} : vector<8x2592xbf16> to vector<8x32xbf16>
    %18 = vector.extract_strided_slice %9 {offsets = [0, 96], sizes = [8, 32], strides = [1, 1]} : vector<8x2592xbf16> to vector<8x32xbf16>
    %19 = vector.extract_strided_slice %9 {offsets = [0, 320], sizes = [8, 32], strides = [1, 1]} : vector<8x2592xbf16> to vector<8x32xbf16>
    %20 = vector.extract_strided_slice %9 {offsets = [0, 352], sizes = [8, 32], strides = [1, 1]} : vector<8x2592xbf16> to vector<8x32xbf16>
    %21 = vector.extract_strided_slice %9 {offsets = [0, 384], sizes = [8, 32], strides = [1, 1]} : vector<8x2592xbf16> to vector<8x32xbf16>
    %22 = tpu.concatenate %10, %10, %10, %16, %17, %18, %19, %20, %21 in 1 : vector<8x32xbf16>, vector<8x32xbf16>, vector<8x32xbf16>, vector<8x32xbf16>, vector<8x32xbf16>, vector<8x32xbf16>, vector<8x32xbf16>, vector<8x32xbf16>, vector<8x32xbf16> -> vector<8x288xbf16>
    %23 = vector.extract_strided_slice %9 {offsets = [0, 96], sizes = [8, 32], strides = [1, 1]} : vector<8x2592xbf16> to vector<8x32xbf16>
    %24 = vector.extract_strided_slice %9 {offsets = [0, 128], sizes = [8, 32], strides = [1, 1]} : vector<8x2592xbf16> to vector<8x32xbf16>
    %25 = vector.extract_strided_slice %9 {offsets = [0, 160], sizes = [8, 32], strides = [1, 1]} : vector<8x2592xbf16> to vector<8x32xbf16>
    %26 = vector.extract_strided_slice %9 {offsets = [0, 384], sizes = [8, 32], strides = [1, 1]} : vector<8x2592xbf16> to vector<8x32xbf16>
    %27 = vector.extract_strided_slice %9 {offsets = [0, 416], sizes = [8, 32], strides = [1, 1]} : vector<8x2592xbf16> to vector<8x32xbf16>
    %28 = vector.extract_strided_slice %9 {offsets = [0, 448], sizes = [8, 32], strides = [1, 1]} : vector<8x2592xbf16> to vector<8x32xbf16>
    %29 = tpu.concatenate %10, %10, %10, %23, %24, %25, %26, %27, %28 in 1 : vector<8x32xbf16>, vector<8x32xbf16>, vector<8x32xbf16>, vector<8x32xbf16>, vector<8x32xbf16>, vector<8x32xbf16>, vector<8x32xbf16>, vector<8x32xbf16>, vector<8x32xbf16> -> vector<8x288xbf16>
    %30 = vector.extract_strided_slice %9 {offsets = [0, 160], sizes = [8, 32], strides = [1, 1]} : vector<8x2592xbf16> to vector<8x32xbf16>
    %31 = vector.extract_strided_slice %9 {offsets = [0, 192], sizes = [8, 32], strides = [1, 1]} : vector<8x2592xbf16> to vector<8x32xbf16>
    %32 = vector.extract_strided_slice %9 {offsets = [0, 224], sizes = [8, 32], strides = [1, 1]} : vector<8x2592xbf16> to vector<8x32xbf16>
    %33 = vector.extract_strided_slice %9 {offsets = [0, 448], sizes = [8, 32], strides = [1, 1]} : vector<8x2592xbf16> to vector<8x32xbf16>
    %34 = vector.extract_strided_slice %9 {offsets = [0, 480], sizes = [8, 32], strides = [1, 1]} : vector<8x2592xbf16> to vector<8x32xbf16>
    %35 = vector.extract_strided_slice %9 {offsets = [0, 512], sizes = [8, 32], strides = [1, 1]} : vector<8x2592xbf16> to vector<8x32xbf16>
    %36 = tpu.concatenate %10, %10, %10, %30, %31, %32, %33, %34, %35 in 1 : vector<8x32xbf16>, vector<8x32xbf16>, vector<8x32xbf16>, vector<8x32xbf16>, vector<8x32xbf16>, vector<8x32xbf16>, vector<8x32xbf16>, vector<8x32xbf16>, vector<8x32xbf16> -> vector<8x288xbf16>
    %37 = vector.extract_strided_slice %9 {offsets = [0, 224], sizes = [8, 32], strides = [1, 1]} : vector<8x2592xbf16> to vector<8x32xbf16>
    %38 = vector.extract_strided_slice %9 {offsets = [0, 256], sizes = [8, 32], strides = [1, 1]} : vector<8x2592xbf16> to vector<8x32xbf16>
    %39 = vector.extract_strided_slice %9 {offsets = [0, 512], sizes = [8, 32], strides = [1, 1]} : vector<8x2592xbf16> to vector<8x32xbf16>
    %40 = vector.extract_strided_slice %9 {offsets = [0, 544], sizes = [8, 32], strides = [1, 1]} : vector<8x2592xbf16> to vector<8x32xbf16>
    %41 = tpu.concatenate %10, %10, %10, %37, %38, %10, %39, %40, %10 in 1 : vector<8x32xbf16>, vector<8x32xbf16>, vector<8x32xbf16>, vector<8x32xbf16>, vector<8x32xbf16>, vector<8x32xbf16>, vector<8x32xbf16>, vector<8x32xbf16>, vector<8x32xbf16> -> vector<8x288xbf16>
    %42 = vector.extract_strided_slice %9 {offsets = [0, 288], sizes = [8, 32], strides = [1, 1]} : vector<8x2592xbf16> to vector<8x32xbf16>
    %43 = vector.extract_strided_slice %9 {offsets = [0, 320], sizes = [8, 32], strides = [1, 1]} : vector<8x2592xbf16> to vector<8x32xbf16>
    %44 = vector.extract_strided_slice %9 {offsets = [0, 576], sizes = [8, 32], strides = [1, 1]} : vector<8x2592xbf16> to vector<8x32xbf16>
    %45 = vector.extract_strided_slice %9 {offsets = [0, 608], sizes = [8, 32], strides = [1, 1]} : vector<8x2592xbf16> to vector<8x32xbf16>
    %46 = vector.extract_strided_slice %9 {offsets = [0, 864], sizes = [8, 32], strides = [1, 1]} : vector<8x2592xbf16> to vector<8x32xbf16>
    %47 = vector.extract_strided_slice %9 {offsets = [0, 896], sizes = [8, 32], strides = [1, 1]} : vector<8x2592xbf16> to vector<8x32xbf16>
    %48 = tpu.concatenate %10, %42, %43, %10, %44, %45, %10, %46, %47 in 1 : vector<8x32xbf16>, vector<8x32xbf16>, vector<8x32xbf16>, vector<8x32xbf16>, vector<8x32xbf16>, vector<8x32xbf16>, vector<8x32xbf16>, vector<8x32xbf16>, vector<8x32xbf16> -> vector<8x288xbf16>
    %49 = vector.extract_strided_slice %9 {offsets = [0, 320], sizes = [8, 32], strides = [1, 1]} : vector<8x2592xbf16> to vector<8x32xbf16>
    %50 = vector.extract_strided_slice %9 {offsets = [0, 352], sizes = [8, 32], strides = [1, 1]} : vector<8x2592xbf16> to vector<8x32xbf16>
    %51 = vector.extract_strided_slice %9 {offsets = [0, 384], sizes = [8, 32], strides = [1, 1]} : vector<8x2592xbf16> to vector<8x32xbf16>
    %52 = vector.extract_strided_slice %9 {offsets = [0, 608], sizes = [8, 32], strides = [1, 1]} : vector<8x2592xbf16> to vector<8x32xbf16>
    %53 = vector.extract_strided_slice %9 {offsets = [0, 640], sizes = [8, 32], strides = [1, 1]} : vector<8x2592xbf16> to vector<8x32xbf16>
    %54 = vector.extract_strided_slice %9 {offsets = [0, 672], sizes = [8, 32], strides = [1, 1]} : vector<8x2592xbf16> to vector<8x32xbf16>
    %55 = vector.extract_strided_slice %9 {offsets = [0, 896], sizes = [8, 32], strides = [1, 1]} : vector<8x2592xbf16> to vector<8x32xbf16>
    %56 = vector.extract_strided_slice %9 {offsets = [0, 928], sizes = [8, 32], strides = [1, 1]} : vector<8x2592xbf16> to vector<8x32xbf16>
    %57 = vector.extract_strided_slice %9 {offsets = [0, 960], sizes = [8, 32], strides = [1, 1]} : vector<8x2592xbf16> to vector<8x32xbf16>
    %58 = tpu.concatenate %49, %50, %51, %52, %53, %54, %55, %56, %57 in 1 : vector<8x32xbf16>, vector<8x32xbf16>, vector<8x32xbf16>, vector<8x32xbf16>, vector<8x32xbf16>, vector<8x32xbf16>, vector<8x32xbf16>, vector<8x32xbf16>, vector<8x32xbf16> -> vector<8x288xbf16>
    %59 = vector.extract_strided_slice %9 {offsets = [0, 384], sizes = [8, 32], strides = [1, 1]} : vector<8x2592xbf16> to vector<8x32xbf16>
    %60 = vector.extract_strided_slice %9 {offsets = [0, 416], sizes = [8, 32], strides = [1, 1]} : vector<8x2592xbf16> to vector<8x32xbf16>
    %61 = vector.extract_strided_slice %9 {offsets = [0, 448], sizes = [8, 32], strides = [1, 1]} : vector<8x2592xbf16> to vector<8x32xbf16>
    %62 = vector.extract_strided_slice %9 {offsets = [0, 672], sizes = [8, 32], strides = [1, 1]} : vector<8x2592xbf16> to vector<8x32xbf16>
    %63 = vector.extract_strided_slice %9 {offsets = [0, 704], sizes = [8, 32], strides = [1, 1]} : vector<8x2592xbf16> to vector<8x32xbf16>
    %64 = vector.extract_strided_slice %9 {offsets = [0, 736], sizes = [8, 32], strides = [1, 1]} : vector<8x2592xbf16> to vector<8x32xbf16>
    %65 = vector.extract_strided_slice %9 {offsets = [0, 960], sizes = [8, 32], strides = [1, 1]} : vector<8x2592xbf16> to vector<8x32xbf16>
    %66 = vector.extract_strided_slice %9 {offsets = [0, 992], sizes = [8, 32], strides = [1, 1]} : vector<8x2592xbf16> to vector<8x32xbf16>
    %67 = vector.extract_strided_slice %9 {offsets = [0, 1024], sizes = [8, 32], strides = [1, 1]} : vector<8x2592xbf16> to vector<8x32xbf16>
    %68 = tpu.concatenate %59, %60, %61, %62, %63, %64, %65, %66, %67 in 1 : vector<8x32xbf16>, vector<8x32xbf16>, vector<8x32xbf16>, vector<8x32xbf16>, vector<8x32xbf16>, vector<8x32xbf16>, vector<8x32xbf16>, vector<8x32xbf16>, vector<8x32xbf16> -> vector<8x288xbf16>
    %69 = vector.extract_strided_slice %9 {offsets = [0, 448], sizes = [8, 32], strides = [1, 1]} : vector<8x2592xbf16> to vector<8x32xbf16>
    %70 = vector.extract_strided_slice %9 {offsets = [0, 480], sizes = [8, 32], strides = [1, 1]} : vector<8x2592xbf16> to vector<8x32xbf16>
    %71 = vector.extract_strided_slice %9 {offsets = [0, 512], sizes = [8, 32], strides = [1, 1]} : vector<8x2592xbf16> to vector<8x32xbf16>
    %72 = vector.extract_strided_slice %9 {offsets = [0, 736], sizes = [8, 32], strides = [1, 1]} : vector<8x2592xbf16> to vector<8x32xbf16>
    %73 = vector.extract_strided_slice %9 {offsets = [0, 768], sizes = [8, 32], strides = [1, 1]} : vector<8x2592xbf16> to vector<8x32xbf16>
    %74 = vector.extract_strided_slice %9 {offsets = [0, 800], sizes = [8, 32], strides = [1, 1]} : vector<8x2592xbf16> to vector<8x32xbf16>
    %75 = vector.extract_strided_slice %9 {offsets = [0, 1024], sizes = [8, 32], strides = [1, 1]} : vector<8x2592xbf16> to vector<8x32xbf16>
    %76 = vector.extract_strided_slice %9 {offsets = [0, 1056], sizes = [8, 32], strides = [1, 1]} : vector<8x2592xbf16> to vector<8x32xbf16>
    %77 = vector.extract_strided_slice %9 {offsets = [0, 1088], sizes = [8, 32], strides = [1, 1]} : vector<8x2592xbf16> to vector<8x32xbf16>
    %78 = tpu.concatenate %69, %70, %71, %72, %73, %74, %75, %76, %77 in 1 : vector<8x32xbf16>, vector<8x32xbf16>, vector<8x32xbf16>, vector<8x32xbf16>, vector<8x32xbf16>, vector<8x32xbf16>, vector<8x32xbf16>, vector<8x32xbf16>, vector<8x32xbf16> -> vector<8x288xbf16>
    %79 = vector.extract_strided_slice %9 {offsets = [0, 512], sizes = [8, 32], strides = [1, 1]} : vector<8x2592xbf16> to vector<8x32xbf16>
    %80 = vector.extract_strided_slice %9 {offsets = [0, 544], sizes = [8, 32], strides = [1, 1]} : vector<8x2592xbf16> to vector<8x32xbf16>
    %81 = vector.extract_strided_slice %9 {offsets = [0, 800], sizes = [8, 32], strides = [1, 1]} : vector<8x2592xbf16> to vector<8x32xbf16>
    %82 = vector.extract_strided_slice %9 {offsets = [0, 832], sizes = [8, 32], strides = [1, 1]} : vector<8x2592xbf16> to vector<8x32xbf16>
    %83 = vector.extract_strided_slice %9 {offsets = [0, 1088], sizes = [8, 32], strides = [1, 1]} : vector<8x2592xbf16> to vector<8x32xbf16>
    %84 = vector.extract_strided_slice %9 {offsets = [0, 1120], sizes = [8, 32], strides = [1, 1]} : vector<8x2592xbf16> to vector<8x32xbf16>
    %85 = tpu.concatenate %79, %80, %10, %81, %82, %10, %83, %84, %10 in 1 : vector<8x32xbf16>, vector<8x32xbf16>, vector<8x32xbf16>, vector<8x32xbf16>, vector<8x32xbf16>, vector<8x32xbf16>, vector<8x32xbf16>, vector<8x32xbf16>, vector<8x32xbf16> -> vector<8x288xbf16>
    %86 = vector.extract_strided_slice %9 {offsets = [0, 864], sizes = [8, 32], strides = [1, 1]} : vector<8x2592xbf16> to vector<8x32xbf16>
    %87 = vector.extract_strided_slice %9 {offsets = [0, 896], sizes = [8, 32], strides = [1, 1]} : vector<8x2592xbf16> to vector<8x32xbf16>
    %88 = vector.extract_strided_slice %9 {offsets = [0, 1152], sizes = [8, 32], strides = [1, 1]} : vector<8x2592xbf16> to vector<8x32xbf16>
    %89 = vector.extract_strided_slice %9 {offsets = [0, 1184], sizes = [8, 32], strides = [1, 1]} : vector<8x2592xbf16> to vector<8x32xbf16>
    %90 = vector.extract_strided_slice %9 {offsets = [0, 1440], sizes = [8, 32], strides = [1, 1]} : vector<8x2592xbf16> to vector<8x32xbf16>
    %91 = vector.extract_strided_slice %9 {offsets = [0, 1472], sizes = [8, 32], strides = [1, 1]} : vector<8x2592xbf16> to vector<8x32xbf16>
    %92 = tpu.concatenate %10, %86, %87, %10, %88, %89, %10, %90, %91 in 1 : vector<8x32xbf16>, vector<8x32xbf16>, vector<8x32xbf16>, vector<8x32xbf16>, vector<8x32xbf16>, vector<8x32xbf16>, vector<8x32xbf16>, vector<8x32xbf16>, vector<8x32xbf16> -> vector<8x288xbf16>
    %93 = vector.extract_strided_slice %9 {offsets = [0, 896], sizes = [8, 32], strides = [1, 1]} : vector<8x2592xbf16> to vector<8x32xbf16>
    %94 = vector.extract_strided_slice %9 {offsets = [0, 928], sizes = [8, 32], strides = [1, 1]} : vector<8x2592xbf16> to vector<8x32xbf16>
    %95 = vector.extract_strided_slice %9 {offsets = [0, 960], sizes = [8, 32], strides = [1, 1]} : vector<8x2592xbf16> to vector<8x32xbf16>
    %96 = vector.extract_strided_slice %9 {offsets = [0, 1184], sizes = [8, 32], strides = [1, 1]} : vector<8x2592xbf16> to vector<8x32xbf16>
    %97 = vector.extract_strided_slice %9 {offsets = [0, 1216], sizes = [8, 32], strides = [1, 1]} : vector<8x2592xbf16> to vector<8x32xbf16>
    %98 = vector.extract_strided_slice %9 {offsets = [0, 1248], sizes = [8, 32], strides = [1, 1]} : vector<8x2592xbf16> to vector<8x32xbf16>
    %99 = vector.extract_strided_slice %9 {offsets = [0, 1472], sizes = [8, 32], strides = [1, 1]} : vector<8x2592xbf16> to vector<8x32xbf16>
    %100 = vector.extract_strided_slice %9 {offsets = [0, 1504], sizes = [8, 32], strides = [1, 1]} : vector<8x2592xbf16> to vector<8x32xbf16>
    %101 = vector.extract_strided_slice %9 {offsets = [0, 1536], sizes = [8, 32], strides = [1, 1]} : vector<8x2592xbf16> to vector<8x32xbf16>
    %102 = tpu.concatenate %93, %94, %95, %96, %97, %98, %99, %100, %101 in 1 : vector<8x32xbf16>, vector<8x32xbf16>, vector<8x32xbf16>, vector<8x32xbf16>, vector<8x32xbf16>, vector<8x32xbf16>, vector<8x32xbf16>, vector<8x32xbf16>, vector<8x32xbf16> -> vector<8x288xbf16>
    %103 = vector.extract_strided_slice %9 {offsets = [0, 960], sizes = [8, 32], strides = [1, 1]} : vector<8x2592xbf16> to vector<8x32xbf16>
    %104 = vector.extract_strided_slice %9 {offsets = [0, 992], sizes = [8, 32], strides = [1, 1]} : vector<8x2592xbf16> to vector<8x32xbf16>
    %105 = vector.extract_strided_slice %9 {offsets = [0, 1024], sizes = [8, 32], strides = [1, 1]} : vector<8x2592xbf16> to vector<8x32xbf16>
    %106 = vector.extract_strided_slice %9 {offsets = [0, 1248], sizes = [8, 32], strides = [1, 1]} : vector<8x2592xbf16> to vector<8x32xbf16>
    %107 = vector.extract_strided_slice %9 {offsets = [0, 1280], sizes = [8, 32], strides = [1, 1]} : vector<8x2592xbf16> to vector<8x32xbf16>
    %108 = vector.extract_strided_slice %9 {offsets = [0, 1312], sizes = [8, 32], strides = [1, 1]} : vector<8x2592xbf16> to vector<8x32xbf16>
    %109 = vector.extract_strided_slice %9 {offsets = [0, 1536], sizes = [8, 32], strides = [1, 1]} : vector<8x2592xbf16> to vector<8x32xbf16>
    %110 = vector.extract_strided_slice %9 {offsets = [0, 1568], sizes = [8, 32], strides = [1, 1]} : vector<8x2592xbf16> to vector<8x32xbf16>
    %111 = vector.extract_strided_slice %9 {offsets = [0, 1600], sizes = [8, 32], strides = [1, 1]} : vector<8x2592xbf16> to vector<8x32xbf16>
    %112 = tpu.concatenate %103, %104, %105, %106, %107, %108, %109, %110, %111 in 1 : vector<8x32xbf16>, vector<8x32xbf16>, vector<8x32xbf16>, vector<8x32xbf16>, vector<8x32xbf16>, vector<8x32xbf16>, vector<8x32xbf16>, vector<8x32xbf16>, vector<8x32xbf16> -> vector<8x288xbf16>
    %113 = vector.extract_strided_slice %9 {offsets = [0, 1024], sizes = [8, 32], strides = [1, 1]} : vector<8x2592xbf16> to vector<8x32xbf16>
    %114 = vector.extract_strided_slice %9 {offsets = [0, 1056], sizes = [8, 32], strides = [1, 1]} : vector<8x2592xbf16> to vector<8x32xbf16>
    %115 = vector.extract_strided_slice %9 {offsets = [0, 1088], sizes = [8, 32], strides = [1, 1]} : vector<8x2592xbf16> to vector<8x32xbf16>
    %116 = vector.extract_strided_slice %9 {offsets = [0, 1312], sizes = [8, 32], strides = [1, 1]} : vector<8x2592xbf16> to vector<8x32xbf16>
    %117 = vector.extract_strided_slice %9 {offsets = [0, 1344], sizes = [8, 32], strides = [1, 1]} : vector<8x2592xbf16> to vector<8x32xbf16>
    %118 = vector.extract_strided_slice %9 {offsets = [0, 1376], sizes = [8, 32], strides = [1, 1]} : vector<8x2592xbf16> to vector<8x32xbf16>
    %119 = vector.extract_strided_slice %9 {offsets = [0, 1600], sizes = [8, 32], strides = [1, 1]} : vector<8x2592xbf16> to vector<8x32xbf16>
    %120 = vector.extract_strided_slice %9 {offsets = [0, 1632], sizes = [8, 32], strides = [1, 1]} : vector<8x2592xbf16> to vector<8x32xbf16>
    %121 = vector.extract_strided_slice %9 {offsets = [0, 1664], sizes = [8, 32], strides = [1, 1]} : vector<8x2592xbf16> to vector<8x32xbf16>
    %122 = tpu.concatenate %113, %114, %115, %116, %117, %118, %119, %120, %121 in 1 : vector<8x32xbf16>, vector<8x32xbf16>, vector<8x32xbf16>, vector<8x32xbf16>, vector<8x32xbf16>, vector<8x32xbf16>, vector<8x32xbf16>, vector<8x32xbf16>, vector<8x32xbf16> -> vector<8x288xbf16>
    %123 = vector.extract_strided_slice %9 {offsets = [0, 1088], sizes = [8, 32], strides = [1, 1]} : vector<8x2592xbf16> to vector<8x32xbf16>
    %124 = vector.extract_strided_slice %9 {offsets = [0, 1120], sizes = [8, 32], strides = [1, 1]} : vector<8x2592xbf16> to vector<8x32xbf16>
    %125 = vector.extract_strided_slice %9 {offsets = [0, 1376], sizes = [8, 32], strides = [1, 1]} : vector<8x2592xbf16> to vector<8x32xbf16>
    %126 = vector.extract_strided_slice %9 {offsets = [0, 1408], sizes = [8, 32], strides = [1, 1]} : vector<8x2592xbf16> to vector<8x32xbf16>
    %127 = vector.extract_strided_slice %9 {offsets = [0, 1664], sizes = [8, 32], strides = [1, 1]} : vector<8x2592xbf16> to vector<8x32xbf16>
    %128 = vector.extract_strided_slice %9 {offsets = [0, 1696], sizes = [8, 32], strides = [1, 1]} : vector<8x2592xbf16> to vector<8x32xbf16>
    %129 = tpu.concatenate %123, %124, %10, %125, %126, %10, %127, %128, %10 in 1 : vector<8x32xbf16>, vector<8x32xbf16>, vector<8x32xbf16>, vector<8x32xbf16>, vector<8x32xbf16>, vector<8x32xbf16>, vector<8x32xbf16>, vector<8x32xbf16>, vector<8x32xbf16> -> vector<8x288xbf16>
    %130 = vector.extract_strided_slice %9 {offsets = [0, 1440], sizes = [8, 32], strides = [1, 1]} : vector<8x2592xbf16> to vector<8x32xbf16>
    %131 = vector.extract_strided_slice %9 {offsets = [0, 1472], sizes = [8, 32], strides = [1, 1]} : vector<8x2592xbf16> to vector<8x32xbf16>
    %132 = vector.extract_strided_slice %9 {offsets = [0, 1728], sizes = [8, 32], strides = [1, 1]} : vector<8x2592xbf16> to vector<8x32xbf16>
    %133 = vector.extract_strided_slice %9 {offsets = [0, 1760], sizes = [8, 32], strides = [1, 1]} : vector<8x2592xbf16> to vector<8x32xbf16>
    %134 = vector.extract_strided_slice %9 {offsets = [0, 2016], sizes = [8, 32], strides = [1, 1]} : vector<8x2592xbf16> to vector<8x32xbf16>
    %135 = vector.extract_strided_slice %9 {offsets = [0, 2048], sizes = [8, 32], strides = [1, 1]} : vector<8x2592xbf16> to vector<8x32xbf16>
    %136 = tpu.concatenate %10, %130, %131, %10, %132, %133, %10, %134, %135 in 1 : vector<8x32xbf16>, vector<8x32xbf16>, vector<8x32xbf16>, vector<8x32xbf16>, vector<8x32xbf16>, vector<8x32xbf16>, vector<8x32xbf16>, vector<8x32xbf16>, vector<8x32xbf16> -> vector<8x288xbf16>
    %137 = vector.extract_strided_slice %9 {offsets = [0, 1472], sizes = [8, 32], strides = [1, 1]} : vector<8x2592xbf16> to vector<8x32xbf16>
    %138 = vector.extract_strided_slice %9 {offsets = [0, 1504], sizes = [8, 32], strides = [1, 1]} : vector<8x2592xbf16> to vector<8x32xbf16>
    %139 = vector.extract_strided_slice %9 {offsets = [0, 1536], sizes = [8, 32], strides = [1, 1]} : vector<8x2592xbf16> to vector<8x32xbf16>
    %140 = vector.extract_strided_slice %9 {offsets = [0, 1760], sizes = [8, 32], strides = [1, 1]} : vector<8x2592xbf16> to vector<8x32xbf16>
    %141 = vector.extract_strided_slice %9 {offsets = [0, 1792], sizes = [8, 32], strides = [1, 1]} : vector<8x2592xbf16> to vector<8x32xbf16>
    %142 = vector.extract_strided_slice %9 {offsets = [0, 1824], sizes = [8, 32], strides = [1, 1]} : vector<8x2592xbf16> to vector<8x32xbf16>
    %143 = vector.extract_strided_slice %9 {offsets = [0, 2048], sizes = [8, 32], strides = [1, 1]} : vector<8x2592xbf16> to vector<8x32xbf16>
    %144 = vector.extract_strided_slice %9 {offsets = [0, 2080], sizes = [8, 32], strides = [1, 1]} : vector<8x2592xbf16> to vector<8x32xbf16>
    %145 = vector.extract_strided_slice %9 {offsets = [0, 2112], sizes = [8, 32], strides = [1, 1]} : vector<8x2592xbf16> to vector<8x32xbf16>
    %146 = tpu.concatenate %137, %138, %139, %140, %141, %142, %143, %144, %145 in 1 : vector<8x32xbf16>, vector<8x32xbf16>, vector<8x32xbf16>, vector<8x32xbf16>, vector<8x32xbf16>, vector<8x32xbf16>, vector<8x32xbf16>, vector<8x32xbf16>, vector<8x32xbf16> -> vector<8x288xbf16>
    %147 = vector.extract_strided_slice %9 {offsets = [0, 1536], sizes = [8, 32], strides = [1, 1]} : vector<8x2592xbf16> to vector<8x32xbf16>
    %148 = vector.extract_strided_slice %9 {offsets = [0, 1568], sizes = [8, 32], strides = [1, 1]} : vector<8x2592xbf16> to vector<8x32xbf16>
    %149 = vector.extract_strided_slice %9 {offsets = [0, 1600], sizes = [8, 32], strides = [1, 1]} : vector<8x2592xbf16> to vector<8x32xbf16>
    %150 = vector.extract_strided_slice %9 {offsets = [0, 1824], sizes = [8, 32], strides = [1, 1]} : vector<8x2592xbf16> to vector<8x32xbf16>
    %151 = vector.extract_strided_slice %9 {offsets = [0, 1856], sizes = [8, 32], strides = [1, 1]} : vector<8x2592xbf16> to vector<8x32xbf16>
    %152 = vector.extract_strided_slice %9 {offsets = [0, 1888], sizes = [8, 32], strides = [1, 1]} : vector<8x2592xbf16> to vector<8x32xbf16>
    %153 = vector.extract_strided_slice %9 {offsets = [0, 2112], sizes = [8, 32], strides = [1, 1]} : vector<8x2592xbf16> to vector<8x32xbf16>
    %154 = vector.extract_strided_slice %9 {offsets = [0, 2144], sizes = [8, 32], strides = [1, 1]} : vector<8x2592xbf16> to vector<8x32xbf16>
    %155 = vector.extract_strided_slice %9 {offsets = [0, 2176], sizes = [8, 32], strides = [1, 1]} : vector<8x2592xbf16> to vector<8x32xbf16>
    %156 = tpu.concatenate %147, %148, %149, %150, %151, %152, %153, %154, %155 in 1 : vector<8x32xbf16>, vector<8x32xbf16>, vector<8x32xbf16>, vector<8x32xbf16>, vector<8x32xbf16>, vector<8x32xbf16>, vector<8x32xbf16>, vector<8x32xbf16>, vector<8x32xbf16> -> vector<8x288xbf16>
    %157 = vector.extract_strided_slice %9 {offsets = [0, 1600], sizes = [8, 32], strides = [1, 1]} : vector<8x2592xbf16> to vector<8x32xbf16>
    %158 = vector.extract_strided_slice %9 {offsets = [0, 1632], sizes = [8, 32], strides = [1, 1]} : vector<8x2592xbf16> to vector<8x32xbf16>
    %159 = vector.extract_strided_slice %9 {offsets = [0, 1664], sizes = [8, 32], strides = [1, 1]} : vector<8x2592xbf16> to vector<8x32xbf16>
    %160 = vector.extract_strided_slice %9 {offsets = [0, 1888], sizes = [8, 32], strides = [1, 1]} : vector<8x2592xbf16> to vector<8x32xbf16>
    %161 = vector.extract_strided_slice %9 {offsets = [0, 1920], sizes = [8, 32], strides = [1, 1]} : vector<8x2592xbf16> to vector<8x32xbf16>
    %162 = vector.extract_strided_slice %9 {offsets = [0, 1952], sizes = [8, 32], strides = [1, 1]} : vector<8x2592xbf16> to vector<8x32xbf16>
    %163 = vector.extract_strided_slice %9 {offsets = [0, 2176], sizes = [8, 32], strides = [1, 1]} : vector<8x2592xbf16> to vector<8x32xbf16>
    %164 = vector.extract_strided_slice %9 {offsets = [0, 2208], sizes = [8, 32], strides = [1, 1]} : vector<8x2592xbf16> to vector<8x32xbf16>
    %165 = vector.extract_strided_slice %9 {offsets = [0, 2240], sizes = [8, 32], strides = [1, 1]} : vector<8x2592xbf16> to vector<8x32xbf16>
    %166 = tpu.concatenate %157, %158, %159, %160, %161, %162, %163, %164, %165 in 1 : vector<8x32xbf16>, vector<8x32xbf16>, vector<8x32xbf16>, vector<8x32xbf16>, vector<8x32xbf16>, vector<8x32xbf16>, vector<8x32xbf16>, vector<8x32xbf16>, vector<8x32xbf16> -> vector<8x288xbf16>
    %167 = vector.extract_strided_slice %9 {offsets = [0, 1664], sizes = [8, 32], strides = [1, 1]} : vector<8x2592xbf16> to vector<8x32xbf16>
    %168 = vector.extract_strided_slice %9 {offsets = [0, 1696], sizes = [8, 32], strides = [1, 1]} : vector<8x2592xbf16> to vector<8x32xbf16>
    %169 = vector.extract_strided_slice %9 {offsets = [0, 1952], sizes = [8, 32], strides = [1, 1]} : vector<8x2592xbf16> to vector<8x32xbf16>
    %170 = vector.extract_strided_slice %9 {offsets = [0, 1984], sizes = [8, 32], strides = [1, 1]} : vector<8x2592xbf16> to vector<8x32xbf16>
    %171 = vector.extract_strided_slice %9 {offsets = [0, 2240], sizes = [8, 32], strides = [1, 1]} : vector<8x2592xbf16> to vector<8x32xbf16>
    %172 = vector.extract_strided_slice %9 {offsets = [0, 2272], sizes = [8, 32], strides = [1, 1]} : vector<8x2592xbf16> to vector<8x32xbf16>
    %173 = tpu.concatenate %167, %168, %10, %169, %170, %10, %171, %172, %10 in 1 : vector<8x32xbf16>, vector<8x32xbf16>, vector<8x32xbf16>, vector<8x32xbf16>, vector<8x32xbf16>, vector<8x32xbf16>, vector<8x32xbf16>, vector<8x32xbf16>, vector<8x32xbf16> -> vector<8x288xbf16>
    %174 = vector.extract_strided_slice %9 {offsets = [0, 2016], sizes = [8, 32], strides = [1, 1]} : vector<8x2592xbf16> to vector<8x32xbf16>
    %175 = vector.extract_strided_slice %9 {offsets = [0, 2048], sizes = [8, 32], strides = [1, 1]} : vector<8x2592xbf16> to vector<8x32xbf16>
    %176 = vector.extract_strided_slice %9 {offsets = [0, 2304], sizes = [8, 32], strides = [1, 1]} : vector<8x2592xbf16> to vector<8x32xbf16>
    %177 = vector.extract_strided_slice %9 {offsets = [0, 2336], sizes = [8, 32], strides = [1, 1]} : vector<8x2592xbf16> to vector<8x32xbf16>
    %178 = tpu.concatenate %10, %174, %175, %10, %176, %177, %10, %10, %10 in 1 : vector<8x32xbf16>, vector<8x32xbf16>, vector<8x32xbf16>, vector<8x32xbf16>, vector<8x32xbf16>, vector<8x32xbf16>, vector<8x32xbf16>, vector<8x32xbf16>, vector<8x32xbf16> -> vector<8x288xbf16>
    %179 = vector.extract_strided_slice %9 {offsets = [0, 2048], sizes = [8, 32], strides = [1, 1]} : vector<8x2592xbf16> to vector<8x32xbf16>
    %180 = vector.extract_strided_slice %9 {offsets = [0, 2080], sizes = [8, 32], strides = [1, 1]} : vector<8x2592xbf16> to vector<8x32xbf16>
    %181 = vector.extract_strided_slice %9 {offsets = [0, 2112], sizes = [8, 32], strides = [1, 1]} : vector<8x2592xbf16> to vector<8x32xbf16>
    %182 = vector.extract_strided_slice %9 {offsets = [0, 2336], sizes = [8, 32], strides = [1, 1]} : vector<8x2592xbf16> to vector<8x32xbf16>
    %183 = vector.extract_strided_slice %9 {offsets = [0, 2368], sizes = [8, 32], strides = [1, 1]} : vector<8x2592xbf16> to vector<8x32xbf16>
    %184 = vector.extract_strided_slice %9 {offsets = [0, 2400], sizes = [8, 32], strides = [1, 1]} : vector<8x2592xbf16> to vector<8x32xbf16>
    %185 = tpu.concatenate %179, %180, %181, %182, %183, %184, %10, %10, %10 in 1 : vector<8x32xbf16>, vector<8x32xbf16>, vector<8x32xbf16>, vector<8x32xbf16>, vector<8x32xbf16>, vector<8x32xbf16>, vector<8x32xbf16>, vector<8x32xbf16>, vector<8x32xbf16> -> vector<8x288xbf16>
    %186 = vector.extract_strided_slice %9 {offsets = [0, 2112], sizes = [8, 32], strides = [1, 1]} : vector<8x2592xbf16> to vector<8x32xbf16>
    %187 = vector.extract_strided_slice %9 {offsets = [0, 2144], sizes = [8, 32], strides = [1, 1]} : vector<8x2592xbf16> to vector<8x32xbf16>
    %188 = vector.extract_strided_slice %9 {offsets = [0, 2176], sizes = [8, 32], strides = [1, 1]} : vector<8x2592xbf16> to vector<8x32xbf16>
    %189 = vector.extract_strided_slice %9 {offsets = [0, 2400], sizes = [8, 32], strides = [1, 1]} : vector<8x2592xbf16> to vector<8x32xbf16>
    %190 = vector.extract_strided_slice %9 {offsets = [0, 2432], sizes = [8, 32], strides = [1, 1]} : vector<8x2592xbf16> to vector<8x32xbf16>
    %191 = vector.extract_strided_slice %9 {offsets = [0, 2464], sizes = [8, 32], strides = [1, 1]} : vector<8x2592xbf16> to vector<8x32xbf16>
    %192 = tpu.concatenate %186, %187, %188, %189, %190, %191, %10, %10, %10 in 1 : vector<8x32xbf16>, vector<8x32xbf16>, vector<8x32xbf16>, vector<8x32xbf16>, vector<8x32xbf16>, vector<8x32xbf16>, vector<8x32xbf16>, vector<8x32xbf16>, vector<8x32xbf16> -> vector<8x288xbf16>
    %193 = vector.extract_strided_slice %9 {offsets = [0, 2176], sizes = [8, 32], strides = [1, 1]} : vector<8x2592xbf16> to vector<8x32xbf16>
    %194 = vector.extract_strided_slice %9 {offsets = [0, 2208], sizes = [8, 32], strides = [1, 1]} : vector<8x2592xbf16> to vector<8x32xbf16>
    %195 = vector.extract_strided_slice %9 {offsets = [0, 2240], sizes = [8, 32], strides = [1, 1]} : vector<8x2592xbf16> to vector<8x32xbf16>
    %196 = vector.extract_strided_slice %9 {offsets = [0, 2464], sizes = [8, 32], strides = [1, 1]} : vector<8x2592xbf16> to vector<8x32xbf16>
    %197 = vector.extract_strided_slice %9 {offsets = [0, 2496], sizes = [8, 32], strides = [1, 1]} : vector<8x2592xbf16> to vector<8x32xbf16>
    %198 = vector.extract_strided_slice %9 {offsets = [0, 2528], sizes = [8, 32], strides = [1, 1]} : vector<8x2592xbf16> to vector<8x32xbf16>
    %199 = tpu.concatenate %193, %194, %195, %196, %197, %198, %10, %10, %10 in 1 : vector<8x32xbf16>, vector<8x32xbf16>, vector<8x32xbf16>, vector<8x32xbf16>, vector<8x32xbf16>, vector<8x32xbf16>, vector<8x32xbf16>, vector<8x32xbf16>, vector<8x32xbf16> -> vector<8x288xbf16>
    %200 = vector.extract_strided_slice %9 {offsets = [0, 2240], sizes = [8, 32], strides = [1, 1]} : vector<8x2592xbf16> to vector<8x32xbf16>
    %201 = vector.extract_strided_slice %9 {offsets = [0, 2272], sizes = [8, 32], strides = [1, 1]} : vector<8x2592xbf16> to vector<8x32xbf16>
    %202 = vector.extract_strided_slice %9 {offsets = [0, 2528], sizes = [8, 32], strides = [1, 1]} : vector<8x2592xbf16> to vector<8x32xbf16>
    %203 = vector.extract_strided_slice %9 {offsets = [0, 2560], sizes = [8, 32], strides = [1, 1]} : vector<8x2592xbf16> to vector<8x32xbf16>
    %204 = tpu.concatenate %200, %201, %10, %202, %203, %10, %10, %10, %10 in 1 : vector<8x32xbf16>, vector<8x32xbf16>, vector<8x32xbf16>, vector<8x32xbf16>, vector<8x32xbf16>, vector<8x32xbf16>, vector<8x32xbf16>, vector<8x32xbf16>, vector<8x32xbf16> -> vector<8x288xbf16>
    %205 = tpu.concatenate %15, %22, %29, %36, %41, %48, %58, %68, %78, %85, %92, %102, %112, %122, %129, %136 in 0 : vector<8x288xbf16>, vector<8x288xbf16>, vector<8x288xbf16>, vector<8x288xbf16>, vector<8x288xbf16>, vector<8x288xbf16>, vector<8x288xbf16>, vector<8x288xbf16>, vector<8x288xbf16>, vector<8x288xbf16>, vector<8x288xbf16>, vector<8x288xbf16>, vector<8x288xbf16>, vector<8x288xbf16>, vector<8x288xbf16>, vector<8x288xbf16> -> vector<128x288xbf16>
    %206 = tpu.concatenate %146, %156, %166, %173, %178, %185, %192, %199, %204 in 0 : vector<8x288xbf16>, vector<8x288xbf16>, vector<8x288xbf16>, vector<8x288xbf16>, vector<8x288xbf16>, vector<8x288xbf16>, vector<8x288xbf16>, vector<8x288xbf16>, vector<8x288xbf16> -> vector<72x288xbf16>
    %207 = tpu.concatenate %205, %206 in 0 : vector<128x288xbf16>, vector<72x288xbf16> -> vector<200x288xbf16>
    %c0_7 = arith.constant 0 : index
    %c0_8 = arith.constant 0 : index
    %208 = vector.load %arg4[%c0_7, %c0_8] : memref<288x64xbf16, #tpu.memory_space<vmem>>, vector<288x64xbf16>
    %cst_9 = arith.constant dense<0.000000e+00> : vector<200x64xf32>
    %209 = tpu.matmul %207, %208, %cst_9 {dimension_numbers = #tpu.dot_dimension_numbers<[1], [0], [0], [1], [0, 0, 1, 1], [], []>} : vector<200x288xbf16>, vector<288x64xbf16>, vector<200x64xf32> -> vector<200x64xf32>
    %c0_10 = arith.constant 0 : index
    %c0_11 = arith.constant 0 : index
    %210 = vector.load %arg5[%c0_10, %c0_11] : memref<1x64xf32, #tpu.memory_space<vmem>>, vector<1x64xf32>
    %211 = vector.broadcast %210 : vector<1x64xf32> to vector<200x64xf32>
    %212 = arith.addf %209, %211 : vector<200x64xf32>
    %cst_12 = arith.constant 0.000000e+00 : f32
    %213 = vector.broadcast %cst_12 : f32 to vector<200x64xf32>
    %214 = arith.maximumf %212, %213 : vector<200x64xf32>
    %215 = arith.truncf %214 : vector<200x64xf32> to vector<200x64xbf16>
    %216 = vector.shape_cast %215 : vector<200x64xbf16> to vector<25x8x64xbf16>
    %217 = vector.extract_strided_slice %216 {offsets = [0, 0, 0], sizes = [1, 8, 64], strides = [1, 1, 1]} : vector<25x8x64xbf16> to vector<1x8x64xbf16>
    %218 = vector.shape_cast %217 : vector<1x8x64xbf16> to vector<8x64xbf16>
    %219 = vector.extract_strided_slice %216 {offsets = [1, 0, 0], sizes = [1, 8, 64], strides = [1, 1, 1]} : vector<25x8x64xbf16> to vector<1x8x64xbf16>
    %220 = vector.shape_cast %219 : vector<1x8x64xbf16> to vector<8x64xbf16>
    %221 = vector.extract_strided_slice %216 {offsets = [2, 0, 0], sizes = [1, 8, 64], strides = [1, 1, 1]} : vector<25x8x64xbf16> to vector<1x8x64xbf16>
    %222 = vector.shape_cast %221 : vector<1x8x64xbf16> to vector<8x64xbf16>
    %223 = vector.extract_strided_slice %216 {offsets = [3, 0, 0], sizes = [1, 8, 64], strides = [1, 1, 1]} : vector<25x8x64xbf16> to vector<1x8x64xbf16>
    %224 = vector.shape_cast %223 : vector<1x8x64xbf16> to vector<8x64xbf16>
    %225 = vector.extract_strided_slice %216 {offsets = [4, 0, 0], sizes = [1, 8, 64], strides = [1, 1, 1]} : vector<25x8x64xbf16> to vector<1x8x64xbf16>
    %226 = vector.shape_cast %225 : vector<1x8x64xbf16> to vector<8x64xbf16>
    %227 = vector.extract_strided_slice %216 {offsets = [5, 0, 0], sizes = [1, 8, 64], strides = [1, 1, 1]} : vector<25x8x64xbf16> to vector<1x8x64xbf16>
    %228 = vector.shape_cast %227 : vector<1x8x64xbf16> to vector<8x64xbf16>
    %229 = vector.extract_strided_slice %216 {offsets = [6, 0, 0], sizes = [1, 8, 64], strides = [1, 1, 1]} : vector<25x8x64xbf16> to vector<1x8x64xbf16>
    %230 = vector.shape_cast %229 : vector<1x8x64xbf16> to vector<8x64xbf16>
    %231 = vector.extract_strided_slice %216 {offsets = [7, 0, 0], sizes = [1, 8, 64], strides = [1, 1, 1]} : vector<25x8x64xbf16> to vector<1x8x64xbf16>
    %232 = vector.shape_cast %231 : vector<1x8x64xbf16> to vector<8x64xbf16>
    %233 = vector.extract_strided_slice %216 {offsets = [8, 0, 0], sizes = [1, 8, 64], strides = [1, 1, 1]} : vector<25x8x64xbf16> to vector<1x8x64xbf16>
    %234 = vector.shape_cast %233 : vector<1x8x64xbf16> to vector<8x64xbf16>
    %235 = vector.extract_strided_slice %216 {offsets = [9, 0, 0], sizes = [1, 8, 64], strides = [1, 1, 1]} : vector<25x8x64xbf16> to vector<1x8x64xbf16>
    %236 = vector.shape_cast %235 : vector<1x8x64xbf16> to vector<8x64xbf16>
    %237 = vector.extract_strided_slice %216 {offsets = [10, 0, 0], sizes = [1, 8, 64], strides = [1, 1, 1]} : vector<25x8x64xbf16> to vector<1x8x64xbf16>
    %238 = vector.shape_cast %237 : vector<1x8x64xbf16> to vector<8x64xbf16>
    %239 = vector.extract_strided_slice %216 {offsets = [11, 0, 0], sizes = [1, 8, 64], strides = [1, 1, 1]} : vector<25x8x64xbf16> to vector<1x8x64xbf16>
    %240 = vector.shape_cast %239 : vector<1x8x64xbf16> to vector<8x64xbf16>
    %241 = vector.extract_strided_slice %216 {offsets = [12, 0, 0], sizes = [1, 8, 64], strides = [1, 1, 1]} : vector<25x8x64xbf16> to vector<1x8x64xbf16>
    %242 = vector.shape_cast %241 : vector<1x8x64xbf16> to vector<8x64xbf16>
    %243 = vector.extract_strided_slice %216 {offsets = [13, 0, 0], sizes = [1, 8, 64], strides = [1, 1, 1]} : vector<25x8x64xbf16> to vector<1x8x64xbf16>
    %244 = vector.shape_cast %243 : vector<1x8x64xbf16> to vector<8x64xbf16>
    %245 = vector.extract_strided_slice %216 {offsets = [14, 0, 0], sizes = [1, 8, 64], strides = [1, 1, 1]} : vector<25x8x64xbf16> to vector<1x8x64xbf16>
    %246 = vector.shape_cast %245 : vector<1x8x64xbf16> to vector<8x64xbf16>
    %247 = vector.extract_strided_slice %216 {offsets = [15, 0, 0], sizes = [1, 8, 64], strides = [1, 1, 1]} : vector<25x8x64xbf16> to vector<1x8x64xbf16>
    %248 = vector.shape_cast %247 : vector<1x8x64xbf16> to vector<8x64xbf16>
    %249 = vector.extract_strided_slice %216 {offsets = [16, 0, 0], sizes = [1, 8, 64], strides = [1, 1, 1]} : vector<25x8x64xbf16> to vector<1x8x64xbf16>
    %250 = vector.shape_cast %249 : vector<1x8x64xbf16> to vector<8x64xbf16>
    %251 = vector.extract_strided_slice %216 {offsets = [17, 0, 0], sizes = [1, 8, 64], strides = [1, 1, 1]} : vector<25x8x64xbf16> to vector<1x8x64xbf16>
    %252 = vector.shape_cast %251 : vector<1x8x64xbf16> to vector<8x64xbf16>
    %253 = vector.extract_strided_slice %216 {offsets = [18, 0, 0], sizes = [1, 8, 64], strides = [1, 1, 1]} : vector<25x8x64xbf16> to vector<1x8x64xbf16>
    %254 = vector.shape_cast %253 : vector<1x8x64xbf16> to vector<8x64xbf16>
    %255 = vector.extract_strided_slice %216 {offsets = [19, 0, 0], sizes = [1, 8, 64], strides = [1, 1, 1]} : vector<25x8x64xbf16> to vector<1x8x64xbf16>
    %256 = vector.shape_cast %255 : vector<1x8x64xbf16> to vector<8x64xbf16>
    %257 = vector.extract_strided_slice %216 {offsets = [20, 0, 0], sizes = [1, 8, 64], strides = [1, 1, 1]} : vector<25x8x64xbf16> to vector<1x8x64xbf16>
    %258 = vector.shape_cast %257 : vector<1x8x64xbf16> to vector<8x64xbf16>
    %259 = vector.extract_strided_slice %216 {offsets = [21, 0, 0], sizes = [1, 8, 64], strides = [1, 1, 1]} : vector<25x8x64xbf16> to vector<1x8x64xbf16>
    %260 = vector.shape_cast %259 : vector<1x8x64xbf16> to vector<8x64xbf16>
    %261 = vector.extract_strided_slice %216 {offsets = [22, 0, 0], sizes = [1, 8, 64], strides = [1, 1, 1]} : vector<25x8x64xbf16> to vector<1x8x64xbf16>
    %262 = vector.shape_cast %261 : vector<1x8x64xbf16> to vector<8x64xbf16>
    %263 = vector.extract_strided_slice %216 {offsets = [23, 0, 0], sizes = [1, 8, 64], strides = [1, 1, 1]} : vector<25x8x64xbf16> to vector<1x8x64xbf16>
    %264 = vector.shape_cast %263 : vector<1x8x64xbf16> to vector<8x64xbf16>
    %265 = vector.extract_strided_slice %216 {offsets = [24, 0, 0], sizes = [1, 8, 64], strides = [1, 1, 1]} : vector<25x8x64xbf16> to vector<1x8x64xbf16>
    %266 = vector.shape_cast %265 : vector<1x8x64xbf16> to vector<8x64xbf16>
    %267 = tpu.concatenate %218, %220, %222, %224, %226, %228, %230, %232, %234, %236, %238, %240, %242, %244, %246, %248 in 1 : vector<8x64xbf16>, vector<8x64xbf16>, vector<8x64xbf16>, vector<8x64xbf16>, vector<8x64xbf16>, vector<8x64xbf16>, vector<8x64xbf16>, vector<8x64xbf16>, vector<8x64xbf16>, vector<8x64xbf16>, vector<8x64xbf16>, vector<8x64xbf16>, vector<8x64xbf16>, vector<8x64xbf16>, vector<8x64xbf16>, vector<8x64xbf16> -> vector<8x1024xbf16>
    %268 = tpu.concatenate %250, %252, %254, %256, %258, %260, %262, %264, %266 in 1 : vector<8x64xbf16>, vector<8x64xbf16>, vector<8x64xbf16>, vector<8x64xbf16>, vector<8x64xbf16>, vector<8x64xbf16>, vector<8x64xbf16>, vector<8x64xbf16>, vector<8x64xbf16> -> vector<8x576xbf16>
    %269 = tpu.concatenate %267, %268 in 1 : vector<8x1024xbf16>, vector<8x576xbf16> -> vector<8x1600xbf16>
    %c0_13 = arith.constant 0 : index
    %c0_14 = arith.constant 0 : index
    %270 = vector.load %arg6[%c0_13, %c0_14] : memref<1600x128xbf16, #tpu.memory_space<vmem>>, vector<1600x128xbf16>
    %cst_15 = arith.constant dense<0.000000e+00> : vector<8x128xf32>
    %271 = tpu.matmul %269, %270, %cst_15 {dimension_numbers = #tpu.dot_dimension_numbers<[1], [0], [0], [1], [0, 0, 1, 1], [], []>} : vector<8x1600xbf16>, vector<1600x128xbf16>, vector<8x128xf32> -> vector<8x128xf32>
    %c0_16 = arith.constant 0 : index
    %c0_17 = arith.constant 0 : index
    %272 = vector.load %arg7[%c0_16, %c0_17] : memref<1x128xf32, #tpu.memory_space<vmem>>, vector<1x128xf32>
    %273 = vector.broadcast %272 : vector<1x128xf32> to vector<8x128xf32>
    %274 = arith.addf %271, %273 : vector<8x128xf32>
    %c0_18 = arith.constant 0 : index
    %c0_19 = arith.constant 0 : index
    %275 = vector.load %arg8[%c0_18, %c0_19] : memref<8x128xf32, #tpu.memory_space<vmem>>, vector<8x128xf32>
    tpu.vector_store %arg8[%c0_18, %c0_19], %274 {strides = array<i32>} : memref<8x128xf32, #tpu.memory_space<vmem>>, vector<8x128xf32>,
    return
  }
  func.func @transform_0(%arg0: i32) -> (i32, i32) {
    %c0_i32 = arith.constant 0 : i32
    %c0_i32_0 = arith.constant 0 : i32
    return %arg0, %c0_i32 : i32, i32
  }
  func.func @transform_1(%arg0: i32) -> (i32, i32) {
    %c0_i32 = arith.constant 0 : i32
    %c0_i32_0 = arith.constant 0 : i32
    %c0_i32_1 = arith.constant 0 : i32
    return %c0_i32, %c0_i32_0 : i32, i32
  }
  func.func @transform_2(%arg0: i32) -> (i32, i32) {
    %c0_i32 = arith.constant 0 : i32
    %c0_i32_0 = arith.constant 0 : i32
    %c0_i32_1 = arith.constant 0 : i32
    return %c0_i32, %c0_i32_0 : i32, i32
  }
  func.func @transform_3(%arg0: i32) -> (i32, i32) {
    %c0_i32 = arith.constant 0 : i32
    %c0_i32_0 = arith.constant 0 : i32
    %c0_i32_1 = arith.constant 0 : i32
    return %c0_i32, %c0_i32_0 : i32, i32
  }
  func.func @transform_4(%arg0: i32) -> (i32, i32) {
    %c0_i32 = arith.constant 0 : i32
    %c0_i32_0 = arith.constant 0 : i32
    %c0_i32_1 = arith.constant 0 : i32
    return %c0_i32, %c0_i32_0 : i32, i32
  }
  func.func @transform_5(%arg0: i32) -> (i32, i32) {
    %c0_i32 = arith.constant 0 : i32
    %c0_i32_0 = arith.constant 0 : i32
    %c0_i32_1 = arith.constant 0 : i32
    return %c0_i32, %c0_i32_0 : i32, i32
  }
  func.func @transform_6(%arg0: i32) -> (i32, i32) {
    %c0_i32 = arith.constant 0 : i32
    %c0_i32_0 = arith.constant 0 : i32
    %c0_i32_1 = arith.constant 0 : i32
    return %c0_i32, %c0_i32_0 : i32, i32
  }
  func.func @transform_7(%arg0: i32) -> (i32, i32) {
    %c0_i32 = arith.constant 0 : i32
    %c0_i32_0 = arith.constant 0 : i32
    return %arg0, %c0_i32 : i32, i32
  }
}

</mosaic_0001>

<llo_original>
// kernel: wall_encoder_forward.1
$region0: #{wall_encoder_forward.1}
  #allocation0 [shape = 'u32[]', space=smem, size = 0x4, offset = 0x4, fixed_abs, tag = 'smem constant byte address 0x4 - core index']
  #allocation1 [shape = 'u32[144,128]{1,0:T(1,128)}', space=vmem, size = 0x12000, scoped, tag = 'internal scratch']
  %s0 = inlined_call_operand.vmem [shape: f32[8,289], index: 0, kind: input, shape index: {}]
  %s1 = inlined_call_operand.vmem [shape: bf16[289,2592], index: 1, kind: input, shape index: {}]
  %s2 = inlined_call_operand.vmem [shape: f32[1,2592], index: 2, kind: input, shape index: {}]
  %s3 = inlined_call_operand.vmem [shape: bf16[288,64], index: 3, kind: input, shape index: {}]
  %s4 = inlined_call_operand.vmem [shape: f32[1,64], index: 4, kind: input, shape index: {}]
  %s5 = inlined_call_operand.vmem [shape: bf16[1600,128], index: 5, kind: input, shape index: {}]
  %s6 = inlined_call_operand.vmem [shape: f32[1,128], index: 6, kind: input, shape index: {}]
  %s7 = inlined_call_operand.vmem [shape: f32[8,128], index: 7, kind: output, shape index: {}]
  %s8 = sld [smem:[#allocation0]]
  $region38: #{wall_encoder_forward.1} parent=0
    _
  %s10 = ssub.s32 1, %s8
  %s11 = scalar_select 0, %s10, %s8
  // Predicated region
  $region2: #{wall_encoder_forward.1} parent=0 // pred_check
    _
  $region3: #{wall_encoder_forward.1} parent=0 // pred_check_branch
    %13 = sbr.rel (0) target = $region5
  $region4: #{wall_encoder_forward.1} parent=0 // pred_region
    _
  $region5: #{wall_encoder_forward.1} parent=0 // pred_fallthru
    _
  // Predicated region
  $region6: #{wall_encoder_forward.1} parent=0 // pred_check
    _
  $region7: #{wall_encoder_forward.1} parent=0 // pred_check_branch
    %15 = sbr.rel (0) target = $region9
  $region8: #{wall_encoder_forward.1} parent=0 // pred_region
    _
  $region9: #{wall_encoder_forward.1} parent=0 // pred_fallthru
    _
  // Predicated region
  $region10: #{wall_encoder_forward.1} parent=0 // pred_check
    _
  $region11: #{wall_encoder_forward.1} parent=0 // pred_check_branch
    %17 = sbr.rel (0) target = $region13
  $region12: #{wall_encoder_forward.1} parent=0 // pred_region
    _
  $region13: #{wall_encoder_forward.1} parent=0 // pred_fallthru
    _
  // Predicated region
  $region14: #{wall_encoder_forward.1} parent=0 // pred_check
    _
  $region15: #{wall_encoder_forward.1} parent=0 // pred_check_branch
    %19 = sbr.rel (0) target = $region17
  $region16: #{wall_encoder_forward.1} parent=0 // pred_region
    _
  $region17: #{wall_encoder_forward.1} parent=0 // pred_fallthru
    _
  // Predicated region
  $region18: #{wall_encoder_forward.1} parent=0 // pred_check
    _
  $region19: #{wall_encoder_forward.1} parent=0 // pred_check_branch
    %21 = sbr.rel (0) target = $region21
  $region20: #{wall_encoder_forward.1} parent=0 // pred_region
    _
  $region21: #{wall_encoder_forward.1} parent=0 // pred_fallthru
    _
  // Predicated region
  $region22: #{wall_encoder_forward.1} parent=0 // pred_check
    _
  $region23: #{wall_encoder_forward.1} parent=0 // pred_check_branch
    %23 = sbr.rel (0) target = $region25
  $region24: #{wall_encoder_forward.1} parent=0 // pred_region
    _
  $region25: #{wall_encoder_forward.1} parent=0 // pred_fallthru
    _
  // Predicated region
  $region26: #{wall_encoder_forward.1} parent=0 // pred_check
    _
  $region27: #{wall_encoder_forward.1} parent=0 // pred_check_branch
    %25 = sbr.rel (0) target = $region29
  $region28: #{wall_encoder_forward.1} parent=0 // pred_region
    _
  $region29: #{wall_encoder_forward.1} parent=0 // pred_fallthru
    _
  %v27 = vld [vmem:[%s0] sm:$0xff]
  %v28 = vld [vmem:[%s0 + $0x8] sm:$0xff]
  %v29 = vld [vmem:[%s0 + $0x10] sm:$0xff]
  %v30 = vpack.c.bf16 %v27, %v27
  %v31 = vpack.c.bf16 %v28, %v28
  %v32 = vpack.c.bf16 %v29, %v29
  %v33 = vld [vmem:[%s1] sm:$0xff]
  %v34 = vld [vmem:[%s1 + $0x8] sm:$0xff]
  %v35 = vld [vmem:[%s1 + $0x10] sm:$0xff]
  %v36 = vld [vmem:[%s1 + $0x18] sm:$0xff]
  %v37 = vld [vmem:[%s1 + $0x20] sm:$0xff]
  %v38 = vld [vmem:[%s1 + $0x28] sm:$0xff]
  %v39 = vld [vmem:[%s1 + $0x30] sm:$0xff]
  %v40 = vld [vmem:[%s1 + $0x38] sm:$0xff]
  %v41 = vld [vmem:[%s1 + $0x40] sm:$0xff]
  %v42 = vld [vmem:[%s1 + $0x48] sm:$0xff]
  %v43 = vld [vmem:[%s1 + $0x50] sm:$0xf]
  %v44 = vld [vmem:[%s1 + $0x54] sm:$0xff]
  %v45 = vld [vmem:[%s1 + $0x5c] sm:$0xff]
  %v46 = vld [vmem:[%s1 + $0x64] sm:$0xff]
  %v47 = vld [vmem:[%s1 + $0x6c] sm:$0xff]
  %v48 = vld [vmem:[%s1 + $0x74] sm:$0xff]
  %v49 = vld [vmem:[%s1 + $0x7c] sm:$0xff]
  %v50 = vld [vmem:[%s1 + $0x84] sm:$0xff]
  %v51 = vld [vmem:[%s1 + $0x8c] sm:$0xff]
  %v52 = vld [vmem:[%s1 + $0x94] sm:$0xff]
  %v53 = vld [vmem:[%s1 + $0x9c] sm:$0xff]
  %v54 = vld [vmem:[%s1 + $0xa4] sm:$0xf]
  %v55 = vld [vmem:[%s1 + $0xa8] sm:$0xff]
  %v56 = vld [vmem:[%s1 + $0xb0] sm:$0xff]
  %v57 = vld [vmem:[%s1 + $0xb8] sm:$0xff]
  %v58 = vld [vmem:[%s1 + $0xc0] sm:$0xff]
  %v59 = vld [vmem:[%s1 + $0xc8] sm:$0xff]
  %v60 = vld [vmem:[%s1 + $0xd0] sm:$0xff]
  %v61 = vld [vmem:[%s1 + $0xd8] sm:$0xff]
  %v62 = vld [vmem:[%s1 + $0xe0] sm:$0xff]
  %v63 = vld [vmem:[%s1 + $0xe8] sm:$0xff]
  %v64 = vld [vmem:[%s1 + $0xf0] sm:$0xff]
  %v65 = vld [vmem:[%s1 + $0xf8] sm:$0xf]
  %v66 = vld [vmem:[%s1 + $0xfc] sm:$0xff]
  %v67 = vld [vmem:[%s1 + $0x104] sm:$0xff]
  %v68 = vld [vmem:[%s1 + $0x10c] sm:$0xff]
  %v69 = vld [vmem:[%s1 + $0x114] sm:$0xff]
  %v70 = vld [vmem:[%s1 + $0x11c] sm:$0xff]
  %v71 = vld [vmem:[%s1 + $0x124] sm:$0xff]
  %v72 = vld [vmem:[%s1 + $0x12c] sm:$0xff]
  %v73 = vld [vmem:[%s1 + $0x134] sm:$0xff]
  %v74 = vld [vmem:[%s1 + $0x13c] sm:$0xff]
  %v75 = vld [vmem:[%s1 + $0x144] sm:$0xff]
  %v76 = vld [vmem:[%s1 + $0x14c] sm:$0xf]
  %v77 = vld [vmem:[%s1 + $0x150] sm:$0xff]
  %v78 = vld [vmem:[%s1 + $0x158] sm:$0xff]
  %v79 = vld [vmem:[%s1 + $0x160] sm:$0xff]
  %v80 = vld [vmem:[%s1 + $0x168] sm:$0xff]
  %v81 = vld [vmem:[%s1 + $0x170] sm:$0xff]
  %v82 = vld [vmem:[%s1 + $0x178] sm:$0xff]
  %v83 = vld [vmem:[%s1 + $0x180] sm:$0xff]
  %v84 = vld [vmem:[%s1 + $0x188] sm:$0xff]
  %v85 = vld [vmem:[%s1 + $0x190] sm:$0xff]
  %v86 = vld [vmem:[%s1 + $0x198] sm:$0xff]
  %v87 = vld [vmem:[%s1 + $0x1a0] sm:$0xf]
  %v88 = vld [vmem:[%s1 + $0x1a4] sm:$0xff]
  %v89 = vld [vmem:[%s1 + $0x1ac] sm:$0xff]
  %v90 = vld [vmem:[%s1 + $0x1b4] sm:$0xff]
  %v91 = vld [vmem:[%s1 + $0x1bc] sm:$0xff]
  %v92 = vld [vmem:[%s1 + $0x1c4] sm:$0xff]
  %v93 = vld [vmem:[%s1 + $0x1cc] sm:$0xff]
  %v94 = vld [vmem:[%s1 + $0x1d4] sm:$0xff]
  %v95 = vld [vmem:[%s1 + $0x1dc] sm:$0xff]
  %v96 = vld [vmem:[%s1 + $0x1e4] sm:$0xff]
  %v97 = vld [vmem:[%s1 + $0x1ec] sm:$0xff]
  %v98 = vld [vmem:[%s1 + $0x1f4] sm:$0xf]
  %v99 = vld [vmem:[%s1 + $0x1f8] sm:$0xff]
  %v100 = vld [vmem:[%s1 + $0x200] sm:$0xff]
  %v101 = vld [vmem:[%s1 + $0x208] sm:$0xff]
  %v102 = vld [vmem:[%s1 + $0x210] sm:$0xff]
  %v103 = vld [vmem:[%s1 + $0x218] sm:$0xff]
  %v104 = vld [vmem:[%s1 + $0x220] sm:$0xff]
  %v105 = vld [vmem:[%s1 + $0x228] sm:$0xff]
  %v106 = vld [vmem:[%s1 + $0x230] sm:$0xff]
  %v107 = vld [vmem:[%s1 + $0x238] sm:$0xff]
  %v108 = vld [vmem:[%s1 + $0x240] sm:$0xff]
  %v109 = vld [vmem:[%s1 + $0x248] sm:$0xf]
  %v110 = vld [vmem:[%s1 + $0x24c] sm:$0xff]
  %v111 = vld [vmem:[%s1 + $0x254] sm:$0xff]
  %v112 = vld [vmem:[%s1 + $0x25c] sm:$0xff]
  %v113 = vld [vmem:[%s1 + $0x264] sm:$0xff]
  %v114 = vld [vmem:[%s1 + $0x26c] sm:$0xff]
  %v115 = vld [vmem:[%s1 + $0x274] sm:$0xff]
  %v116 = vld [vmem:[%s1 + $0x27c] sm:$0xff]
  %v117 = vld [vmem:[%s1 + $0x284] sm:$0xff]
  %v118 = vld [vmem:[%s1 + $0x28c] sm:$0xff]
  %v119 = vld [vmem:[%s1 + $0x294] sm:$0xff]
  %v120 = vld [vmem:[%s1 + $0x29c] sm:$0xf]
  %v121 = vld [vmem:[%s1 + $0x2a0] sm:$0xff]
  %v122 = vld [vmem:[%s1 + $0x2a8] sm:$0xff]
  %v123 = vld [vmem:[%s1 + $0x2b0] sm:$0xff]
  %v124 = vld [vmem:[%s1 + $0x2b8] sm:$0xff]
  %v125 = vld [vmem:[%s1 + $0x2c0] sm:$0xff]
  %v126 = vld [vmem:[%s1 + $0x2c8] sm:$0xff]
  %v127 = vld [vmem:[%s1 + $0x2d0] sm:$0xff]
  %v128 = vld [vmem:[%s1 + $0x2d8] sm:$0xff]
  %v129 = vld [vmem:[%s1 + $0x2e0] sm:$0xff]
  %v130 = vld [vmem:[%s1 + $0x2e8] sm:$0xff]
  %v131 = vld [vmem:[%s1 + $0x2f0] sm:$0xf]
  %v132 = vld [vmem:[%s1 + $0x2f4] sm:$0xff]
  %v133 = vld [vmem:[%s1 + $0x2fc] sm:$0xff]
  %v134 = vld [vmem:[%s1 + $0x304] sm:$0xff]
  %v135 = vld [vmem:[%s1 + $0x30c] sm:$0xff]
  %v136 = vld [vmem:[%s1 + $0x314] sm:$0xff]
  %v137 = vld [vmem:[%s1 + $0x31c] sm:$0xff]
  %v138 = vld [vmem:[%s1 + $0x324] sm:$0xff]
  %v139 = vld [vmem:[%s1 + $0x32c] sm:$0xff]
  %v140 = vld [vmem:[%s1 + $0x334] sm:$0xff]
  %v141 = vld [vmem:[%s1 + $0x33c] sm:$0xff]
  %v142 = vld [vmem:[%s1 + $0x344] sm:$0xf]
  %v143 = vld [vmem:[%s1 + $0x348] sm:$0xff]
  %v144 = vld [vmem:[%s1 + $0x350] sm:$0xff]
  %v145 = vld [vmem:[%s1 + $0x358] sm:$0xff]
  %v146 = vld [vmem:[%s1 + $0x360] sm:$0xff]
  %v147 = vld [vmem:[%s1 + $0x368] sm:$0xff]
  %v148 = vld [vmem:[%s1 + $0x370] sm:$0xff]
  %v149 = vld [vmem:[%s1 + $0x378] sm:$0xff]
  %v150 = vld [vmem:[%s1 + $0x380] sm:$0xff]
  %v151 = vld [vmem:[%s1 + $0x388] sm:$0xff]
  %v152 = vld [vmem:[%s1 + $0x390] sm:$0xff]
  %v153 = vld [vmem:[%s1 + $0x398] sm:$0xf]
  %v154 = vld [vmem:[%s1 + $0x39c] sm:$0xff]
  %v155 = vld [vmem:[%s1 + $0x3a4] sm:$0xff]
  %v156 = vld [vmem:[%s1 + $0x3ac] sm:$0xff]
  %v157 = vld [vmem:[%s1 + $0x3b4] sm:$0xff]
  %v158 = vld [vmem:[%s1 + $0x3bc] sm:$0xff]
  %v159 = vld [vmem:[%s1 + $0x3c4] sm:$0xff]
  %v160 = vld [vmem:[%s1 + $0x3cc] sm:$0xff]
  %v161 = vld [vmem:[%s1 + $0x3d4] sm:$0xff]
  %v162 = vld [vmem:[%s1 + $0x3dc] sm:$0xff]
  %v163 = vld [vmem:[%s1 + $0x3e4] sm:$0xff]
  %v164 = vld [vmem:[%s1 + $0x3ec] sm:$0xf]
  %v165 = vld [vmem:[%s1 + $0x3f0] sm:$0xff]
  %v166 = vld [vmem:[%s1 + $0x3f8] sm:$0xff]
  %v167 = vld [vmem:[%s1 + $0x400] sm:$0xff]
  %v168 = vld [vmem:[%s1 + $0x408] sm:$0xff]
  %v169 = vld [vmem:[%s1 + $0x410] sm:$0xff]
  %v170 = vld [vmem:[%s1 + $0x418] sm:$0xff]
  %v171 = vld [vmem:[%s1 + $0x420] sm:$0xff]
  %v172 = vld [vmem:[%s1 + $0x428] sm:$0xff]
  %v173 = vld [vmem:[%s1 + $0x430] sm:$0xff]
  %v174 = vld [vmem:[%s1 + $0x438] sm:$0xff]
  %v175 = vld [vmem:[%s1 + $0x440] sm:$0xf]
  %v176 = vld [vmem:[%s1 + $0x444] sm:$0xff]
  %v177 = vld [vmem:[%s1 + $0x44c] sm:$0xff]
  %v178 = vld [vmem:[%s1 + $0x454] sm:$0xff]
  %v179 = vld [vmem:[%s1 + $0x45c] sm:$0xff]
  %v180 = vld [vmem:[%s1 + $0x464] sm:$0xff]
  %v181 = vld [vmem:[%s1 + $0x46c] sm:$0xff]
  %v182 = vld [vmem:[%s1 + $0x474] sm:$0xff]
  %v183 = vld [vmem:[%s1 + $0x47c] sm:$0xff]
  %v184 = vld [vmem:[%s1 + $0x484] sm:$0xff]
  %v185 = vld [vmem:[%s1 + $0x48c] sm:$0xff]
  %v186 = vld [vmem:[%s1 + $0x494] sm:$0xf]
  %v187 = vld [vmem:[%s1 + $0x498] sm:$0xff]
  %v188 = vld [vmem:[%s1 + $0x4a0] sm:$0xff]
  %v189 = vld [vmem:[%s1 + $0x4a8] sm:$0xff]
  %v190 = vld [vmem:[%s1 + $0x4b0] sm:$0xff]
  %v191 = vld [vmem:[%s1 + $0x4b8] sm:$0xff]
  %v192 = vld [vmem:[%s1 + $0x4c0] sm:$0xff]
  %v193 = vld [vmem:[%s1 + $0x4c8] sm:$0xff]
  %v194 = vld [vmem:[%s1 + $0x4d0] sm:$0xff]
  %v195 = vld [vmem:[%s1 + $0x4d8] sm:$0xff]
  %v196 = vld [vmem:[%s1 + $0x4e0] sm:$0xff]
  %v197 = vld [vmem:[%s1 + $0x4e8] sm:$0xf]
  %v198 = vld [vmem:[%s1 + $0x4ec] sm:$0xff]
  %v199 = vld [vmem:[%s1 + $0x4f4] sm:$0xff]
  %v200 = vld [vmem:[%s1 + $0x4fc] sm:$0xff]
  %v201 = vld [vmem:[%s1 + $0x504] sm:$0xff]
  %v202 = vld [vmem:[%s1 + $0x50c] sm:$0xff]
  %v203 = vld [vmem:[%s1 + $0x514] sm:$0xff]
  %v204 = vld [vmem:[%s1 + $0x51c] sm:$0xff]
  %v205 = vld [vmem:[%s1 + $0x524] sm:$0xff]
  %v206 = vld [vmem:[%s1 + $0x52c] sm:$0xff]
  %v207 = vld [vmem:[%s1 + $0x534] sm:$0xff]
  %v208 = vld [vmem:[%s1 + $0x53c] sm:$0xf]
  %v209 = vld [vmem:[%s1 + $0x540] sm:$0xff]
  %v210 = vld [vmem:[%s1 + $0x548] sm:$0xff]
  %v211 = vld [vmem:[%s1 + $0x550] sm:$0xff]
  %v212 = vld [vmem:[%s1 + $0x558] sm:$0xff]
  %v213 = vld [vmem:[%s1 + $0x560] sm:$0xff]
  %v214 = vld [vmem:[%s1 + $0x568] sm:$0xff]
  %v215 = vld [vmem:[%s1 + $0x570] sm:$0xff]
  %v216 = vld [vmem:[%s1 + $0x578] sm:$0xff]
  %v217 = vld [vmem:[%s1 + $0x580] sm:$0xff]
  %v218 = vld [vmem:[%s1 + $0x588] sm:$0xff]
  %v219 = vld [vmem:[%s1 + $0x590] sm:$0xf]
  %v220 = vld [vmem:[%s1 + $0x594] sm:$0xff]
  %v221 = vld [vmem:[%s1 + $0x59c] sm:$0xff]
  %v222 = vld [vmem:[%s1 + $0x5a4] sm:$0xff]
  %v223 = vld [vmem:[%s1 + $0x5ac] sm:$0xff]
  %v224 = vld [vmem:[%s1 + $0x5b4] sm:$0xff]
  %v225 = vld [vmem:[%s1 + $0x5bc] sm:$0xff]
  %v226 = vld [vmem:[%s1 + $0x5c4] sm:$0xff]
  %v227 = vld [vmem:[%s1 + $0x5cc] sm:$0xff]
  %v228 = vld [vmem:[%s1 + $0x5d4] sm:$0xff]
  %v229 = vld [vmem:[%s1 + $0x5dc] sm:$0xff]
  %v230 = vld [vmem:[%s1 + $0x5e4] sm:$0xf]
  %v231 = vld [vmem:[%s1 + $0x5e8] sm:$0xff]
  %v232 = vld [vmem:[%s1 + $0x5f0] sm:$0xff]
  %v233 = vld [vmem:[%s1 + $0x5f8] sm:$0xff]
  %v234 = vld [vmem:[%s1 + $0x600] sm:$0xff]
  %v235 = vld [vmem:[%s1 + $0x608] sm:$0xff]
  %v236 = vld [vmem:[%s1 + $0x610] sm:$0xff]
  %v237 = vld [vmem:[%s1 + $0x618] sm:$0xff]
  %v238 = vld [vmem:[%s1 + $0x620] sm:$0xff]
  %v239 = vld [vmem:[%s1 + $0x628] sm:$0xff]
  %v240 = vld [vmem:[%s1 + $0x630] sm:$0xff]
  %v241 = vld [vmem:[%s1 + $0x638] sm:$0xf]
  %v242 = vld [vmem:[%s1 + $0x63c] sm:$0xff]
  %v243 = vld [vmem:[%s1 + $0x644] sm:$0xff]
  %v244 = vld [vmem:[%s1 + $0x64c] sm:$0xff]
  %v245 = vld [vmem:[%s1 + $0x654] sm:$0xff]
  %v246 = vld [vmem:[%s1 + $0x65c] sm:$0xff]
  %v247 = vld [vmem:[%s1 + $0x664] sm:$0xff]
  %v248 = vld [vmem:[%s1 + $0x66c] sm:$0xff]
  %v249 = vld [vmem:[%s1 + $0x674] sm:$0xff]
  %v250 = vld [vmem:[%s1 + $0x67c] sm:$0xff]
  %v251 = vld [vmem:[%s1 + $0x684] sm:$0xff]
  %v252 = vld [vmem:[%s1 + $0x68c] sm:$0xf]
  %v253 = vld [vmem:[%s1 + $0x690] sm:$0xff]
  %v254 = vld [vmem:[%s1 + $0x698] sm:$0xff]
  %v255 = vld [vmem:[%s1 + $0x6a0] sm:$0xff]
  %v256 = vld [vmem:[%s1 + $0x6a8] sm:$0xff]
  %v257 = vld [vmem:[%s1 + $0x6b0] sm:$0xff]
  %v258 = vld [vmem:[%s1 + $0x6b8] sm:$0xff]
  %v259 = vld [vmem:[%s1 + $0x6c0] sm:$0xff]
  %v260 = vld [vmem:[%s1 + $0x6c8] sm:$0xff]
  %v261 = vld [vmem:[%s1 + $0x6d0] sm:$0xff]
  %v262 = vld [vmem:[%s1 + $0x6d8] sm:$0xff]
  %v263 = vld [vmem:[%s1 + $0x6e0] sm:$0xf]
  %v264 = vld [vmem:[%s1 + $0x6e4] sm:$0xff]
  %v265 = vld [vmem:[%s1 + $0x6ec] sm:$0xff]
  %v266 = vld [vmem:[%s1 + $0x6f4] sm:$0xff]
  %v267 = vld [vmem:[%s1 + $0x6fc] sm:$0xff]
  %v268 = vld [vmem:[%s1 + $0x704] sm:$0xff]
  %v269 = vld [vmem:[%s1 + $0x70c] sm:$0xff]
  %v270 = vld [vmem:[%s1 + $0x714] sm:$0xff]
  %v271 = vld [vmem:[%s1 + $0x71c] sm:$0xff]
  %v272 = vld [vmem:[%s1 + $0x724] sm:$0xff]
  %v273 = vld [vmem:[%s1 + $0x72c] sm:$0xff]
  %v274 = vld [vmem:[%s1 + $0x734] sm:$0xf]
  %v275 = vld [vmem:[%s1 + $0x738] sm:$0xff]
  %v276 = vld [vmem:[%s1 + $0x740] sm:$0xff]
  %v277 = vld [vmem:[%s1 + $0x748] sm:$0xff]
  %v278 = vld [vmem:[%s1 + $0x750] sm:$0xff]
  %v279 = vld [vmem:[%s1 + $0x758] sm:$0xff]
  %v280 = vld [vmem:[%s1 + $0x760] sm:$0xff]
  %v281 = vld [vmem:[%s1 + $0x768] sm:$0xff]
  %v282 = vld [vmem:[%s1 + $0x770] sm:$0xff]
  %v283 = vld [vmem:[%s1 + $0x778] sm:$0xff]
  %v284 = vld [vmem:[%s1 + $0x780] sm:$0xff]
  %v285 = vld [vmem:[%s1 + $0x788] sm:$0xf]
  %v286 = vld [vmem:[%s1 + $0x78c] sm:$0xff]
  %v287 = vld [vmem:[%s1 + $0x794] sm:$0xff]
  %v288 = vld [vmem:[%s1 + $0x79c] sm:$0xff]
  %v289 = vld [vmem:[%s1 + $0x7a4] sm:$0xff]
  %v290 = vld [vmem:[%s1 + $0x7ac] sm:$0xff]
  %v291 = vld [vmem:[%s1 + $0x7b4] sm:$0xff]
  %v292 = vld [vmem:[%s1 + $0x7bc] sm:$0xff]
  %v293 = vld [vmem:[%s1 + $0x7c4] sm:$0xff]
  %v294 = vld [vmem:[%s1 + $0x7cc] sm:$0xff]
  %v295 = vld [vmem:[%s1 + $0x7d4] sm:$0xff]
  %v296 = vld [vmem:[%s1 + $0x7dc] sm:$0xf]
  %v297 = vld [vmem:[%s1 + $0x7e0] sm:$0xff]
  %v298 = vld [vmem:[%s1 + $0x7e8] sm:$0xff]
  %v299 = vld [vmem:[%s1 + $0x7f0] sm:$0xff]
  %v300 = vld [vmem:[%s1 + $0x7f8] sm:$0xff]
  %v301 = vld [vmem:[%s1 + $0x800] sm:$0xff]
  %v302 = vld [vmem:[%s1 + $0x808] sm:$0xff]
  %v303 = vld [vmem:[%s1 + $0x810] sm:$0xff]
  %v304 = vld [vmem:[%s1 + $0x818] sm:$0xff]
  %v305 = vld [vmem:[%s1 + $0x820] sm:$0xff]
  %v306 = vld [vmem:[%s1 + $0x828] sm:$0xff]
  %v307 = vld [vmem:[%s1 + $0x830] sm:$0xf]
  %v308 = vld [vmem:[%s1 + $0x834] sm:$0xff]
  %v309 = vld [vmem:[%s1 + $0x83c] sm:$0xff]
  %v310 = vld [vmem:[%s1 + $0x844] sm:$0xff]
  %v311 = vld [vmem:[%s1 + $0x84c] sm:$0xff]
  %v312 = vld [vmem:[%s1 + $0x854] sm:$0xff]
  %v313 = vld [vmem:[%s1 + $0x85c] sm:$0xff]
  %v314 = vld [vmem:[%s1 + $0x864] sm:$0xff]
  %v315 = vld [vmem:[%s1 + $0x86c] sm:$0xff]
  %v316 = vld [vmem:[%s1 + $0x874] sm:$0xff]
  %v317 = vld [vmem:[%s1 + $0x87c] sm:$0xff]
  %v318 = vld [vmem:[%s1 + $0x884] sm:$0xf]
  %v319 = vld [vmem:[%s1 + $0x888] sm:$0xff]
  %v320 = vld [vmem:[%s1 + $0x890] sm:$0xff]
  %v321 = vld [vmem:[%s1 + $0x898] sm:$0xff]
  %v322 = vld [vmem:[%s1 + $0x8a0] sm:$0xff]
  %v323 = vld [vmem:[%s1 + $0x8a8] sm:$0xff]
  %v324 = vld [vmem:[%s1 + $0x8b0] sm:$0xff]
  %v325 = vld [vmem:[%s1 + $0x8b8] sm:$0xff]
  %v326 = vld [vmem:[%s1 + $0x8c0] sm:$0xff]
  %v327 = vld [vmem:[%s1 + $0x8c8] sm:$0xff]
  %v328 = vld [vmem:[%s1 + $0x8d0] sm:$0xff]
  %v329 = vld [vmem:[%s1 + $0x8d8] sm:$0xf]
  %v330 = vld [vmem:[%s1 + $0x8dc] sm:$0xff]
  %v331 = vld [vmem:[%s1 + $0x8e4] sm:$0xff]
  %v332 = vld [vmem:[%s1 + $0x8ec] sm:$0xff]
  %v333 = vld [vmem:[%s1 + $0x8f4] sm:$0xff]
  %v334 = vld [vmem:[%s1 + $0x8fc] sm:$0xff]
  %v335 = vld [vmem:[%s1 + $0x904] sm:$0xff]
  %v336 = vld [vmem:[%s1 + $0x90c] sm:$0xff]
  %v337 = vld [vmem:[%s1 + $0x914] sm:$0xff]
  %v338 = vld [vmem:[%s1 + $0x91c] sm:$0xff]
  %v339 = vld [vmem:[%s1 + $0x924] sm:$0xff]
  %v340 = vld [vmem:[%s1 + $0x92c] sm:$0xf]
  %v341 = vld [vmem:[%s1 + $0x930] sm:$0xff]
  %v342 = vld [vmem:[%s1 + $0x938] sm:$0xff]
  %v343 = vld [vmem:[%s1 + $0x940] sm:$0xff]
  %v344 = vld [vmem:[%s1 + $0x948] sm:$0xff]
  %v345 = vld [vmem:[%s1 + $0x950] sm:$0xff]
  %v346 = vld [vmem:[%s1 + $0x958] sm:$0xff]
  %v347 = vld [vmem:[%s1 + $0x960] sm:$0xff]
  %v348 = vld [vmem:[%s1 + $0x968] sm:$0xff]
  %v349 = vld [vmem:[%s1 + $0x970] sm:$0xff]
  %v350 = vld [vmem:[%s1 + $0x978] sm:$0xff]
  %v351 = vld [vmem:[%s1 + $0x980] sm:$0xf]
  %v352 = vld [vmem:[%s1 + $0x984] sm:$0xff]
  %v353 = vld [vmem:[%s1 + $0x98c] sm:$0xff]
  %v354 = vld [vmem:[%s1 + $0x994] sm:$0xff]
  %v355 = vld [vmem:[%s1 + $0x99c] sm:$0xff]
  %v356 = vld [vmem:[%s1 + $0x9a4] sm:$0xff]
  %v357 = vld [vmem:[%s1 + $0x9ac] sm:$0xff]
  %v358 = vld [vmem:[%s1 + $0x9b4] sm:$0xff]
  %v359 = vld [vmem:[%s1 + $0x9bc] sm:$0xff]
  %v360 = vld [vmem:[%s1 + $0x9c4] sm:$0xff]
  %v361 = vld [vmem:[%s1 + $0x9cc] sm:$0xff]
  %v362 = vld [vmem:[%s1 + $0x9d4] sm:$0xf]
  %v363 = vld [vmem:[%s1 + $0x9d8] sm:$0xff]
  %v364 = vld [vmem:[%s1 + $0x9e0] sm:$0xff]
  %v365 = vld [vmem:[%s1 + $0x9e8] sm:$0xff]
  %v366 = vld [vmem:[%s1 + $0x9f0] sm:$0xff]
  %v367 = vld [vmem:[%s1 + $0x9f8] sm:$0xff]
  %v368 = vld [vmem:[%s1 + $0xa00] sm:$0xff]
  %v369 = vld [vmem:[%s1 + $0xa08] sm:$0xff]
  %v370 = vld [vmem:[%s1 + $0xa10] sm:$0xff]
  %v371 = vld [vmem:[%s1 + $0xa18] sm:$0xff]
  %v372 = vld [vmem:[%s1 + $0xa20] sm:$0xff]
  %v373 = vld [vmem:[%s1 + $0xa28] sm:$0xf]
  %v374 = vld [vmem:[%s1 + $0xa2c] sm:$0xff]
  %v375 = vld [vmem:[%s1 + $0xa34] sm:$0xff]
  %v376 = vld [vmem:[%s1 + $0xa3c] sm:$0xff]
  %v377 = vld [vmem:[%s1 + $0xa44] sm:$0xff]
  %v378 = vld [vmem:[%s1 + $0xa4c] sm:$0xff]
  %v379 = vld [vmem:[%s1 + $0xa54] sm:$0xff]
  %v380 = vld [vmem:[%s1 + $0xa5c] sm:$0xff]
  %v381 = vld [vmem:[%s1 + $0xa64] sm:$0xff]
  %v382 = vld [vmem:[%s1 + $0xa6c] sm:$0xff]
  %v383 = vld [vmem:[%s1 + $0xa74] sm:$0xff]
  %v384 = vld [vmem:[%s1 + $0xa7c] sm:$0xf]
  %v385 = vld [vmem:[%s1 + $0xa80] sm:$0xff]
  %v386 = vld [vmem:[%s1 + $0xa88] sm:$0xff]
  %v387 = vld [vmem:[%s1 + $0xa90] sm:$0xff]
  %v388 = vld [vmem:[%s1 + $0xa98] sm:$0xff]
  %v389 = vld [vmem:[%s1 + $0xaa0] sm:$0xff]
  %v390 = vld [vmem:[%s1 + $0xaa8] sm:$0xff]
  %v391 = vld [vmem:[%s1 + $0xab0] sm:$0xff]
  %v392 = vld [vmem:[%s1 + $0xab8] sm:$0xff]
  %v393 = vld [vmem:[%s1 + $0xac0] sm:$0xff]
  %v394 = vld [vmem:[%s1 + $0xac8] sm:$0xff]
  %v395 = vld [vmem:[%s1 + $0xad0] sm:$0xf]
  %v396 = vld [vmem:[%s1 + $0xad4] sm:$0xff]
  %v397 = vld [vmem:[%s1 + $0xadc] sm:$0xff]
  %v398 = vld [vmem:[%s1 + $0xae4] sm:$0xff]
  %v399 = vld [vmem:[%s1 + $0xaec] sm:$0xff]
  %v400 = vld [vmem:[%s1 + $0xaf4] sm:$0xff]
  %v401 = vld [vmem:[%s1 + $0xafc] sm:$0xff]
  %v402 = vld [vmem:[%s1 + $0xb04] sm:$0xff]
  %v403 = vld [vmem:[%s1 + $0xb0c] sm:$0xff]
  %v404 = vld [vmem:[%s1 + $0xb14] sm:$0xff]
  %v405 = vld [vmem:[%s1 + $0xb1c] sm:$0xff]
  %v406 = vld [vmem:[%s1 + $0xb24] sm:$0xf]
  %v407 = vld [vmem:[%s1 + $0xb28] sm:$0xff]
  %v408 = vld [vmem:[%s1 + $0xb30] sm:$0xff]
  %v409 = vld [vmem:[%s1 + $0xb38] sm:$0xff]
  %v410 = vld [vmem:[%s1 + $0xb40] sm:$0xff]
  %v411 = vld [vmem:[%s1 + $0xb48] sm:$0xff]
  %v412 = vld [vmem:[%s1 + $0xb50] sm:$0xff]
  %v413 = vld [vmem:[%s1 + $0xb58] sm:$0xff]
  %v414 = vld [vmem:[%s1 + $0xb60] sm:$0xff]
  %v415 = vld [vmem:[%s1 + $0xb68] sm:$0xff]
  %v416 = vld [vmem:[%s1 + $0xb70] sm:$0xff]
  %v417 = vld [vmem:[%s1 + $0xb78] sm:$0xf]
  %v418 = vld [vmem:[%s1 + $0xb7c] sm:$0xff]
  %v419 = vld [vmem:[%s1 + $0xb84] sm:$0xff]
  %v420 = vld [vmem:[%s1 + $0xb8c] sm:$0xff]
  %v421 = vld [vmem:[%s1 + $0xb94] sm:$0xff]
  %v422 = vld [vmem:[%s1 + $0xb9c] sm:$0xff]
  %v423 = vld [vmem:[%s1 + $0xba4] sm:$0xff]
  %v424 = vld [vmem:[%s1 + $0xbac] sm:$0xff]
  %v425 = vld [vmem:[%s1 + $0xbb4] sm:$0xff]
  %v426 = vld [vmem:[%s1 + $0xbbc] sm:$0xff]
  %v427 = vld [vmem:[%s1 + $0xbc4] sm:$0xff]
  %v428 = vld [vmem:[%s1 + $0xbcc] sm:$0xf]
  %v429 = vld [vmem:[%s1 + $0xbd0] sm:$0x11]
  %v430 = vld [vmem:[%s1 + $0xbd8] sm:$0x11]
  %v431 = vld [vmem:[%s1 + $0xbe0] sm:$0x11]
  %v432 = vld [vmem:[%s1 + $0xbe8] sm:$0x11]
  %v433 = vld [vmem:[%s1 + $0xbf0] sm:$0x11]
  %v434 = vld [vmem:[%s1 + $0xbf8] sm:$0x11]
  %v435 = vld [vmem:[%s1 + $0xc00] sm:$0x11]
  %v436 = vld [vmem:[%s1 + $0xc08] sm:$0x11]
  %v437 = vld [vmem:[%s1 + $0xc10] sm:$0x11]
  %v438 = vld [vmem:[%s1 + $0xc18] sm:$0x11]
  %v439 = vld [vmem:[%s1 + $0xc20] sm:$0x1]
  %v440 = vld [vmem:[%s2] sm:$0xff]
  %v441 = vld [vmem:[%s2 + $0x8] sm:$0xff]
  %v442 = vld [vmem:[%s2 + $0x10] sm:$0x1f]
  %v446 = vlaneseq
  %v447 = vshrl.u32 %v446, 7
  %v448 = vsub.s32 0, %v447
  %v449 = vrot.slane %v440, %v448
  %v450 = vlaneseq
  %v451 = vshrl.u32 %v450, 7
  %v452 = vsub.s32 1, %v451
  %v453 = vrot.slane %v440, %v452
  %v454 = vlaneseq
  %v455 = vshrl.u32 %v454, 7
  %v456 = vsub.s32 2, %v455
  %v457 = vrot.slane %v440, %v456
  %v458 = vlaneseq
  %v459 = vshrl.u32 %v458, 7
  %v460 = vsub.s32 3, %v459
  %v461 = vrot.slane %v440, %v460
  %v462 = vlaneseq
  %v463 = vshrl.u32 %v462, 7
  %v464 = vsub.s32 4, %v463
  %v465 = vrot.slane %v440, %v464
  %v466 = vlaneseq
  %v467 = vshrl.u32 %v466, 7
  %v468 = vsub.s32 5, %v467
  %v469 = vrot.slane %v440, %v468
  %v470 = vlaneseq
  %v471 = vshrl.u32 %v470, 7
  %v472 = vsub.s32 6, %v471
  %v473 = vrot.slane %v440, %v472
  %v474 = vlaneseq
  %v475 = vshrl.u32 %v474, 7
  %v476 = vsub.s32 7, %v475
  %v477 = vrot.slane %v440, %v476
  %v478 = vlaneseq
  %v479 = vshrl.u32 %v478, 7
  %v480 = vsub.s32 0, %v479
  %v481 = vrot.slane %v441, %v480
  %v482 = vlaneseq
  %v483 = vshrl.u32 %v482, 7
  %v484 = vsub.s32 1, %v483
  %v485 = vrot.slane %v441, %v484
  %v486 = vlaneseq
  %v487 = vshrl.u32 %v486, 7
  %v488 = vsub.s32 2, %v487
  %v489 = vrot.slane %v441, %v488
  %v490 = vlaneseq
  %v491 = vshrl.u32 %v490, 7
  %v492 = vsub.s32 3, %v491
  %v493 = vrot.slane %v441, %v492
  %v494 = vlaneseq
  %v495 = vshrl.u32 %v494, 7
  %v496 = vsub.s32 4, %v495
  %v497 = vrot.slane %v441, %v496
  %v498 = vlaneseq
  %v499 = vshrl.u32 %v498, 7
  %v500 = vsub.s32 5, %v499
  %v501 = vrot.slane %v441, %v500
  %v502 = vlaneseq
  %v503 = vshrl.u32 %v502, 7
  %v504 = vsub.s32 6, %v503
  %v505 = vrot.slane %v441, %v504
  %v506 = vlaneseq
  %v507 = vshrl.u32 %v506, 7
  %v508 = vsub.s32 7, %v507
  %v509 = vrot.slane %v441, %v508
  %v510 = vlaneseq
  %v511 = vshrl.u32 %v510, 7
  %v512 = vsub.s32 0, %v511
  %v513 = vrot.slane %v442, %v512
  %v514 = vlaneseq
  %v515 = vshrl.u32 %v514, 7
  %v516 = vsub.s32 1, %v515
  %v517 = vrot.slane %v442, %v516
  %v518 = vlaneseq
  %v519 = vshrl.u32 %v518, 7
  %v520 = vsub.s32 2, %v519
  %v521 = vrot.slane %v442, %v520
  %v522 = vlaneseq
  %v523 = vshrl.u32 %v522, 7
  %v524 = vsub.s32 3, %v523
  %v525 = vrot.slane %v442, %v524
  %v526 = vlaneseq
  %v527 = vshrl.u32 %v526, 7
  %v528 = vsub.s32 4, %v527
  %v529 = vrot.slane %v442, %v528
  %v958 = vunpack.c.l.b16 %v33
  %v959 = vunpack.c.h.b16 %v33
  %v960 = vunpack.c.l.b16 %v34
  %v961 = vunpack.c.h.b16 %v34
  %v962 = vunpack.c.l.b16 %v35
  %v963 = vunpack.c.h.b16 %v35
  %v964 = vunpack.c.l.b16 %v36
  %v965 = vunpack.c.h.b16 %v36
  %v966 = vunpack.c.l.b16 %v37
  %v967 = vunpack.c.h.b16 %v37
  %v968 = vunpack.c.l.b16 %v38
  %v969 = vunpack.c.h.b16 %v38
  %v970 = vunpack.c.l.b16 %v39
  %v971 = vunpack.c.h.b16 %v39
  %v972 = vunpack.c.l.b16 %v40
  %v973 = vunpack.c.h.b16 %v40
  %v974 = vunpack.c.l.b16 %v41
  %v975 = vunpack.c.h.b16 %v41
  %v976 = vunpack.c.l.b16 %v42
  %v977 = vunpack.c.h.b16 %v42
  %v978 = vunpack.c.l.b16 %v43
  %v979 = vunpack.c.l.b16 %v44
  %v980 = vunpack.c.h.b16 %v44
  %v981 = vunpack.c.l.b16 %v45
  %v982 = vunpack.c.h.b16 %v45
  %v983 = vunpack.c.l.b16 %v46
  %v984 = vunpack.c.h.b16 %v46
  %v985 = vunpack.c.l.b16 %v47
  %v986 = vunpack.c.h.b16 %v47
  %v987 = vunpack.c.l.b16 %v48
  %v988 = vunpack.c.h.b16 %v48
  %v989 = vunpack.c.l.b16 %v49
  %v990 = vunpack.c.h.b16 %v49
  %v991 = vunpack.c.l.b16 %v50
  %v992 = vunpack.c.h.b16 %v50
  %v993 = vunpack.c.l.b16 %v51
  %v994 = vunpack.c.h.b16 %v51
  %v995 = vunpack.c.l.b16 %v52
  %v996 = vunpack.c.h.b16 %v52
  %v997 = vunpack.c.l.b16 %v53
  %v998 = vunpack.c.h.b16 %v53
  %v999 = vunpack.c.l.b16 %v54
  %v1000 = vunpack.c.l.b16 %v55
  %v1001 = vunpack.c.h.b16 %v55
  %v1002 = vunpack.c.l.b16 %v56
  %v1003 = vunpack.c.h.b16 %v56
  %v1004 = vunpack.c.l.b16 %v57
  %v1005 = vunpack.c.h.b16 %v57
  %v1006 = vunpack.c.l.b16 %v58
  %v1007 = vunpack.c.h.b16 %v58
  %v1008 = vunpack.c.l.b16 %v59
  %v1009 = vunpack.c.h.b16 %v59
  %v1010 = vunpack.c.l.b16 %v60
  %v1011 = vunpack.c.h.b16 %v60
  %v1012 = vunpack.c.l.b16 %v61
  %v1013 = vunpack.c.h.b16 %v61
  %v1014 = vunpack.c.l.b16 %v62
  %v1015 = vunpack.c.h.b16 %v62
  %v1016 = vunpack.c.l.b16 %v63
  %v1017 = vunpack.c.h.b16 %v63
  %v1018 = vunpack.c.l.b16 %v64
  %v1019 = vunpack.c.h.b16 %v64
  %v1020 = vunpack.c.l.b16 %v65
  %v1021 = vunpack.c.l.b16 %v66
  %v1022 = vunpack.c.h.b16 %v66
  %v1023 = vunpack.c.l.b16 %v67
  %v1024 = vunpack.c.h.b16 %v67
  %v1025 = vunpack.c.l.b16 %v68
  %v1026 = vunpack.c.h.b16 %v68
  %v1027 = vunpack.c.l.b16 %v69
  %v1028 = vunpack.c.h.b16 %v69
  %v1029 = vunpack.c.l.b16 %v70
  %v1030 = vunpack.c.h.b16 %v70
  %v1031 = vunpack.c.l.b16 %v71
  %v1032 = vunpack.c.h.b16 %v71
  %v1033 = vunpack.c.l.b16 %v72
  %v1034 = vunpack.c.h.b16 %v72
  %v1035 = vunpack.c.l.b16 %v73
  %v1036 = vunpack.c.h.b16 %v73
  %v1037 = vunpack.c.l.b16 %v74
  %v1038 = vunpack.c.h.b16 %v74
  %v1039 = vunpack.c.l.b16 %v75
  %v1040 = vunpack.c.h.b16 %v75
  %v1041 = vunpack.c.l.b16 %v76
  %v1042 = vunpack.c.l.b16 %v77
  %v1043 = vunpack.c.h.b16 %v77
  %v1044 = vunpack.c.l.b16 %v78
  %v1045 = vunpack.c.h.b16 %v78
  %v1046 = vunpack.c.l.b16 %v79
  %v1047 = vunpack.c.h.b16 %v79
  %v1048 = vunpack.c.l.b16 %v80
  %v1049 = vunpack.c.h.b16 %v80
  %v1050 = vunpack.c.l.b16 %v81
  %v1051 = vunpack.c.h.b16 %v81
  %v1052 = vunpack.c.l.b16 %v82
  %v1053 = vunpack.c.h.b16 %v82
  %v1054 = vunpack.c.l.b16 %v83
  %v1055 = vunpack.c.h.b16 %v83
  %v1056 = vunpack.c.l.b16 %v84
  %v1057 = vunpack.c.h.b16 %v84
  %v1058 = vunpack.c.l.b16 %v85
  %v1059 = vunpack.c.h.b16 %v85
  %v1060 = vunpack.c.l.b16 %v86
  %v1061 = vunpack.c.h.b16 %v86
  %v1062 = vunpack.c.l.b16 %v87
  %v1063 = vunpack.c.l.b16 %v88
  %v1064 = vunpack.c.h.b16 %v88
  %v1065 = vunpack.c.l.b16 %v89
  %v1066 = vunpack.c.h.b16 %v89
  %v1067 = vunpack.c.l.b16 %v90
  %v1068 = vunpack.c.h.b16 %v90
  %v1069 = vunpack.c.l.b16 %v91
  %v1070 = vunpack.c.h.b16 %v91
  %v1071 = vunpack.c.l.b16 %v92
  %v1072 = vunpack.c.h.b16 %v92
  %v1073 = vunpack.c.l.b16 %v93
  %v1074 = vunpack.c.h.b16 %v93
  %v1075 = vunpack.c.l.b16 %v94
  %v1076 = vunpack.c.h.b16 %v94
  %v1077 = vunpack.c.l.b16 %v95
  %v1078 = vunpack.c.h.b16 %v95
  %v1079 = vunpack.c.l.b16 %v96
  %v1080 = vunpack.c.h.b16 %v96
  %v1081 = vunpack.c.l.b16 %v97
  %v1082 = vunpack.c.h.b16 %v97
  %v1083 = vunpack.c.l.b16 %v98
  %v1084 = vunpack.c.l.b16 %v99
  %v1085 = vunpack.c.h.b16 %v99
  %v1086 = vunpack.c.l.b16 %v100
  %v1087 = vunpack.c.h.b16 %v100
  %v1088 = vunpack.c.l.b16 %v101
  %v1089 = vunpack.c.h.b16 %v101
  %v1090 = vunpack.c.l.b16 %v102
  %v1091 = vunpack.c.h.b16 %v102
  %v1092 = vunpack.c.l.b16 %v103
  %v1093 = vunpack.c.h.b16 %v103
  %v1094 = vunpack.c.l.b16 %v104
  %v1095 = vunpack.c.h.b16 %v104
  %v1096 = vunpack.c.l.b16 %v105
  %v1097 = vunpack.c.h.b16 %v105
  %v1098 = vunpack.c.l.b16 %v106
  %v1099 = vunpack.c.h.b16 %v106
  %v1100 = vunpack.c.l.b16 %v107
  %v1101 = vunpack.c.h.b16 %v107
  %v1102 = vunpack.c.l.b16 %v108
  %v1103 = vunpack.c.h.b16 %v108
  %v1104 = vunpack.c.l.b16 %v109
  %v1105 = vunpack.c.l.b16 %v110
  %v1106 = vunpack.c.h.b16 %v110
  %v1107 = vunpack.c.l.b16 %v111
  %v1108 = vunpack.c.h.b16 %v111
  %v1109 = vunpack.c.l.b16 %v112
  %v1110 = vunpack.c.h.b16 %v112
  %v1111 = vunpack.c.l.b16 %v113
  %v1112 = vunpack.c.h.b16 %v113
  %v1113 = vunpack.c.l.b16 %v114
  %v1114 = vunpack.c.h.b16 %v114
  %v1115 = vunpack.c.l.b16 %v115
  %v1116 = vunpack.c.h.b16 %v115
  %v1117 = vunpack.c.l.b16 %v116
  %v1118 = vunpack.c.h.b16 %v116
  %v1119 = vunpack.c.l.b16 %v117
  %v1120 = vunpack.c.h.b16 %v117
  %v1121 = vunpack.c.l.b16 %v118
  %v1122 = vunpack.c.h.b16 %v118
  %v1123 = vunpack.c.l.b16 %v119
  %v1124 = vunpack.c.h.b16 %v119
  %v1125 = vunpack.c.l.b16 %v120
  %v1126 = vunpack.c.l.b16 %v121
  %v1127 = vunpack.c.h.b16 %v121
  %v1128 = vunpack.c.l.b16 %v122
  %v1129 = vunpack.c.h.b16 %v122
  %v1130 = vunpack.c.l.b16 %v123
  %v1131 = vunpack.c.h.b16 %v123
  %v1132 = vunpack.c.l.b16 %v124
  %v1133 = vunpack.c.h.b16 %v124
  %v1134 = vunpack.c.l.b16 %v125
  %v1135 = vunpack.c.h.b16 %v125
  %v1136 = vunpack.c.l.b16 %v126
  %v1137 = vunpack.c.h.b16 %v126
  %v1138 = vunpack.c.l.b16 %v127
  %v1139 = vunpack.c.h.b16 %v127
  %v1140 = vunpack.c.l.b16 %v128
  %v1141 = vunpack.c.h.b16 %v128
  %v1142 = vunpack.c.l.b16 %v129
  %v1143 = vunpack.c.h.b16 %v129
  %v1144 = vunpack.c.l.b16 %v130
  %v1145 = vunpack.c.h.b16 %v130
  %v1146 = vunpack.c.l.b16 %v131
  %v1147 = vunpack.c.l.b16 %v132
  %v1148 = vunpack.c.h.b16 %v132
  %v1149 = vunpack.c.l.b16 %v133
  %v1150 = vunpack.c.h.b16 %v133
  %v1151 = vunpack.c.l.b16 %v134
  %v1152 = vunpack.c.h.b16 %v134
  %v1153 = vunpack.c.l.b16 %v135
  %v1154 = vunpack.c.h.b16 %v135
  %v1155 = vunpack.c.l.b16 %v136
  %v1156 = vunpack.c.h.b16 %v136
  %v1157 = vunpack.c.l.b16 %v137
  %v1158 = vunpack.c.h.b16 %v137
  %v1159 = vunpack.c.l.b16 %v138
  %v1160 = vunpack.c.h.b16 %v138
  %v1161 = vunpack.c.l.b16 %v139
  %v1162 = vunpack.c.h.b16 %v139
  %v1163 = vunpack.c.l.b16 %v140
  %v1164 = vunpack.c.h.b16 %v140
  %v1165 = vunpack.c.l.b16 %v141
  %v1166 = vunpack.c.h.b16 %v141
  %v1167 = vunpack.c.l.b16 %v142
  %v1168 = vunpack.c.l.b16 %v143
  %v1169 = vunpack.c.h.b16 %v143
  %v1170 = vunpack.c.l.b16 %v144
  %v1171 = vunpack.c.h.b16 %v144
  %v1172 = vunpack.c.l.b16 %v145
  %v1173 = vunpack.c.h.b16 %v145
  %v1174 = vunpack.c.l.b16 %v146
  %v1175 = vunpack.c.h.b16 %v146
  %v1176 = vunpack.c.l.b16 %v147
  %v1177 = vunpack.c.h.b16 %v147
  %v1178 = vunpack.c.l.b16 %v148
  %v1179 = vunpack.c.h.b16 %v148
  %v1180 = vunpack.c.l.b16 %v149
  %v1181 = vunpack.c.h.b16 %v149
  %v1182 = vunpack.c.l.b16 %v150
  %v1183 = vunpack.c.h.b16 %v150
  %v1184 = vunpack.c.l.b16 %v151
  %v1185 = vunpack.c.h.b16 %v151
  %v1186 = vunpack.c.l.b16 %v152
  %v1187 = vunpack.c.h.b16 %v152
  %v1188 = vunpack.c.l.b16 %v153
  %v1189 = vunpack.c.l.b16 %v154
  %v1190 = vunpack.c.h.b16 %v154
  %v1191 = vunpack.c.l.b16 %v155
  %v1192 = vunpack.c.h.b16 %v155
  %v1193 = vunpack.c.l.b16 %v156
  %v1194 = vunpack.c.h.b16 %v156
  %v1195 = vunpack.c.l.b16 %v157
  %v1196 = vunpack.c.h.b16 %v157
  %v1197 = vunpack.c.l.b16 %v158
  %v1198 = vunpack.c.h.b16 %v158
  %v1199 = vunpack.c.l.b16 %v159
  %v1200 = vunpack.c.h.b16 %v159
  %v1201 = vunpack.c.l.b16 %v160
  %v1202 = vunpack.c.h.b16 %v160
  %v1203 = vunpack.c.l.b16 %v161
  %v1204 = vunpack.c.h.b16 %v161
  %v1205 = vunpack.c.l.b16 %v162
  %v1206 = vunpack.c.h.b16 %v162
  %v1207 = vunpack.c.l.b16 %v163
  %v1208 = vunpack.c.h.b16 %v163
  %v1209 = vunpack.c.l.b16 %v164
  %v1210 = vunpack.c.l.b16 %v165
  %v1211 = vunpack.c.h.b16 %v165
  %v1212 = vunpack.c.l.b16 %v166
  %v1213 = vunpack.c.h.b16 %v166
  %v1214 = vunpack.c.l.b16 %v167
  %v1215 = vunpack.c.h.b16 %v167
  %v1216 = vunpack.c.l.b16 %v168
  %v1217 = vunpack.c.h.b16 %v168
  %v1218 = vunpack.c.l.b16 %v169
  %v1219 = vunpack.c.h.b16 %v169
  %v1220 = vunpack.c.l.b16 %v170
  %v1221 = vunpack.c.h.b16 %v170
  %v1222 = vunpack.c.l.b16 %v171
  %v1223 = vunpack.c.h.b16 %v171
  %v1224 = vunpack.c.l.b16 %v172
  %v1225 = vunpack.c.h.b16 %v172
  %v1226 = vunpack.c.l.b16 %v173
  %v1227 = vunpack.c.h.b16 %v173
  %v1228 = vunpack.c.l.b16 %v174
  %v1229 = vunpack.c.h.b16 %v174
  %v1230 = vunpack.c.l.b16 %v175
  %v1231 = vunpack.c.l.b16 %v176
  %v1232 = vunpack.c.h.b16 %v176
  %v1233 = vunpack.c.l.b16 %v177
  %v1234 = vunpack.c.h.b16 %v177
  %v1235 = vunpack.c.l.b16 %v178
  %v1236 = vunpack.c.h.b16 %v178
  %v1237 = vunpack.c.l.b16 %v179
  %v1238 = vunpack.c.h.b16 %v179
  %v1239 = vunpack.c.l.b16 %v180
  %v1240 = vunpack.c.h.b16 %v180
  %v1241 = vunpack.c.l.b16 %v181
  %v1242 = vunpack.c.h.b16 %v181
  %v1243 = vunpack.c.l.b16 %v182
  %v1244 = vunpack.c.h.b16 %v182
  %v1245 = vunpack.c.l.b16 %v183
  %v1246 = vunpack.c.h.b16 %v183
  %v1247 = vunpack.c.l.b16 %v184
  %v1248 = vunpack.c.h.b16 %v184
  %v1249 = vunpack.c.l.b16 %v185
  %v1250 = vunpack.c.h.b16 %v185
  %v1251 = vunpack.c.l.b16 %v186
  %v1252 = vunpack.c.l.b16 %v187
  %v1253 = vunpack.c.h.b16 %v187
  %v1254 = vunpack.c.l.b16 %v188
  %v1255 = vunpack.c.h.b16 %v188
  %v1256 = vunpack.c.l.b16 %v189
  %v1257 = vunpack.c.h.b16 %v189
  %v1258 = vunpack.c.l.b16 %v190
  %v1259 = vunpack.c.h.b16 %v190
  %v1260 = vunpack.c.l.b16 %v191
  %v1261 = vunpack.c.h.b16 %v191
  %v1262 = vunpack.c.l.b16 %v192
  %v1263 = vunpack.c.h.b16 %v192
  %v1264 = vunpack.c.l.b16 %v193
  %v1265 = vunpack.c.h.b16 %v193
  %v1266 = vunpack.c.l.b16 %v194
  %v1267 = vunpack.c.h.b16 %v194
  %v1268 = vunpack.c.l.b16 %v195
  %v1269 = vunpack.c.h.b16 %v195
  %v1270 = vunpack.c.l.b16 %v196
  %v1271 = vunpack.c.h.b16 %v196
  %v1272 = vunpack.c.l.b16 %v197
  %v1273 = vunpack.c.l.b16 %v198
  %v1274 = vunpack.c.h.b16 %v198
  %v1275 = vunpack.c.l.b16 %v199
  %v1276 = vunpack.c.h.b16 %v199
  %v1277 = vunpack.c.l.b16 %v200
  %v1278 = vunpack.c.h.b16 %v200
  %v1279 = vunpack.c.l.b16 %v201
  %v1280 = vunpack.c.h.b16 %v201
  %v1281 = vunpack.c.l.b16 %v202
  %v1282 = vunpack.c.h.b16 %v202
  %v1283 = vunpack.c.l.b16 %v203
  %v1284 = vunpack.c.h.b16 %v203
  %v1285 = vunpack.c.l.b16 %v204
  %v1286 = vunpack.c.h.b16 %v204
  %v1287 = vunpack.c.l.b16 %v205
  %v1288 = vunpack.c.h.b16 %v205
  %v1289 = vunpack.c.l.b16 %v206
  %v1290 = vunpack.c.h.b16 %v206
  %v1291 = vunpack.c.l.b16 %v207
  %v1292 = vunpack.c.h.b16 %v207
  %v1293 = vunpack.c.l.b16 %v208
  %v1294 = vunpack.c.l.b16 %v209
  %v1295 = vunpack.c.h.b16 %v209
  %v1296 = vunpack.c.l.b16 %v210
  %v1297 = vunpack.c.h.b16 %v210
  %v1298 = vunpack.c.l.b16 %v211
  %v1299 = vunpack.c.h.b16 %v211
  %v1300 = vunpack.c.l.b16 %v212
  %v1301 = vunpack.c.h.b16 %v212
  %v1302 = vunpack.c.l.b16 %v213
  %v1303 = vunpack.c.h.b16 %v213
  %v1304 = vunpack.c.l.b16 %v214
  %v1305 = vunpack.c.h.b16 %v214
  %v1306 = vunpack.c.l.b16 %v215
  %v1307 = vunpack.c.h.b16 %v215
  %v1308 = vunpack.c.l.b16 %v216
  %v1309 = vunpack.c.h.b16 %v216
  %v1310 = vunpack.c.l.b16 %v217
  %v1311 = vunpack.c.h.b16 %v217
  %v1312 = vunpack.c.l.b16 %v218
  %v1313 = vunpack.c.h.b16 %v218
  %v1314 = vunpack.c.l.b16 %v219
  %v1315 = vunpack.c.l.b16 %v220
  %v1316 = vunpack.c.h.b16 %v220
  %v1317 = vunpack.c.l.b16 %v221
  %v1318 = vunpack.c.h.b16 %v221
  %v1319 = vunpack.c.l.b16 %v222
  %v1320 = vunpack.c.h.b16 %v222
  %v1321 = vunpack.c.l.b16 %v223
  %v1322 = vunpack.c.h.b16 %v223
  %v1323 = vunpack.c.l.b16 %v224
  %v1324 = vunpack.c.h.b16 %v224
  %v1325 = vunpack.c.l.b16 %v225
  %v1326 = vunpack.c.h.b16 %v225
  %v1327 = vunpack.c.l.b16 %v226
  %v1328 = vunpack.c.h.b16 %v226
  %v1329 = vunpack.c.l.b16 %v227
  %v1330 = vunpack.c.h.b16 %v227
  %v1331 = vunpack.c.l.b16 %v228
  %v1332 = vunpack.c.h.b16 %v228
  %v1333 = vunpack.c.l.b16 %v229
  %v1334 = vunpack.c.h.b16 %v229
  %v1335 = vunpack.c.l.b16 %v230
  %v1336 = vunpack.c.l.b16 %v231
  %v1337 = vunpack.c.h.b16 %v231
  %v1338 = vunpack.c.l.b16 %v232
  %v1339 = vunpack.c.h.b16 %v232
  %v1340 = vunpack.c.l.b16 %v233
  %v1341 = vunpack.c.h.b16 %v233
  %v1342 = vunpack.c.l.b16 %v234
  %v1343 = vunpack.c.h.b16 %v234
  %v1344 = vunpack.c.l.b16 %v235
  %v1345 = vunpack.c.h.b16 %v235
  %v1346 = vunpack.c.l.b16 %v236
  %v1347 = vunpack.c.h.b16 %v236
  %v1348 = vunpack.c.l.b16 %v237
  %v1349 = vunpack.c.h.b16 %v237
  %v1350 = vunpack.c.l.b16 %v238
  %v1351 = vunpack.c.h.b16 %v238
  %v1352 = vunpack.c.l.b16 %v239
  %v1353 = vunpack.c.h.b16 %v239
  %v1354 = vunpack.c.l.b16 %v240
  %v1355 = vunpack.c.h.b16 %v240
  %v1356 = vunpack.c.l.b16 %v241
  %v1357 = vunpack.c.l.b16 %v242
  %v1358 = vunpack.c.h.b16 %v242
  %v1359 = vunpack.c.l.b16 %v243
  %v1360 = vunpack.c.h.b16 %v243
  %v1361 = vunpack.c.l.b16 %v244
  %v1362 = vunpack.c.h.b16 %v244
  %v1363 = vunpack.c.l.b16 %v245
  %v1364 = vunpack.c.h.b16 %v245
  %v1365 = vunpack.c.l.b16 %v246
  %v1366 = vunpack.c.h.b16 %v246
  %v1367 = vunpack.c.l.b16 %v247
  %v1368 = vunpack.c.h.b16 %v247
  %v1369 = vunpack.c.l.b16 %v248
  %v1370 = vunpack.c.h.b16 %v248
  %v1371 = vunpack.c.l.b16 %v249
  %v1372 = vunpack.c.h.b16 %v249
  %v1373 = vunpack.c.l.b16 %v250
  %v1374 = vunpack.c.h.b16 %v250
  %v1375 = vunpack.c.l.b16 %v251
  %v1376 = vunpack.c.h.b16 %v251
  %v1377 = vunpack.c.l.b16 %v252
  %v1378 = vunpack.c.l.b16 %v253
  %v1379 = vunpack.c.h.b16 %v253
  %v1380 = vunpack.c.l.b16 %v254
  %v1381 = vunpack.c.h.b16 %v254
  %v1382 = vunpack.c.l.b16 %v255
  %v1383 = vunpack.c.h.b16 %v255
  %v1384 = vunpack.c.l.b16 %v256
  %v1385 = vunpack.c.h.b16 %v256
  %v1386 = vunpack.c.l.b16 %v257
  %v1387 = vunpack.c.h.b16 %v257
  %v1388 = vunpack.c.l.b16 %v258
  %v1389 = vunpack.c.h.b16 %v258
  %v1390 = vunpack.c.l.b16 %v259
  %v1391 = vunpack.c.h.b16 %v259
  %v1392 = vunpack.c.l.b16 %v260
  %v1393 = vunpack.c.h.b16 %v260
  %v1394 = vunpack.c.l.b16 %v261
  %v1395 = vunpack.c.h.b16 %v261
  %v1396 = vunpack.c.l.b16 %v262
  %v1397 = vunpack.c.h.b16 %v262
  %v1398 = vunpack.c.l.b16 %v263
  %v1399 = vunpack.c.l.b16 %v264
  %v1400 = vunpack.c.h.b16 %v264
  %v1401 = vunpack.c.l.b16 %v265
  %v1402 = vunpack.c.h.b16 %v265
  %v1403 = vunpack.c.l.b16 %v266
  %v1404 = vunpack.c.h.b16 %v266
  %v1405 = vunpack.c.l.b16 %v267
  %v1406 = vunpack.c.h.b16 %v267
  %v1407 = vunpack.c.l.b16 %v268
  %v1408 = vunpack.c.h.b16 %v268
  %v1409 = vunpack.c.l.b16 %v269
  %v1410 = vunpack.c.h.b16 %v269
  %v1411 = vunpack.c.l.b16 %v270
  %v1412 = vunpack.c.h.b16 %v270
  %v1413 = vunpack.c.l.b16 %v271
  %v1414 = vunpack.c.h.b16 %v271
  %v1415 = vunpack.c.l.b16 %v272
  %v1416 = vunpack.c.h.b16 %v272
  %v1417 = vunpack.c.l.b16 %v273
  %v1418 = vunpack.c.h.b16 %v273
  %v1419 = vunpack.c.l.b16 %v274
  %v1420 = vunpack.c.l.b16 %v275
  %v1421 = vunpack.c.h.b16 %v275
  %v1422 = vunpack.c.l.b16 %v276
  %v1423 = vunpack.c.h.b16 %v276
  %v1424 = vunpack.c.l.b16 %v277
  %v1425 = vunpack.c.h.b16 %v277
  %v1426 = vunpack.c.l.b16 %v278
  %v1427 = vunpack.c.h.b16 %v278
  %v1428 = vunpack.c.l.b16 %v279
  %v1429 = vunpack.c.h.b16 %v279
  %v1430 = vunpack.c.l.b16 %v280
  %v1431 = vunpack.c.h.b16 %v280
  %v1432 = vunpack.c.l.b16 %v281
  %v1433 = vunpack.c.h.b16 %v281
  %v1434 = vunpack.c.l.b16 %v282
  %v1435 = vunpack.c.h.b16 %v282
  %v1436 = vunpack.c.l.b16 %v283
  %v1437 = vunpack.c.h.b16 %v283
  %v1438 = vunpack.c.l.b16 %v284
  %v1439 = vunpack.c.h.b16 %v284
  %v1440 = vunpack.c.l.b16 %v285
  %v1441 = vunpack.c.l.b16 %v286
  %v1442 = vunpack.c.h.b16 %v286
  %v1443 = vunpack.c.l.b16 %v287
  %v1444 = vunpack.c.h.b16 %v287
  %v1445 = vunpack.c.l.b16 %v288
  %v1446 = vunpack.c.h.b16 %v288
  %v1447 = vunpack.c.l.b16 %v289
  %v1448 = vunpack.c.h.b16 %v289
  %v1449 = vunpack.c.l.b16 %v290
  %v1450 = vunpack.c.h.b16 %v290
  %v1451 = vunpack.c.l.b16 %v291
  %v1452 = vunpack.c.h.b16 %v291
  %v1453 = vunpack.c.l.b16 %v292
  %v1454 = vunpack.c.h.b16 %v292
  %v1455 = vunpack.c.l.b16 %v293
  %v1456 = vunpack.c.h.b16 %v293
  %v1457 = vunpack.c.l.b16 %v294
  %v1458 = vunpack.c.h.b16 %v294
  %v1459 = vunpack.c.l.b16 %v295
  %v1460 = vunpack.c.h.b16 %v295
  %v1461 = vunpack.c.l.b16 %v296
  %v1462 = vunpack.c.l.b16 %v297
  %v1463 = vunpack.c.h.b16 %v297
  %v1464 = vunpack.c.l.b16 %v298
  %v1465 = vunpack.c.h.b16 %v298
  %v1466 = vunpack.c.l.b16 %v299
  %v1467 = vunpack.c.h.b16 %v299
  %v1468 = vunpack.c.l.b16 %v300
  %v1469 = vunpack.c.h.b16 %v300
  %v1470 = vunpack.c.l.b16 %v301
  %v1471 = vunpack.c.h.b16 %v301
  %v1472 = vunpack.c.l.b16 %v302
  %v1473 = vunpack.c.h.b16 %v302
  %v1474 = vunpack.c.l.b16 %v303
  %v1475 = vunpack.c.h.b16 %v303
  %v1476 = vunpack.c.l.b16 %v304
  %v1477 = vunpack.c.h.b16 %v304
  %v1478 = vunpack.c.l.b16 %v305
  %v1479 = vunpack.c.h.b16 %v305
  %v1480 = vunpack.c.l.b16 %v306
  %v1481 = vunpack.c.h.b16 %v306
  %v1482 = vunpack.c.l.b16 %v307
  %v1483 = vunpack.c.l.b16 %v308
  %v1484 = vunpack.c.h.b16 %v308
  %v1485 = vunpack.c.l.b16 %v309
  %v1486 = vunpack.c.h.b16 %v309
  %v1487 = vunpack.c.l.b16 %v310
  %v1488 = vunpack.c.h.b16 %v310
  %v1489 = vunpack.c.l.b16 %v311
  %v1490 = vunpack.c.h.b16 %v311
  %v1491 = vunpack.c.l.b16 %v312
  %v1492 = vunpack.c.h.b16 %v312
  %v1493 = vunpack.c.l.b16 %v313
  %v1494 = vunpack.c.h.b16 %v313
  %v1495 = vunpack.c.l.b16 %v314
  %v1496 = vunpack.c.h.b16 %v314
  %v1497 = vunpack.c.l.b16 %v315
  %v1498 = vunpack.c.h.b16 %v315
  %v1499 = vunpack.c.l.b16 %v316
  %v1500 = vunpack.c.h.b16 %v316
  %v1501 = vunpack.c.l.b16 %v317
  %v1502 = vunpack.c.h.b16 %v317
  %v1503 = vunpack.c.l.b16 %v318
  %v1504 = vunpack.c.l.b16 %v319
  %v1505 = vunpack.c.h.b16 %v319
  %v1506 = vunpack.c.l.b16 %v320
  %v1507 = vunpack.c.h.b16 %v320
  %v1508 = vunpack.c.l.b16 %v321
  %v1509 = vunpack.c.h.b16 %v321
  %v1510 = vunpack.c.l.b16 %v322
  %v1511 = vunpack.c.h.b16 %v322
  %v1512 = vunpack.c.l.b16 %v323
  %v1513 = vunpack.c.h.b16 %v323
  %v1514 = vunpack.c.l.b16 %v324
  %v1515 = vunpack.c.h.b16 %v324
  %v1516 = vunpack.c.l.b16 %v325
  %v1517 = vunpack.c.h.b16 %v325
  %v1518 = vunpack.c.l.b16 %v326
  %v1519 = vunpack.c.h.b16 %v326
  %v1520 = vunpack.c.l.b16 %v327
  %v1521 = vunpack.c.h.b16 %v327
  %v1522 = vunpack.c.l.b16 %v328
  %v1523 = vunpack.c.h.b16 %v328
  %v1524 = vunpack.c.l.b16 %v329
  %v1525 = vunpack.c.l.b16 %v330
  %v1526 = vunpack.c.h.b16 %v330
  %v1527 = vunpack.c.l.b16 %v331
  %v1528 = vunpack.c.h.b16 %v331
  %v1529 = vunpack.c.l.b16 %v332
  %v1530 = vunpack.c.h.b16 %v332
  %v1531 = vunpack.c.l.b16 %v333
  %v1532 = vunpack.c.h.b16 %v333
  %v1533 = vunpack.c.l.b16 %v334
  %v1534 = vunpack.c.h.b16 %v334
  %v1535 = vunpack.c.l.b16 %v335
  %v1536 = vunpack.c.h.b16 %v335
  %v1537 = vunpack.c.l.b16 %v336
  %v1538 = vunpack.c.h.b16 %v336
  %v1539 = vunpack.c.l.b16 %v337
  %v1540 = vunpack.c.h.b16 %v337
  %v1541 = vunpack.c.l.b16 %v338
  %v1542 = vunpack.c.h.b16 %v338
  %v1543 = vunpack.c.l.b16 %v339
  %v1544 = vunpack.c.h.b16 %v339
  %v1545 = vunpack.c.l.b16 %v340
  %v1546 = vunpack.c.l.b16 %v341
  %v1547 = vunpack.c.h.b16 %v341
  %v1548 = vunpack.c.l.b16 %v342
  %v1549 = vunpack.c.h.b16 %v342
  %v1550 = vunpack.c.l.b16 %v343
  %v1551 = vunpack.c.h.b16 %v343
  %v1552 = vunpack.c.l.b16 %v344
  %v1553 = vunpack.c.h.b16 %v344
  %v1554 = vunpack.c.l.b16 %v345
  %v1555 = vunpack.c.h.b16 %v345
  %v1556 = vunpack.c.l.b16 %v346
  %v1557 = vunpack.c.h.b16 %v346
  %v1558 = vunpack.c.l.b16 %v347
  %v1559 = vunpack.c.h.b16 %v347
  %v1560 = vunpack.c.l.b16 %v348
  %v1561 = vunpack.c.h.b16 %v348
  %v1562 = vunpack.c.l.b16 %v349
  %v1563 = vunpack.c.h.b16 %v349
  %v1564 = vunpack.c.l.b16 %v350
  %v1565 = vunpack.c.h.b16 %v350
  %v1566 = vunpack.c.l.b16 %v351
  %v1567 = vunpack.c.l.b16 %v352
  %v1568 = vunpack.c.h.b16 %v352
  %v1569 = vunpack.c.l.b16 %v353
  %v1570 = vunpack.c.h.b16 %v353
  %v1571 = vunpack.c.l.b16 %v354
  %v1572 = vunpack.c.h.b16 %v354
  %v1573 = vunpack.c.l.b16 %v355
  %v1574 = vunpack.c.h.b16 %v355
  %v1575 = vunpack.c.l.b16 %v356
  %v1576 = vunpack.c.h.b16 %v356
  %v1577 = vunpack.c.l.b16 %v357
  %v1578 = vunpack.c.h.b16 %v357
  %v1579 = vunpack.c.l.b16 %v358
  %v1580 = vunpack.c.h.b16 %v358
  %v1581 = vunpack.c.l.b16 %v359
  %v1582 = vunpack.c.h.b16 %v359
  %v1583 = vunpack.c.l.b16 %v360
  %v1584 = vunpack.c.h.b16 %v360
  %v1585 = vunpack.c.l.b16 %v361
  %v1586 = vunpack.c.h.b16 %v361
  %v1587 = vunpack.c.l.b16 %v362
  %v1588 = vunpack.c.l.b16 %v363
  %v1589 = vunpack.c.h.b16 %v363
  %v1590 = vunpack.c.l.b16 %v364
  %v1591 = vunpack.c.h.b16 %v364
  %v1592 = vunpack.c.l.b16 %v365
  %v1593 = vunpack.c.h.b16 %v365
  %v1594 = vunpack.c.l.b16 %v366
  %v1595 = vunpack.c.h.b16 %v366
  %v1596 = vunpack.c.l.b16 %v367
  %v1597 = vunpack.c.h.b16 %v367
  %v1598 = vunpack.c.l.b16 %v368
  %v1599 = vunpack.c.h.b16 %v368
  %v1600 = vunpack.c.l.b16 %v369
  %v1601 = vunpack.c.h.b16 %v369
  %v1602 = vunpack.c.l.b16 %v370
  %v1603 = vunpack.c.h.b16 %v370
  %v1604 = vunpack.c.l.b16 %v371
  %v1605 = vunpack.c.h.b16 %v371
  %v1606 = vunpack.c.l.b16 %v372
  %v1607 = vunpack.c.h.b16 %v372
  %v1608 = vunpack.c.l.b16 %v373
  %v1609 = vunpack.c.l.b16 %v374
  %v1610 = vunpack.c.h.b16 %v374
  %v1611 = vunpack.c.l.b16 %v375
  %v1612 = vunpack.c.h.b16 %v375
  %v1613 = vunpack.c.l.b16 %v376
  %v1614 = vunpack.c.h.b16 %v376
  %v1615 = vunpack.c.l.b16 %v377
  %v1616 = vunpack.c.h.b16 %v377
  %v1617 = vunpack.c.l.b16 %v378
  %v1618 = vunpack.c.h.b16 %v378
  %v1619 = vunpack.c.l.b16 %v379
  %v1620 = vunpack.c.h.b16 %v379
  %v1621 = vunpack.c.l.b16 %v380
  %v1622 = vunpack.c.h.b16 %v380
  %v1623 = vunpack.c.l.b16 %v381
  %v1624 = vunpack.c.h.b16 %v381
  %v1625 = vunpack.c.l.b16 %v382
  %v1626 = vunpack.c.h.b16 %v382
  %v1627 = vunpack.c.l.b16 %v383
  %v1628 = vunpack.c.h.b16 %v383
  %v1629 = vunpack.c.l.b16 %v384
  %v1630 = vunpack.c.l.b16 %v385
  %v1631 = vunpack.c.h.b16 %v385
  %v1632 = vunpack.c.l.b16 %v386
  %v1633 = vunpack.c.h.b16 %v386
  %v1634 = vunpack.c.l.b16 %v387
  %v1635 = vunpack.c.h.b16 %v387
  %v1636 = vunpack.c.l.b16 %v388
  %v1637 = vunpack.c.h.b16 %v388
  %v1638 = vunpack.c.l.b16 %v389
  %v1639 = vunpack.c.h.b16 %v389
  %v1640 = vunpack.c.l.b16 %v390
  %v1641 = vunpack.c.h.b16 %v390
  %v1642 = vunpack.c.l.b16 %v391
  %v1643 = vunpack.c.h.b16 %v391
  %v1644 = vunpack.c.l.b16 %v392
  %v1645 = vunpack.c.h.b16 %v392
  %v1646 = vunpack.c.l.b16 %v393
  %v1647 = vunpack.c.h.b16 %v393
  %v1648 = vunpack.c.l.b16 %v394
  %v1649 = vunpack.c.h.b16 %v394
  %v1650 = vunpack.c.l.b16 %v395
  %v1651 = vunpack.c.l.b16 %v396
  %v1652 = vunpack.c.h.b16 %v396
  %v1653 = vunpack.c.l.b16 %v397
  %v1654 = vunpack.c.h.b16 %v397
  %v1655 = vunpack.c.l.b16 %v398
  %v1656 = vunpack.c.h.b16 %v398
  %v1657 = vunpack.c.l.b16 %v399
  %v1658 = vunpack.c.h.b16 %v399
  %v1659 = vunpack.c.l.b16 %v400
  %v1660 = vunpack.c.h.b16 %v400
  %v1661 = vunpack.c.l.b16 %v401
  %v1662 = vunpack.c.h.b16 %v401
  %v1663 = vunpack.c.l.b16 %v402
  %v1664 = vunpack.c.h.b16 %v402
  %v1665 = vunpack.c.l.b16 %v403
  %v1666 = vunpack.c.h.b16 %v403
  %v1667 = vunpack.c.l.b16 %v404
  %v1668 = vunpack.c.h.b16 %v404
  %v1669 = vunpack.c.l.b16 %v405
  %v1670 = vunpack.c.h.b16 %v405
  %v1671 = vunpack.c.l.b16 %v406
  %v1672 = vunpack.c.l.b16 %v407
  %v1673 = vunpack.c.h.b16 %v407
  %v1674 = vunpack.c.l.b16 %v408
  %v1675 = vunpack.c.h.b16 %v408
  %v1676 = vunpack.c.l.b16 %v409
  %v1677 = vunpack.c.h.b16 %v409
  %v1678 = vunpack.c.l.b16 %v410
  %v1679 = vunpack.c.h.b16 %v410
  %v1680 = vunpack.c.l.b16 %v411
  %v1681 = vunpack.c.h.b16 %v411
  %v1682 = vunpack.c.l.b16 %v412
  %v1683 = vunpack.c.h.b16 %v412
  %v1684 = vunpack.c.l.b16 %v413
  %v1685 = vunpack.c.h.b16 %v413
  %v1686 = vunpack.c.l.b16 %v414
  %v1687 = vunpack.c.h.b16 %v414
  %v1688 = vunpack.c.l.b16 %v415
  %v1689 = vunpack.c.h.b16 %v415
  %v1690 = vunpack.c.l.b16 %v416
  %v1691 = vunpack.c.h.b16 %v416
  %v1692 = vunpack.c.l.b16 %v417
  %v1693 = vunpack.c.l.b16 %v418
  %v1694 = vunpack.c.h.b16 %v418
  %v1695 = vunpack.c.l.b16 %v419
  %v1696 = vunpack.c.h.b16 %v419
  %v1697 = vunpack.c.l.b16 %v420
  %v1698 = vunpack.c.h.b16 %v420
  %v1699 = vunpack.c.l.b16 %v421
  %v1700 = vunpack.c.h.b16 %v421
  %v1701 = vunpack.c.l.b16 %v422
  %v1702 = vunpack.c.h.b16 %v422
  %v1703 = vunpack.c.l.b16 %v423
  %v1704 = vunpack.c.h.b16 %v423
  %v1705 = vunpack.c.l.b16 %v424
  %v1706 = vunpack.c.h.b16 %v424
  %v1707 = vunpack.c.l.b16 %v425
  %v1708 = vunpack.c.h.b16 %v425
  %v1709 = vunpack.c.l.b16 %v426
  %v1710 = vunpack.c.h.b16 %v426
  %v1711 = vunpack.c.l.b16 %v427
  %v1712 = vunpack.c.h.b16 %v427
  %v1713 = vunpack.c.l.b16 %v428
  %v1714 = vunpack.c.l.b16 %v429
  %v1715 = vunpack.c.h.b16 %v429
  %v1716 = vunpack.c.l.b16 %v430
  %v1717 = vunpack.c.h.b16 %v430
  %v1718 = vunpack.c.l.b16 %v431
  %v1719 = vunpack.c.h.b16 %v431
  %v1720 = vunpack.c.l.b16 %v432
  %v1721 = vunpack.c.h.b16 %v432
  %v1722 = vunpack.c.l.b16 %v433
  %v1723 = vunpack.c.h.b16 %v433
  %v1724 = vunpack.c.l.b16 %v434
  %v1725 = vunpack.c.h.b16 %v434
  %v1726 = vunpack.c.l.b16 %v435
  %v1727 = vunpack.c.h.b16 %v435
  %v1728 = vunpack.c.l.b16 %v436
  %v1729 = vunpack.c.h.b16 %v436
  %v1730 = vunpack.c.l.b16 %v437
  %v1731 = vunpack.c.h.b16 %v437
  %v1732 = vunpack.c.l.b16 %v438
  %v1733 = vunpack.c.h.b16 %v438
  %v1734 = vunpack.c.l.b16 %v439
  %v1735 = vpack.c.b16 %v979, %v958
  %v1736 = vpack.c.b16 %v980, %v959
  %v1737 = vpack.c.b16 %v981, %v960
  %v1738 = vpack.c.b16 %v982, %v961
  %v1739 = vpack.c.b16 %v983, %v962
  %v1740 = vpack.c.b16 %v984, %v963
  %v1741 = vpack.c.b16 %v985, %v964
  %v1742 = vpack.c.b16 %v986, %v965
  %v1743 = vpack.c.b16 %v987, %v966
  %v1744 = vpack.c.b16 %v988, %v967
  %v1745 = vpack.c.b16 %v989, %v968
  %v1746 = vpack.c.b16 %v990, %v969
  %v1747 = vpack.c.b16 %v991, %v970
  %v1748 = vpack.c.b16 %v992, %v971
  %v1749 = vpack.c.b16 %v993, %v972
  %v1750 = vpack.c.b16 %v994, %v973
  %v1751 = vpack.c.b16 %v995, %v974
  %v1752 = vpack.c.b16 %v996, %v975
  %v1753 = vpack.c.b16 %v997, %v976
  %v1754 = vpack.c.b16 %v998, %v977
  %v1755 = vpack.c.b16 %v999, %v978
  %v1756 = vpack.c.b16 %v1021, %v1000
  %v1757 = vpack.c.b16 %v1022, %v1001
  %v1758 = vpack.c.b16 %v1023, %v1002
  %v1759 = vpack.c.b16 %v1024, %v1003
  %v1760 = vpack.c.b16 %v1025, %v1004
  %v1761 = vpack.c.b16 %v1026, %v1005
  %v1762 = vpack.c.b16 %v1027, %v1006
  %v1763 = vpack.c.b16 %v1028, %v1007
  %v1764 = vpack.c.b16 %v1029, %v1008
  %v1765 = vpack.c.b16 %v1030, %v1009
  %v1766 = vpack.c.b16 %v1031, %v1010
  %v1767 = vpack.c.b16 %v1032, %v1011
  %v1768 = vpack.c.b16 %v1033, %v1012
  %v1769 = vpack.c.b16 %v1034, %v1013
  %v1770 = vpack.c.b16 %v1035, %v1014
  %v1771 = vpack.c.b16 %v1036, %v1015
  %v1772 = vpack.c.b16 %v1037, %v1016
  %v1773 = vpack.c.b16 %v1038, %v1017
  %v1774 = vpack.c.b16 %v1039, %v1018
  %v1775 = vpack.c.b16 %v1040, %v1019
  %v1776 = vpack.c.b16 %v1041, %v1020
  %v1777 = vpack.c.b16 %v1063, %v1042
  %v1778 = vpack.c.b16 %v1064, %v1043
  %v1779 = vpack.c.b16 %v1065, %v1044
  %v1780 = vpack.c.b16 %v1066, %v1045
  %v1781 = vpack.c.b16 %v1067, %v1046
  %v1782 = vpack.c.b16 %v1068, %v1047
  %v1783 = vpack.c.b16 %v1069, %v1048
  %v1784 = vpack.c.b16 %v1070, %v1049
  %v1785 = vpack.c.b16 %v1071, %v1050
  %v1786 = vpack.c.b16 %v1072, %v1051
  %v1787 = vpack.c.b16 %v1073, %v1052
  %v1788 = vpack.c.b16 %v1074, %v1053
  %v1789 = vpack.c.b16 %v1075, %v1054
  %v1790 = vpack.c.b16 %v1076, %v1055
  %v1791 = vpack.c.b16 %v1077, %v1056
  %v1792 = vpack.c.b16 %v1078, %v1057
  %v1793 = vpack.c.b16 %v1079, %v1058
  %v1794 = vpack.c.b16 %v1080, %v1059
  %v1795 = vpack.c.b16 %v1081, %v1060
  %v1796 = vpack.c.b16 %v1082, %v1061
  %v1797 = vpack.c.b16 %v1083, %v1062
  %v1798 = vpack.c.b16 %v1105, %v1084
  %v1799 = vpack.c.b16 %v1106, %v1085
  %v1800 = vpack.c.b16 %v1107, %v1086
  %v1801 = vpack.c.b16 %v1108, %v1087
  %v1802 = vpack.c.b16 %v1109, %v1088
  %v1803 = vpack.c.b16 %v1110, %v1089
  %v1804 = vpack.c.b16 %v1111, %v1090
  %v1805 = vpack.c.b16 %v1112, %v1091
  %v1806 = vpack.c.b16 %v1113, %v1092
  %v1807 = vpack.c.b16 %v1114, %v1093
  %v1808 = vpack.c.b16 %v1115, %v1094
  %v1809 = vpack.c.b16 %v1116, %v1095
  %v1810 = vpack.c.b16 %v1117, %v1096
  %v1811 = vpack.c.b16 %v1118, %v1097
  %v1812 = vpack.c.b16 %v1119, %v1098
  %v1813 = vpack.c.b16 %v1120, %v1099
  %v1814 = vpack.c.b16 %v1121, %v1100
  %v1815 = vpack.c.b16 %v1122, %v1101
  %v1816 = vpack.c.b16 %v1123, %v1102
  %v1817 = vpack.c.b16 %v1124, %v1103
  %v1818 = vpack.c.b16 %v1125, %v1104
  %v1819 = vpack.c.b16 %v1147, %v1126
  %v1820 = vpack.c.b16 %v1148, %v1127
  %v1821 = vpack.c.b16 %v1149, %v1128
  %v1822 = vpack.c.b16 %v1150, %v1129
  %v1823 = vpack.c.b16 %v1151, %v1130
  %v1824 = vpack.c.b16 %v1152, %v1131
  %v1825 = vpack.c.b16 %v1153, %v1132
  %v1826 = vpack.c.b16 %v1154, %v1133
  %v1827 = vpack.c.b16 %v1155, %v1134
  %v1828 = vpack.c.b16 %v1156, %v1135
  %v1829 = vpack.c.b16 %v1157, %v1136
  %v1830 = vpack.c.b16 %v1158, %v1137
  %v1831 = vpack.c.b16 %v1159, %v1138
  %v1832 = vpack.c.b16 %v1160, %v1139
  %v1833 = vpack.c.b16 %v1161, %v1140
  %v1834 = vpack.c.b16 %v1162, %v1141
  %v1835 = vpack.c.b16 %v1163, %v1142
  %v1836 = vpack.c.b16 %v1164, %v1143
  %v1837 = vpack.c.b16 %v1165, %v1144
  %v1838 = vpack.c.b16 %v1166, %v1145
  %v1839 = vpack.c.b16 %v1167, %v1146
  %v1840 = vpack.c.b16 %v1189, %v1168
  %v1841 = vpack.c.b16 %v1190, %v1169
  %v1842 = vpack.c.b16 %v1191, %v1170
  %v1843 = vpack.c.b16 %v1192, %v1171
  %v1844 = vpack.c.b16 %v1193, %v1172
  %v1845 = vpack.c.b16 %v1194, %v1173
  %v1846 = vpack.c.b16 %v1195, %v1174
  %v1847 = vpack.c.b16 %v1196, %v1175
  %v1848 = vpack.c.b16 %v1197, %v1176
  %v1849 = vpack.c.b16 %v1198, %v1177
  %v1850 = vpack.c.b16 %v1199, %v1178
  %v1851 = vpack.c.b16 %v1200, %v1179
  %v1852 = vpack.c.b16 %v1201, %v1180
  %v1853 = vpack.c.b16 %v1202, %v1181
  %v1854 = vpack.c.b16 %v1203, %v1182
  %v1855 = vpack.c.b16 %v1204, %v1183
  %v1856 = vpack.c.b16 %v1205, %v1184
  %v1857 = vpack.c.b16 %v1206, %v1185
  %v1858 = vpack.c.b16 %v1207, %v1186
  %v1859 = vpack.c.b16 %v1208, %v1187
  %v1860 = vpack.c.b16 %v1209, %v1188
  %v1861 = vpack.c.b16 %v1231, %v1210
  %v1862 = vpack.c.b16 %v1232, %v1211
  %v1863 = vpack.c.b16 %v1233, %v1212
  %v1864 = vpack.c.b16 %v1234, %v1213
  %v1865 = vpack.c.b16 %v1235, %v1214
  %v1866 = vpack.c.b16 %v1236, %v1215
  %v1867 = vpack.c.b16 %v1237, %v1216
  %v1868 = vpack.c.b16 %v1238, %v1217
  %v1869 = vpack.c.b16 %v1239, %v1218
  %v1870 = vpack.c.b16 %v1240, %v1219
  %v1871 = vpack.c.b16 %v1241, %v1220
  %v1872 = vpack.c.b16 %v1242, %v1221
  %v1873 = vpack.c.b16 %v1243, %v1222
  %v1874 = vpack.c.b16 %v1244, %v1223
  %v1875 = vpack.c.b16 %v1245, %v1224
  %v1876 = vpack.c.b16 %v1246, %v1225
  %v1877 = vpack.c.b16 %v1247, %v1226
  %v1878 = vpack.c.b16 %v1248, %v1227
  %v1879 = vpack.c.b16 %v1249, %v1228
  %v1880 = vpack.c.b16 %v1250, %v1229
  %v1881 = vpack.c.b16 %v1251, %v1230
  %v1882 = vpack.c.b16 %v1273, %v1252
  %v1883 = vpack.c.b16 %v1274, %v1253
  %v1884 = vpack.c.b16 %v1275, %v1254
  %v1885 = vpack.c.b16 %v1276, %v1255
  %v1886 = vpack.c.b16 %v1277, %v1256
  %v1887 = vpack.c.b16 %v1278, %v1257
  %v1888 = vpack.c.b16 %v1279, %v1258
  %v1889 = vpack.c.b16 %v1280, %v1259
  %v1890 = vpack.c.b16 %v1281, %v1260
  %v1891 = vpack.c.b16 %v1282, %v1261
  %v1892 = vpack.c.b16 %v1283, %v1262
  %v1893 = vpack.c.b16 %v1284, %v1263
  %v1894 = vpack.c.b16 %v1285, %v1264
  %v1895 = vpack.c.b16 %v1286, %v1265
  %v1896 = vpack.c.b16 %v1287, %v1266
  %v1897 = vpack.c.b16 %v1288, %v1267
  %v1898 = vpack.c.b16 %v1289, %v1268
  %v1899 = vpack.c.b16 %v1290, %v1269
  %v1900 = vpack.c.b16 %v1291, %v1270
  %v1901 = vpack.c.b16 %v1292, %v1271
  %v1902 = vpack.c.b16 %v1293, %v1272
  %v1903 = vpack.c.b16 %v1315, %v1294
  %v1904 = vpack.c.b16 %v1316, %v1295
  %v1905 = vpack.c.b16 %v1317, %v1296
  %v1906 = vpack.c.b16 %v1318, %v1297
  %v1907 = vpack.c.b16 %v1319, %v1298
  %v1908 = vpack.c.b16 %v1320, %v1299
  %v1909 = vpack.c.b16 %v1321, %v1300
  %v1910 = vpack.c.b16 %v1322, %v1301
  %v1911 = vpack.c.b16 %v1323, %v1302
  %v1912 = vpack.c.b16 %v1324, %v1303
  %v1913 = vpack.c.b16 %v1325, %v1304
  %v1914 = vpack.c.b16 %v1326, %v1305
  %v1915 = vpack.c.b16 %v1327, %v1306
  %v1916 = vpack.c.b16 %v1328, %v1307
  %v1917 = vpack.c.b16 %v1329, %v1308
  %v1918 = vpack.c.b16 %v1330, %v1309
  %v1919 = vpack.c.b16 %v1331, %v1310
  %v1920 = vpack.c.b16 %v1332, %v1311
  %v1921 = vpack.c.b16 %v1333, %v1312
  %v1922 = vpack.c.b16 %v1334, %v1313
  %v1923 = vpack.c.b16 %v1335, %v1314
  %v1924 = vpack.c.b16 %v1357, %v1336
  %v1925 = vpack.c.b16 %v1358, %v1337
  %v1926 = vpack.c.b16 %v1359, %v1338
  %v1927 = vpack.c.b16 %v1360, %v1339
  %v1928 = vpack.c.b16 %v1361, %v1340
  %v1929 = vpack.c.b16 %v1362, %v1341
  %v1930 = vpack.c.b16 %v1363, %v1342
  %v1931 = vpack.c.b16 %v1364, %v1343
  %v1932 = vpack.c.b16 %v1365, %v1344
  %v1933 = vpack.c.b16 %v1366, %v1345
  %v1934 = vpack.c.b16 %v1367, %v1346
  %v1935 = vpack.c.b16 %v1368, %v1347
  %v1936 = vpack.c.b16 %v1369, %v1348
  %v1937 = vpack.c.b16 %v1370, %v1349
  %v1938 = vpack.c.b16 %v1371, %v1350
  %v1939 = vpack.c.b16 %v1372, %v1351
  %v1940 = vpack.c.b16 %v1373, %v1352
  %v1941 = vpack.c.b16 %v1374, %v1353
  %v1942 = vpack.c.b16 %v1375, %v1354
  %v1943 = vpack.c.b16 %v1376, %v1355
  %v1944 = vpack.c.b16 %v1377, %v1356
  %v1945 = vpack.c.b16 %v1399, %v1378
  %v1946 = vpack.c.b16 %v1400, %v1379
  %v1947 = vpack.c.b16 %v1401, %v1380
  %v1948 = vpack.c.b16 %v1402, %v1381
  %v1949 = vpack.c.b16 %v1403, %v1382
  %v1950 = vpack.c.b16 %v1404, %v1383
  %v1951 = vpack.c.b16 %v1405, %v1384
  %v1952 = vpack.c.b16 %v1406, %v1385
  %v1953 = vpack.c.b16 %v1407, %v1386
  %v1954 = vpack.c.b16 %v1408, %v1387
  %v1955 = vpack.c.b16 %v1409, %v1388
  %v1956 = vpack.c.b16 %v1410, %v1389
  %v1957 = vpack.c.b16 %v1411, %v1390
  %v1958 = vpack.c.b16 %v1412, %v1391
  %v1959 = vpack.c.b16 %v1413, %v1392
  %v1960 = vpack.c.b16 %v1414, %v1393
  %v1961 = vpack.c.b16 %v1415, %v1394
  %v1962 = vpack.c.b16 %v1416, %v1395
  %v1963 = vpack.c.b16 %v1417, %v1396
  %v1964 = vpack.c.b16 %v1418, %v1397
  %v1965 = vpack.c.b16 %v1419, %v1398
  %v1966 = vpack.c.b16 %v1441, %v1420
  %v1967 = vpack.c.b16 %v1442, %v1421
  %v1968 = vpack.c.b16 %v1443, %v1422
  %v1969 = vpack.c.b16 %v1444, %v1423
  %v1970 = vpack.c.b16 %v1445, %v1424
  %v1971 = vpack.c.b16 %v1446, %v1425
  %v1972 = vpack.c.b16 %v1447, %v1426
  %v1973 = vpack.c.b16 %v1448, %v1427
  %v1974 = vpack.c.b16 %v1449, %v1428
  %v1975 = vpack.c.b16 %v1450, %v1429
  %v1976 = vpack.c.b16 %v1451, %v1430
  %v1977 = vpack.c.b16 %v1452, %v1431
  %v1978 = vpack.c.b16 %v1453, %v1432
  %v1979 = vpack.c.b16 %v1454, %v1433
  %v1980 = vpack.c.b16 %v1455, %v1434
  %v1981 = vpack.c.b16 %v1456, %v1435
  %v1982 = vpack.c.b16 %v1457, %v1436
  %v1983 = vpack.c.b16 %v1458, %v1437
  %v1984 = vpack.c.b16 %v1459, %v1438
  %v1985 = vpack.c.b16 %v1460, %v1439
  %v1986 = vpack.c.b16 %v1461, %v1440
  %v1987 = vpack.c.b16 %v1483, %v1462
  %v1988 = vpack.c.b16 %v1484, %v1463
  %v1989 = vpack.c.b16 %v1485, %v1464
  %v1990 = vpack.c.b16 %v1486, %v1465
  %v1991 = vpack.c.b16 %v1487, %v1466
  %v1992 = vpack.c.b16 %v1488, %v1467
  %v1993 = vpack.c.b16 %v1489, %v1468
  %v1994 = vpack.c.b16 %v1490, %v1469
  %v1995 = vpack.c.b16 %v1491, %v1470
  %v1996 = vpack.c.b16 %v1492, %v1471
  %v1997 = vpack.c.b16 %v1493, %v1472
  %v1998 = vpack.c.b16 %v1494, %v1473
  %v1999 = vpack.c.b16 %v1495, %v1474
  %v2000 = vpack.c.b16 %v1496, %v1475
  %v2001 = vpack.c.b16 %v1497, %v1476
  %v2002 = vpack.c.b16 %v1498, %v1477
  %v2003 = vpack.c.b16 %v1499, %v1478
  %v2004 = vpack.c.b16 %v1500, %v1479
  %v2005 = vpack.c.b16 %v1501, %v1480
  %v2006 = vpack.c.b16 %v1502, %v1481
  %v2007 = vpack.c.b16 %v1503, %v1482
  %v2008 = vpack.c.b16 %v1525, %v1504
  %v2009 = vpack.c.b16 %v1526, %v1505
  %v2010 = vpack.c.b16 %v1527, %v1506
  %v2011 = vpack.c.b16 %v1528, %v1507
  %v2012 = vpack.c.b16 %v1529, %v1508
  %v2013 = vpack.c.b16 %v1530, %v1509
  %v2014 = vpack.c.b16 %v1531, %v1510
  %v2015 = vpack.c.b16 %v1532, %v1511
  %v2016 = vpack.c.b16 %v1533, %v1512
  %v2017 = vpack.c.b16 %v1534, %v1513
  %v2018 = vpack.c.b16 %v1535, %v1514
  %v2019 = vpack.c.b16 %v1536, %v1515
  %v2020 = vpack.c.b16 %v1537, %v1516
  %v2021 = vpack.c.b16 %v1538, %v1517
  %v2022 = vpack.c.b16 %v1539, %v1518
  %v2023 = vpack.c.b16 %v1540, %v1519
  %v2024 = vpack.c.b16 %v1541, %v1520
  %v2025 = vpack.c.b16 %v1542, %v1521
  %v2026 = vpack.c.b16 %v1543, %v1522
  %v2027 = vpack.c.b16 %v1544, %v1523
  %v2028 = vpack.c.b16 %v1545, %v1524
  %v2029 = vpack.c.b16 %v1567, %v1546
  %v2030 = vpack.c.b16 %v1568, %v1547
  %v2031 = vpack.c.b16 %v1569, %v1548
  %v2032 = vpack.c.b16 %v1570, %v1549
  %v2033 = vpack.c.b16 %v1571, %v1550
  %v2034 = vpack.c.b16 %v1572, %v1551
  %v2035 = vpack.c.b16 %v1573, %v1552
  %v2036 = vpack.c.b16 %v1574, %v1553
  %v2037 = vpack.c.b16 %v1575, %v1554
  %v2038 = vpack.c.b16 %v1576, %v1555
  %v2039 = vpack.c.b16 %v1577, %v1556
  %v2040 = vpack.c.b16 %v1578, %v1557
  %v2041 = vpack.c.b16 %v1579, %v1558
  %v2042 = vpack.c.b16 %v1580, %v1559
  %v2043 = vpack.c.b16 %v1581, %v1560
  %v2044 = vpack.c.b16 %v1582, %v1561
  %v2045 = vpack.c.b16 %v1583, %v1562
  %v2046 = vpack.c.b16 %v1584, %v1563
  %v2047 = vpack.c.b16 %v1585, %v1564
  %v2048 = vpack.c.b16 %v1586, %v1565
  %v2049 = vpack.c.b16 %v1587, %v1566
  %v2050 = vpack.c.b16 %v1609, %v1588
  %v2051 = vpack.c.b16 %v1610, %v1589
  %v2052 = vpack.c.b16 %v1611, %v1590
  %v2053 = vpack.c.b16 %v1612, %v1591
  %v2054 = vpack.c.b16 %v1613, %v1592
  %v2055 = vpack.c.b16 %v1614, %v1593
  %v2056 = vpack.c.b16 %v1615, %v1594
  %v2057 = vpack.c.b16 %v1616, %v1595
  %v2058 = vpack.c.b16 %v1617, %v1596
  %v2059 = vpack.c.b16 %v1618, %v1597
  %v2060 = vpack.c.b16 %v1619, %v1598
  %v2061 = vpack.c.b16 %v1620, %v1599
  %v2062 = vpack.c.b16 %v1621, %v1600
  %v2063 = vpack.c.b16 %v1622, %v1601
  %v2064 = vpack.c.b16 %v1623, %v1602
  %v2065 = vpack.c.b16 %v1624, %v1603
  %v2066 = vpack.c.b16 %v1625, %v1604
  %v2067 = vpack.c.b16 %v1626, %v1605
  %v2068 = vpack.c.b16 %v1627, %v1606
  %v2069 = vpack.c.b16 %v1628, %v1607
  %v2070 = vpack.c.b16 %v1629, %v1608
  %v2071 = vpack.c.b16 %v1651, %v1630
  %v2072 = vpack.c.b16 %v1652, %v1631
  %v2073 = vpack.c.b16 %v1653, %v1632
  %v2074 = vpack.c.b16 %v1654, %v1633
  %v2075 = vpack.c.b16 %v1655, %v1634
  %v2076 = vpack.c.b16 %v1656, %v1635
  %v2077 = vpack.c.b16 %v1657, %v1636
  %v2078 = vpack.c.b16 %v1658, %v1637
  %v2079 = vpack.c.b16 %v1659, %v1638
  %v2080 = vpack.c.b16 %v1660, %v1639
  %v2081 = vpack.c.b16 %v1661, %v1640
  %v2082 = vpack.c.b16 %v1662, %v1641
  %v2083 = vpack.c.b16 %v1663, %v1642
  %v2084 = vpack.c.b16 %v1664, %v1643
  %v2085 = vpack.c.b16 %v1665, %v1644
  %v2086 = vpack.c.b16 %v1666, %v1645
  %v2087 = vpack.c.b16 %v1667, %v1646
  %v2088 = vpack.c.b16 %v1668, %v1647
  %v2089 = vpack.c.b16 %v1669, %v1648
  %v2090 = vpack.c.b16 %v1670, %v1649
  %v2091 = vpack.c.b16 %v1671, %v1650
  %v2092 = vpack.c.b16 %v1693, %v1672
  %v2093 = vpack.c.b16 %v1694, %v1673
  %v2094 = vpack.c.b16 %v1695, %v1674
  %v2095 = vpack.c.b16 %v1696, %v1675
  %v2096 = vpack.c.b16 %v1697, %v1676
  %v2097 = vpack.c.b16 %v1698, %v1677
  %v2098 = vpack.c.b16 %v1699, %v1678
  %v2099 = vpack.c.b16 %v1700, %v1679
  %v2100 = vpack.c.b16 %v1701, %v1680
  %v2101 = vpack.c.b16 %v1702, %v1681
  %v2102 = vpack.c.b16 %v1703, %v1682
  %v2103 = vpack.c.b16 %v1704, %v1683
  %v2104 = vpack.c.b16 %v1705, %v1684
  %v2105 = vpack.c.b16 %v1706, %v1685
  %v2106 = vpack.c.b16 %v1707, %v1686
  %v2107 = vpack.c.b16 %v1708, %v1687
  %v2108 = vpack.c.b16 %v1709, %v1688
  %v2109 = vpack.c.b16 %v1710, %v1689
  %v2110 = vpack.c.b16 %v1711, %v1690
  %v2111 = vpack.c.b16 %v1712, %v1691
  %v2112 = vpack.c.b16 %v1713, %v1692
  %v2113 = vpack.c.b16 %v1714, %v1714
  %v2114 = vpack.c.b16 %v1715, %v1715
  %v2115 = vpack.c.b16 %v1716, %v1716
  %v2116 = vpack.c.b16 %v1717, %v1717
  %v2117 = vpack.c.b16 %v1718, %v1718
  %v2118 = vpack.c.b16 %v1719, %v1719
  %v2119 = vpack.c.b16 %v1720, %v1720
  %v2120 = vpack.c.b16 %v1721, %v1721
  %v2121 = vpack.c.b16 %v1722, %v1722
  %v2122 = vpack.c.b16 %v1723, %v1723
  %v2123 = vpack.c.b16 %v1724, %v1724
  %v2124 = vpack.c.b16 %v1725, %v1725
  %v2125 = vpack.c.b16 %v1726, %v1726
  %v2126 = vpack.c.b16 %v1727, %v1727
  %v2127 = vpack.c.b16 %v1728, %v1728
  %v2128 = vpack.c.b16 %v1729, %v1729
  %v2129 = vpack.c.b16 %v1730, %v1730
  %v2130 = vpack.c.b16 %v1731, %v1731
  %v2131 = vpack.c.b16 %v1732, %v1732
  %v2132 = vpack.c.b16 %v1733, %v1733
  %v2133 = vpack.c.b16 %v1734, %v1734
  %vm2512 = vcmask 269312
  %v2514 = vsel %vm2512, %v32, 0
  %vm2516 = vcmask 1040384
  %v2517 = vsel 0, 4294967295, 65535
  %v2518 = vsel %vm2516, %v2517, 0
  %v2520 = vand.u32 %v2113, %v2518
  %v2523 = vand.u32 %v2114, %v2518
  %v2526 = vand.u32 %v2115, %v2518
  %v2529 = vand.u32 %v2116, %v2518
  %v2532 = vand.u32 %v2117, %v2518
  %v2535 = vand.u32 %v2118, %v2518
  %v2538 = vand.u32 %v2119, %v2518
  %v2541 = vand.u32 %v2120, %v2518
  %v2544 = vand.u32 %v2121, %v2518
  %v2547 = vand.u32 %v2122, %v2518
  %v2550 = vand.u32 %v2123, %v2518
  %v2553 = vand.u32 %v2124, %v2518
  %v2556 = vand.u32 %v2125, %v2518
  %v2559 = vand.u32 %v2126, %v2518
  %v2562 = vand.u32 %v2127, %v2518
  %v2565 = vand.u32 %v2128, %v2518
  %v2568 = vand.u32 %v2129, %v2518
  %v2571 = vand.u32 %v2130, %v2518
  %v2574 = vand.u32 %v2131, %v2518
  %v2577 = vand.u32 %v2132, %v2518
  %v2580 = vand.u32 %v2133, %v2518
  %2582 = vmatprep.subr.bf16.mxu0 %v1736
  %2583 = vmatpush1.bf16.msra.mxu0 %v1735
  %2584 = vmatprep.subr.bf16.mxu0 %v1757
  %2585 = vmatpush1.bf16.msra.mxu0 %v1756
  %2586 = vmatprep.subr.bf16.mxu0 %v1778
  %2587 = vmatpush1.bf16.msra.mxu0 %v1777
  %2588 = vmatprep.subr.bf16.mxu0 %v1799
  %2589 = vmatpush1.bf16.msra.mxu0 %v1798
  %2590 = vmatprep.subr.bf16.mxu0 %v1820
  %2591 = vmatpush1.bf16.msra.mxu0 %v1819
  %2592 = vmatprep.subr.bf16.mxu0 %v1841
  %2593 = vmatpush1.bf16.msra.mxu0 %v1840
  %2594 = vmatprep.subr.bf16.mxu0 %v1862
  %2595 = vmatpush1.bf16.msra.mxu0 %v1861
  %2596 = vmatprep.subr.bf16.mxu0 %v1883
  %2597 = vmatpush1.bf16.msra.mxu0 %v1882
  %2598 = vmatprep.subr.bf16.mxu0 %v1904
  %2599 = vmatpush1.bf16.msra.mxu0 %v1903
  %2600 = vmatprep.subr.bf16.mxu0 %v1925
  %2601 = vmatpush1.bf16.msra.mxu0 %v1924
  %2602 = vmatprep.subr.bf16.mxu0 %v1946
  %2603 = vmatpush1.bf16.msra.mxu0 %v1945
  %2604 = vmatprep.subr.bf16.mxu0 %v1967
  %2605 = vmatpush1.bf16.msra.mxu0 %v1966
  %2606 = vmatprep.subr.bf16.mxu0 %v1988
  %2607 = vmatpush1.bf16.msra.mxu0 %v1987
  %2608 = vmatprep.subr.bf16.mxu0 %v2009
  %2609 = vmatpush1.bf16.msra.mxu0 %v2008
  %2610 = vmatprep.subr.bf16.mxu0 %v2030
  %2611 = vmatpush1.bf16.msra.mxu0 %v2029
  %2612 = vmatprep.subr.bf16.mxu0 %v2051
  %2613 = vmatpush1.bf16.msra.mxu0 %v2050
  %2614 = vmatprep.mubr.bf16.mxu0 %v31
  %2615 = vmatmul.mubr.bf16.gmra.mrb[0].mxu0 %v30
  %v2616 = vpop.f32.mrb[0].mxu0
  %v2617 = vadd.f32 %v449, %v2616
  %v2618 = vpop.f32.mrb[0].mxu0
  %v2619 = vadd.f32 %v453, %v2618
  %v2620 = vpop.f32.mrb[0].mxu0
  %v2621 = vpop.f32.mrb[0].mxu0
  %2622 = vdwg.mxu0
  %2623 = vmatprep.subr.bf16.mxu0 %v2072
  %2624 = vmatpush1.bf16.msra.mxu0 %v2071
  %2625 = vmatprep.subr.bf16.mxu0 %v2093
  %2626 = vmatpush1.bf16.msra.mxu0 %v2092
  %2627 = vmatprep.subr.bf16.mxu0 %v2523
  %2628 = vmatpush1.bf16.msra.mxu0 %v2520
  %2629 = vmatprep.subr.bf16.mxu0 0
  %2630 = vmatpush1.bf16.msra.mxu0 0
  %2631 = vmatprep.subr.bf16.mxu0 0
  %2632 = vmatpush1.bf16.msra.mxu0 0
  %2633 = vmatprep.subr.bf16.mxu0 0
  %2634 = vmatpush1.bf16.msra.mxu0 0
  %2635 = vmatprep.subr.bf16.mxu0 0
  %2636 = vmatpush1.bf16.msra.mxu0 0
  %2637 = vmatprep.subr.bf16.mxu0 0
  %2638 = vmatpush1.bf16.msra.mxu0 0
  %2639 = vmatprep.subr.bf16.mxu0 0
  %2640 = vmatpush1.bf16.msra.mxu0 0
  %2641 = vmatprep.subr.bf16.mxu0 0
  %2642 = vmatpush1.bf16.msra.mxu0 0
  %2643 = vmatprep.subr.bf16.mxu0 0
  %2644 = vmatpush1.bf16.msra.mxu0 0
  %2645 = vmatprep.subr.bf16.mxu0 0
  %2646 = vmatpush1.bf16.msra.mxu0 0
  %2647 = vmatprep.subr.bf16.mxu0 0
  %2648 = vmatpush1.bf16.msra.mxu0 0
  %2649 = vmatprep.subr.bf16.mxu0 0
  %2650 = vmatpush1.bf16.msra.mxu0 0
  %2651 = vmatprep.subr.bf16.mxu0 0
  %2652 = vmatpush1.bf16.msra.mxu0 0
  %2653 = vmatprep.subr.bf16.mxu0 0
  %2654 = vmatpush1.bf16.msra.mxu0 0
  %2655 = vmatprep.mubr.bf16.mxu0 0
  %2656 = vmatmul.mubr.bf16.gmra.mrb[0].mxu0 %v2514
  %v2657 = vpop.f32.mrb[0].mxu0
  %v2658 = vadd.f32 %v2617, %v2657
  %v2659 = vpop.f32.mrb[0].mxu0
  %v2660 = vadd.f32 %v2619, %v2659
  %v2661 = vpop.f32.mrb[0].mxu0
  %v2662 = vpop.f32.mrb[0].mxu0
  %2663 = vdwg.mxu0
  %2664 = vmatprep.subr.bf16.mxu0 %v1738
  %2665 = vmatpush1.bf16.msra.mxu0 %v1737
  %2666 = vmatprep.subr.bf16.mxu0 %v1759
  %2667 = vmatpush1.bf16.msra.mxu0 %v1758
  %2668 = vmatprep.subr.bf16.mxu0 %v1780
  %2669 = vmatpush1.bf16.msra.mxu0 %v1779
  %2670 = vmatprep.subr.bf16.mxu0 %v1801
  %2671 = vmatpush1.bf16.msra.mxu0 %v1800
  %2672 = vmatprep.subr.bf16.mxu0 %v1822
  %2673 = vmatpush1.bf16.msra.mxu0 %v1821
  %2674 = vmatprep.subr.bf16.mxu0 %v1843
  %2675 = vmatpush1.bf16.msra.mxu0 %v1842
  %2676 = vmatprep.subr.bf16.mxu0 %v1864
  %2677 = vmatpush1.bf16.msra.mxu0 %v1863
  %2678 = vmatprep.subr.bf16.mxu0 %v1885
  %2679 = vmatpush1.bf16.msra.mxu0 %v1884
  %2680 = vmatprep.subr.bf16.mxu0 %v1906
  %2681 = vmatpush1.bf16.msra.mxu0 %v1905
  %2682 = vmatprep.subr.bf16.mxu0 %v1927
  %2683 = vmatpush1.bf16.msra.mxu0 %v1926
  %2684 = vmatprep.subr.bf16.mxu0 %v1948
  %2685 = vmatpush1.bf16.msra.mxu0 %v1947
  %2686 = vmatprep.subr.bf16.mxu0 %v1969
  %2687 = vmatpush1.bf16.msra.mxu0 %v1968
  %2688 = vmatprep.subr.bf16.mxu0 %v1990
  %2689 = vmatpush1.bf16.msra.mxu0 %v1989
  %2690 = vmatprep.subr.bf16.mxu0 %v2011
  %2691 = vmatpush1.bf16.msra.mxu0 %v2010
  %2692 = vmatprep.subr.bf16.mxu0 %v2032
  %2693 = vmatpush1.bf16.msra.mxu0 %v2031
  %2694 = vmatprep.subr.bf16.mxu0 %v2053
  %2695 = vmatpush1.bf16.msra.mxu0 %v2052
  %2696 = vmatprep.mubr.bf16.mxu0 %v31
  %2697 = vmatmul.mubr.bf16.gmra.mrb[0].mxu0 %v30
  %v2698 = vpop.f32.mrb[0].mxu0
  %v2699 = vadd.f32 %v457, %v2698
  %v2700 = vpop.f32.mrb[0].mxu0
  %v2701 = vadd.f32 %v461, %v2700
  %v2702 = vpop.f32.mrb[0].mxu0
  %v2703 = vpop.f32.mrb[0].mxu0
  %2704 = vdwg.mxu0
  %2705 = vmatprep.subr.bf16.mxu0 %v2074
  %2706 = vmatpush1.bf16.msra.mxu0 %v2073
  %2707 = vmatprep.subr.bf16.mxu0 %v2095
  %2708 = vmatpush1.bf16.msra.mxu0 %v2094
  %2709 = vmatprep.subr.bf16.mxu0 %v2529
  %2710 = vmatpush1.bf16.msra.mxu0 %v2526
  %2711 = vmatprep.subr.bf16.mxu0 0
  %2712 = vmatpush1.bf16.msra.mxu0 0
  %2713 = vmatprep.subr.bf16.mxu0 0
  %2714 = vmatpush1.bf16.msra.mxu0 0
  %2715 = vmatprep.subr.bf16.mxu0 0
  %2716 = vmatpush1.bf16.msra.mxu0 0
  %2717 = vmatprep.subr.bf16.mxu0 0
  %2718 = vmatpush1.bf16.msra.mxu0 0
  %2719 = vmatprep.subr.bf16.mxu0 0
  %2720 = vmatpush1.bf16.msra.mxu0 0
  %2721 = vmatprep.subr.bf16.mxu0 0
  %2722 = vmatpush1.bf16.msra.mxu0 0
  %2723 = vmatprep.subr.bf16.mxu0 0
  %2724 = vmatpush1.bf16.msra.mxu0 0
  %2725 = vmatprep.subr.bf16.mxu0 0
  %2726 = vmatpush1.bf16.msra.mxu0 0
  %2727 = vmatprep.subr.bf16.mxu0 0
  %2728 = vmatpush1.bf16.msra.mxu0 0
  %2729 = vmatprep.subr.bf16.mxu0 0
  %2730 = vmatpush1.bf16.msra.mxu0 0
  %2731 = vmatprep.subr.bf16.mxu0 0
  %2732 = vmatpush1.bf16.msra.mxu0 0
  %2733 = vmatprep.subr.bf16.mxu0 0
  %2734 = vmatpush1.bf16.msra.mxu0 0
  %2735 = vmatprep.subr.bf16.mxu0 0
  %2736 = vmatpush1.bf16.msra.mxu0 0
  %2737 = vmatprep.mubr.bf16.mxu0 0
  %2738 = vmatmul.mubr.bf16.gmra.mrb[0].mxu0 %v2514
  %v2739 = vpop.f32.mrb[0].mxu0
  %v2740 = vadd.f32 %v2699, %v2739
  %v2741 = vpop.f32.mrb[0].mxu0
  %v2742 = vadd.f32 %v2701, %v2741
  %v2743 = vpop.f32.mrb[0].mxu0
  %v2744 = vpop.f32.mrb[0].mxu0
  %2745 = vdwg.mxu0
  %2746 = vmatprep.subr.bf16.mxu0 %v1740
  %2747 = vmatpush1.bf16.msra.mxu0 %v1739
  %2748 = vmatprep.subr.bf16.mxu0 %v1761
  %2749 = vmatpush1.bf16.msra.mxu0 %v1760
  %2750 = vmatprep.subr.bf16.mxu0 %v1782
  %2751 = vmatpush1.bf16.msra.mxu0 %v1781
  %2752 = vmatprep.subr.bf16.mxu0 %v1803
  %2753 = vmatpush1.bf16.msra.mxu0 %v1802
  %2754 = vmatprep.subr.bf16.mxu0 %v1824
  %2755 = vmatpush1.bf16.msra.mxu0 %v1823
  %2756 = vmatprep.subr.bf16.mxu0 %v1845
  %2757 = vmatpush1.bf16.msra.mxu0 %v1844
  %2758 = vmatprep.subr.bf16.mxu0 %v1866
  %2759 = vmatpush1.bf16.msra.mxu0 %v1865
  %2760 = vmatprep.subr.bf16.mxu0 %v1887
  %2761 = vmatpush1.bf16.msra.mxu0 %v1886
  %2762 = vmatprep.subr.bf16.mxu0 %v1908
  %2763 = vmatpush1.bf16.msra.mxu0 %v1907
  %2764 = vmatprep.subr.bf16.mxu0 %v1929
  %2765 = vmatpush1.bf16.msra.mxu0 %v1928
  %2766 = vmatprep.subr.bf16.mxu0 %v1950
  %2767 = vmatpush1.bf16.msra.mxu0 %v1949
  %2768 = vmatprep.subr.bf16.mxu0 %v1971
  %2769 = vmatpush1.bf16.msra.mxu0 %v1970
  %2770 = vmatprep.subr.bf16.mxu0 %v1992
  %2771 = vmatpush1.bf16.msra.mxu0 %v1991
  %2772 = vmatprep.subr.bf16.mxu0 %v2013
  %2773 = vmatpush1.bf16.msra.mxu0 %v2012
  %2774 = vmatprep.subr.bf16.mxu0 %v2034
  %2775 = vmatpush1.bf16.msra.mxu0 %v2033
  %2776 = vmatprep.subr.bf16.mxu0 %v2055
  %2777 = vmatpush1.bf16.msra.mxu0 %v2054
  %2778 = vmatprep.mubr.bf16.mxu0 %v31
  %2779 = vmatmul.mubr.bf16.gmra.mrb[0].mxu0 %v30
  %v2780 = vpop.f32.mrb[0].mxu0
  %v2781 = vadd.f32 %v465, %v2780
  %v2782 = vpop.f32.mrb[0].mxu0
  %v2783 = vadd.f32 %v469, %v2782
  %v2784 = vpop.f32.mrb[0].mxu0
  %v2785 = vpop.f32.mrb[0].mxu0
  %2786 = vdwg.mxu0
  %2787 = vmatprep.subr.bf16.mxu0 %v2076
  %2788 = vmatpush1.bf16.msra.mxu0 %v2075
  %2789 = vmatprep.subr.bf16.mxu0 %v2097
  %2790 = vmatpush1.bf16.msra.mxu0 %v2096
  %2791 = vmatprep.subr.bf16.mxu0 %v2535
  %2792 = vmatpush1.bf16.msra.mxu0 %v2532
  %2793 = vmatprep.subr.bf16.mxu0 0
  %2794 = vmatpush1.bf16.msra.mxu0 0
  %2795 = vmatprep.subr.bf16.mxu0 0
  %2796 = vmatpush1.bf16.msra.mxu0 0
  %2797 = vmatprep.subr.bf16.mxu0 0
  %2798 = vmatpush1.bf16.msra.mxu0 0
  %2799 = vmatprep.subr.bf16.mxu0 0
  %2800 = vmatpush1.bf16.msra.mxu0 0
  %2801 = vmatprep.subr.bf16.mxu0 0
  %2802 = vmatpush1.bf16.msra.mxu0 0
  %2803 = vmatprep.subr.bf16.mxu0 0
  %2804 = vmatpush1.bf16.msra.mxu0 0
  %2805 = vmatprep.subr.bf16.mxu0 0
  %2806 = vmatpush1.bf16.msra.mxu0 0
  %2807 = vmatprep.subr.bf16.mxu0 0
  %2808 = vmatpush1.bf16.msra.mxu0 0
  %2809 = vmatprep.subr.bf16.mxu0 0
  %2810 = vmatpush1.bf16.msra.mxu0 0
  %2811 = vmatprep.subr.bf16.mxu0 0
  %2812 = vmatpush1.bf16.msra.mxu0 0
  %2813 = vmatprep.subr.bf16.mxu0 0
  %2814 = vmatpush1.bf16.msra.mxu0 0
  %2815 = vmatprep.subr.bf16.mxu0 0
  %2816 = vmatpush1.bf16.msra.mxu0 0
  %2817 = vmatprep.subr.bf16.mxu0 0
  %2818 = vmatpush1.bf16.msra.mxu0 0
  %2819 = vmatprep.mubr.bf16.mxu0 0
  %2820 = vmatmul.mubr.bf16.gmra.mrb[0].mxu0 %v2514
  %v2821 = vpop.f32.mrb[0].mxu0
  %v2822 = vadd.f32 %v2781, %v2821
  %v2823 = vpop.f32.mrb[0].mxu0
  %v2824 = vadd.f32 %v2783, %v2823
  %v2825 = vpop.f32.mrb[0].mxu0
  %v2826 = vpop.f32.mrb[0].mxu0
  %2827 = vdwg.mxu0
  %2828 = vmatprep.subr.bf16.mxu0 %v1742
  %2829 = vmatpush1.bf16.msra.mxu0 %v1741
  %2830 = vmatprep.subr.bf16.mxu0 %v1763
  %2831 = vmatpush1.bf16.msra.mxu0 %v1762
  %2832 = vmatprep.subr.bf16.mxu0 %v1784
  %2833 = vmatpush1.bf16.msra.mxu0 %v1783
  %2834 = vmatprep.subr.bf16.mxu0 %v1805
  %2835 = vmatpush1.bf16.msra.mxu0 %v1804
  %2836 = vmatprep.subr.bf16.mxu0 %v1826
  %2837 = vmatpush1.bf16.msra.mxu0 %v1825
  %2838 = vmatprep.subr.bf16.mxu0 %v1847
  %2839 = vmatpush1.bf16.msra.mxu0 %v1846
  %2840 = vmatprep.subr.bf16.mxu0 %v1868
  %2841 = vmatpush1.bf16.msra.mxu0 %v1867
  %2842 = vmatprep.subr.bf16.mxu0 %v1889
  %2843 = vmatpush1.bf16.msra.mxu0 %v1888
  %2844 = vmatprep.subr.bf16.mxu0 %v1910
  %2845 = vmatpush1.bf16.msra.mxu0 %v1909
  %2846 = vmatprep.subr.bf16.mxu0 %v1931
  %2847 = vmatpush1.bf16.msra.mxu0 %v1930
  %2848 = vmatprep.subr.bf16.mxu0 %v1952
  %2849 = vmatpush1.bf16.msra.mxu0 %v1951
  %2850 = vmatprep.subr.bf16.mxu0 %v1973
  %2851 = vmatpush1.bf16.msra.mxu0 %v1972
  %2852 = vmatprep.subr.bf16.mxu0 %v1994
  %2853 = vmatpush1.bf16.msra.mxu0 %v1993
  %2854 = vmatprep.subr.bf16.mxu0 %v2015
  %2855 = vmatpush1.bf16.msra.mxu0 %v2014
  %2856 = vmatprep.subr.bf16.mxu0 %v2036
  %2857 = vmatpush1.bf16.msra.mxu0 %v2035
  %2858 = vmatprep.subr.bf16.mxu0 %v2057
  %2859 = vmatpush1.bf16.msra.mxu0 %v2056
  %2860 = vmatprep.mubr.bf16.mxu0 %v31
  %2861 = vmatmul.mubr.bf16.gmra.mrb[0].mxu0 %v30
  %v2862 = vpop.f32.mrb[0].mxu0
  %v2863 = vadd.f32 %v473, %v2862
  %v2864 = vpop.f32.mrb[0].mxu0
  %v2865 = vadd.f32 %v477, %v2864
  %v2866 = vpop.f32.mrb[0].mxu0
  %v2867 = vpop.f32.mrb[0].mxu0
  %2868 = vdwg.mxu0
  %2869 = vmatprep.subr.bf16.mxu0 %v2078
  %2870 = vmatpush1.bf16.msra.mxu0 %v2077
  %2871 = vmatprep.subr.bf16.mxu0 %v2099
  %2872 = vmatpush1.bf16.msra.mxu0 %v2098
  %2873 = vmatprep.subr.bf16.mxu0 %v2541
  %2874 = vmatpush1.bf16.msra.mxu0 %v2538
  %2875 = vmatprep.subr.bf16.mxu0 0
  %2876 = vmatpush1.bf16.msra.mxu0 0
  %2877 = vmatprep.subr.bf16.mxu0 0
  %2878 = vmatpush1.bf16.msra.mxu0 0
  %2879 = vmatprep.subr.bf16.mxu0 0
  %2880 = vmatpush1.bf16.msra.mxu0 0
  %2881 = vmatprep.subr.bf16.mxu0 0
  %2882 = vmatpush1.bf16.msra.mxu0 0
  %2883 = vmatprep.subr.bf16.mxu0 0
  %2884 = vmatpush1.bf16.msra.mxu0 0
  %2885 = vmatprep.subr.bf16.mxu0 0
  %2886 = vmatpush1.bf16.msra.mxu0 0
  %2887 = vmatprep.subr.bf16.mxu0 0
  %2888 = vmatpush1.bf16.msra.mxu0 0
  %2889 = vmatprep.subr.bf16.mxu0 0
  %2890 = vmatpush1.bf16.msra.mxu0 0
  %2891 = vmatprep.subr.bf16.mxu0 0
  %2892 = vmatpush1.bf16.msra.mxu0 0
  %2893 = vmatprep.subr.bf16.mxu0 0
  %2894 = vmatpush1.bf16.msra.mxu0 0
  %2895 = vmatprep.subr.bf16.mxu0 0
  %2896 = vmatpush1.bf16.msra.mxu0 0
  %2897 = vmatprep.subr.bf16.mxu0 0
  %2898 = vmatpush1.bf16.msra.mxu0 0
  %2899 = vmatprep.subr.bf16.mxu0 0
  %2900 = vmatpush1.bf16.msra.mxu0 0
  %2901 = vmatprep.mubr.bf16.mxu0 0
  %2902 = vmatmul.mubr.bf16.gmra.mrb[0].mxu0 %v2514
  %v2903 = vpop.f32.mrb[0].mxu0
  %v2904 = vadd.f32 %v2863, %v2903
  %v2905 = vpop.f32.mrb[0].mxu0
  %v2906 = vadd.f32 %v2865, %v2905
  %v2907 = vpop.f32.mrb[0].mxu0
  %v2908 = vpop.f32.mrb[0].mxu0
  %2909 = vdwg.mxu0
  %2910 = vmatprep.subr.bf16.mxu0 %v1744
  %2911 = vmatpush1.bf16.msra.mxu0 %v1743
  %2912 = vmatprep.subr.bf16.mxu0 %v1765
  %2913 = vmatpush1.bf16.msra.mxu0 %v1764
  %2914 = vmatprep.subr.bf16.mxu0 %v1786
  %2915 = vmatpush1.bf16.msra.mxu0 %v1785
  %2916 = vmatprep.subr.bf16.mxu0 %v1807
  %2917 = vmatpush1.bf16.msra.mxu0 %v1806
  %2918 = vmatprep.subr.bf16.mxu0 %v1828
  %2919 = vmatpush1.bf16.msra.mxu0 %v1827
  %2920 = vmatprep.subr.bf16.mxu0 %v1849
  %2921 = vmatpush1.bf16.msra.mxu0 %v1848
  %2922 = vmatprep.subr.bf16.mxu0 %v1870
  %2923 = vmatpush1.bf16.msra.mxu0 %v1869
  %2924 = vmatprep.subr.bf16.mxu0 %v1891
  %2925 = vmatpush1.bf16.msra.mxu0 %v1890
  %2926 = vmatprep.subr.bf16.mxu0 %v1912
  %2927 = vmatpush1.bf16.msra.mxu0 %v1911
  %2928 = vmatprep.subr.bf16.mxu0 %v1933
  %2929 = vmatpush1.bf16.msra.mxu0 %v1932
  %2930 = vmatprep.subr.bf16.mxu0 %v1954
  %2931 = vmatpush1.bf16.msra.mxu0 %v1953
  %2932 = vmatprep.subr.bf16.mxu0 %v1975
  %2933 = vmatpush1.bf16.msra.mxu0 %v1974
  %2934 = vmatprep.subr.bf16.mxu0 %v1996
  %2935 = vmatpush1.bf16.msra.mxu0 %v1995
  %2936 = vmatprep.subr.bf16.mxu0 %v2017
  %2937 = vmatpush1.bf16.msra.mxu0 %v2016
  %2938 = vmatprep.subr.bf16.mxu0 %v2038
  %2939 = vmatpush1.bf16.msra.mxu0 %v2037
  %2940 = vmatprep.subr.bf16.mxu0 %v2059
  %2941 = vmatpush1.bf16.msra.mxu0 %v2058
  %2942 = vmatprep.mubr.bf16.mxu0 %v31
  %2943 = vmatmul.mubr.bf16.gmra.mrb[0].mxu0 %v30
  %v2944 = vpop.f32.mrb[0].mxu0
  %v2945 = vadd.f32 %v481, %v2944
  %v2946 = vpop.f32.mrb[0].mxu0
  %v2947 = vadd.f32 %v485, %v2946
  %v2948 = vpop.f32.mrb[0].mxu0
  %v2949 = vpop.f32.mrb[0].mxu0
  %2950 = vdwg.mxu0
  %2951 = vmatprep.subr.bf16.mxu0 %v2080
  %2952 = vmatpush1.bf16.msra.mxu0 %v2079
  %2953 = vmatprep.subr.bf16.mxu0 %v2101
  %2954 = vmatpush1.bf16.msra.mxu0 %v2100
  %2955 = vmatprep.subr.bf16.mxu0 %v2547
  %2956 = vmatpush1.bf16.msra.mxu0 %v2544
  %2957 = vmatprep.subr.bf16.mxu0 0
  %2958 = vmatpush1.bf16.msra.mxu0 0
  %2959 = vmatprep.subr.bf16.mxu0 0
  %2960 = vmatpush1.bf16.msra.mxu0 0
  %2961 = vmatprep.subr.bf16.mxu0 0
  %2962 = vmatpush1.bf16.msra.mxu0 0
  %2963 = vmatprep.subr.bf16.mxu0 0
  %2964 = vmatpush1.bf16.msra.mxu0 0
  %2965 = vmatprep.subr.bf16.mxu0 0
  %2966 = vmatpush1.bf16.msra.mxu0 0
  %2967 = vmatprep.subr.bf16.mxu0 0
  %2968 = vmatpush1.bf16.msra.mxu0 0
  %2969 = vmatprep.subr.bf16.mxu0 0
  %2970 = vmatpush1.bf16.msra.mxu0 0
  %2971 = vmatprep.subr.bf16.mxu0 0
  %2972 = vmatpush1.bf16.msra.mxu0 0
  %2973 = vmatprep.subr.bf16.mxu0 0
  %2974 = vmatpush1.bf16.msra.mxu0 0
  %2975 = vmatprep.subr.bf16.mxu0 0
  %2976 = vmatpush1.bf16.msra.mxu0 0
  %2977 = vmatprep.subr.bf16.mxu0 0
  %2978 = vmatpush1.bf16.msra.mxu0 0
  %2979 = vmatprep.subr.bf16.mxu0 0
  %2980 = vmatpush1.bf16.msra.mxu0 0
  %2981 = vmatprep.subr.bf16.mxu0 0
  %2982 = vmatpush1.bf16.msra.mxu0 0
  %2983 = vmatprep.mubr.bf16.mxu0 0
  %2984 = vmatmul.mubr.bf16.gmra.mrb[0].mxu0 %v2514
  %v2985 = vpop.f32.mrb[0].mxu0
  %v2986 = vadd.f32 %v2945, %v2985
  %v2987 = vpop.f32.mrb[0].mxu0
  %v2988 = vadd.f32 %v2947, %v2987
  %v2989 = vpop.f32.mrb[0].mxu0
  %v2990 = vpop.f32.mrb[0].mxu0
  %2991 = vdwg.mxu0
  %2992 = vmatprep.subr.bf16.mxu0 %v1746
  %2993 = vmatpush1.bf16.msra.mxu0 %v1745
  %2994 = vmatprep.subr.bf16.mxu0 %v1767
  %2995 = vmatpush1.bf16.msra.mxu0 %v1766
  %2996 = vmatprep.subr.bf16.mxu0 %v1788
  %2997 = vmatpush1.bf16.msra.mxu0 %v1787
  %2998 = vmatprep.subr.bf16.mxu0 %v1809
  %2999 = vmatpush1.bf16.msra.mxu0 %v1808
  %3000 = vmatprep.subr.bf16.mxu0 %v1830
  %3001 = vmatpush1.bf16.msra.mxu0 %v1829
  %3002 = vmatprep.subr.bf16.mxu0 %v1851
  %3003 = vmatpush1.bf16.msra.mxu0 %v1850
  %3004 = vmatprep.subr.bf16.mxu0 %v1872
  %3005 = vmatpush1.bf16.msra.mxu0 %v1871
  %3006 = vmatprep.subr.bf16.mxu0 %v1893
  %3007 = vmatpush1.bf16.msra.mxu0 %v1892
  %3008 = vmatprep.subr.bf16.mxu0 %v1914
  %3009 = vmatpush1.bf16.msra.mxu0 %v1913
  %3010 = vmatprep.subr.bf16.mxu0 %v1935
  %3011 = vmatpush1.bf16.msra.mxu0 %v1934
  %3012 = vmatprep.subr.bf16.mxu0 %v1956
  %3013 = vmatpush1.bf16.msra.mxu0 %v1955
  %3014 = vmatprep.subr.bf16.mxu0 %v1977
  %3015 = vmatpush1.bf16.msra.mxu0 %v1976
  %3016 = vmatprep.subr.bf16.mxu0 %v1998
  %3017 = vmatpush1.bf16.msra.mxu0 %v1997
  %3018 = vmatprep.subr.bf16.mxu0 %v2019
  %3019 = vmatpush1.bf16.msra.mxu0 %v2018
  %3020 = vmatprep.subr.bf16.mxu0 %v2040
  %3021 = vmatpush1.bf16.msra.mxu0 %v2039
  %3022 = vmatprep.subr.bf16.mxu0 %v2061
  %3023 = vmatpush1.bf16.msra.mxu0 %v2060
  %3024 = vmatprep.mubr.bf16.mxu0 %v31
  %3025 = vmatmul.mubr.bf16.gmra.mrb[0].mxu0 %v30
  %v3026 = vpop.f32.mrb[0].mxu0
  %v3027 = vadd.f32 %v489, %v3026
  %v3028 = vpop.f32.mrb[0].mxu0
  %v3029 = vadd.f32 %v493, %v3028
  %v3030 = vpop.f32.mrb[0].mxu0
  %v3031 = vpop.f32.mrb[0].mxu0
  %3032 = vdwg.mxu0
  %3033 = vmatprep.subr.bf16.mxu0 %v2082
  %3034 = vmatpush1.bf16.msra.mxu0 %v2081
  %3035 = vmatprep.subr.bf16.mxu0 %v2103
  %3036 = vmatpush1.bf16.msra.mxu0 %v2102
  %3037 = vmatprep.subr.bf16.mxu0 %v2553
  %3038 = vmatpush1.bf16.msra.mxu0 %v2550
  %3039 = vmatprep.subr.bf16.mxu0 0
  %3040 = vmatpush1.bf16.msra.mxu0 0
  %3041 = vmatprep.subr.bf16.mxu0 0
  %3042 = vmatpush1.bf16.msra.mxu0 0
  %3043 = vmatprep.subr.bf16.mxu0 0
  %3044 = vmatpush1.bf16.msra.mxu0 0
  %3045 = vmatprep.subr.bf16.mxu0 0
  %3046 = vmatpush1.bf16.msra.mxu0 0
  %3047 = vmatprep.subr.bf16.mxu0 0
  %3048 = vmatpush1.bf16.msra.mxu0 0
  %3049 = vmatprep.subr.bf16.mxu0 0
  %3050 = vmatpush1.bf16.msra.mxu0 0
  %3051 = vmatprep.subr.bf16.mxu0 0
  %3052 = vmatpush1.bf16.msra.mxu0 0
  %3053 = vmatprep.subr.bf16.mxu0 0
  %3054 = vmatpush1.bf16.msra.mxu0 0
  %3055 = vmatprep.subr.bf16.mxu0 0
  %3056 = vmatpush1.bf16.msra.mxu0 0
  %3057 = vmatprep.subr.bf16.mxu0 0
  %3058 = vmatpush1.bf16.msra.mxu0 0
  %3059 = vmatprep.subr.bf16.mxu0 0
  %3060 = vmatpush1.bf16.msra.mxu0 0
  %3061 = vmatprep.subr.bf16.mxu0 0
  %3062 = vmatpush1.bf16.msra.mxu0 0
  %3063 = vmatprep.subr.bf16.mxu0 0
  %3064 = vmatpush1.bf16.msra.mxu0 0
  %3065 = vmatprep.mubr.bf16.mxu0 0
  %3066 = vmatmul.mubr.bf16.gmra.mrb[0].mxu0 %v2514
  %v3067 = vpop.f32.mrb[0].mxu0
  %v3068 = vadd.f32 %v3027, %v3067
  %v3069 = vpop.f32.mrb[0].mxu0
  %v3070 = vadd.f32 %v3029, %v3069
  %v3071 = vpop.f32.mrb[0].mxu0
  %v3072 = vpop.f32.mrb[0].mxu0
  %3073 = vdwg.mxu0
  %3074 = vmatprep.subr.bf16.mxu0 %v1748
  %3075 = vmatpush1.bf16.msra.mxu0 %v1747
  %3076 = vmatprep.subr.bf16.mxu0 %v1769
  %3077 = vmatpush1.bf16.msra.mxu0 %v1768
  %3078 = vmatprep.subr.bf16.mxu0 %v1790
  %3079 = vmatpush1.bf16.msra.mxu0 %v1789
  %3080 = vmatprep.subr.bf16.mxu0 %v1811
  %3081 = vmatpush1.bf16.msra.mxu0 %v1810
  %3082 = vmatprep.subr.bf16.mxu0 %v1832
  %3083 = vmatpush1.bf16.msra.mxu0 %v1831
  %3084 = vmatprep.subr.bf16.mxu0 %v1853
  %3085 = vmatpush1.bf16.msra.mxu0 %v1852
  %3086 = vmatprep.subr.bf16.mxu0 %v1874
  %3087 = vmatpush1.bf16.msra.mxu0 %v1873
  %3088 = vmatprep.subr.bf16.mxu0 %v1895
  %3089 = vmatpush1.bf16.msra.mxu0 %v1894
  %3090 = vmatprep.subr.bf16.mxu0 %v1916
  %3091 = vmatpush1.bf16.msra.mxu0 %v1915
  %3092 = vmatprep.subr.bf16.mxu0 %v1937
  %3093 = vmatpush1.bf16.msra.mxu0 %v1936
  %3094 = vmatprep.subr.bf16.mxu0 %v1958
  %3095 = vmatpush1.bf16.msra.mxu0 %v1957
  %3096 = vmatprep.subr.bf16.mxu0 %v1979
  %3097 = vmatpush1.bf16.msra.mxu0 %v1978
  %3098 = vmatprep.subr.bf16.mxu0 %v2000
  %3099 = vmatpush1.bf16.msra.mxu0 %v1999
  %3100 = vmatprep.subr.bf16.mxu0 %v2021
  %3101 = vmatpush1.bf16.msra.mxu0 %v2020
  %3102 = vmatprep.subr.bf16.mxu0 %v2042
  %3103 = vmatpush1.bf16.msra.mxu0 %v2041
  %3104 = vmatprep.subr.bf16.mxu0 %v2063
  %3105 = vmatpush1.bf16.msra.mxu0 %v2062
  %3106 = vmatprep.mubr.bf16.mxu0 %v31
  %3107 = vmatmul.mubr.bf16.gmra.mrb[0].mxu0 %v30
  %v3108 = vpop.f32.mrb[0].mxu0
  %v3109 = vadd.f32 %v497, %v3108
  %v3110 = vpop.f32.mrb[0].mxu0
  %v3111 = vadd.f32 %v501, %v3110
  %v3112 = vpop.f32.mrb[0].mxu0
  %v3113 = vpop.f32.mrb[0].mxu0
  %3114 = vdwg.mxu0
  %3115 = vmatprep.subr.bf16.mxu0 %v2084
  %3116 = vmatpush1.bf16.msra.mxu0 %v2083
  %3117 = vmatprep.subr.bf16.mxu0 %v2105
  %3118 = vmatpush1.bf16.msra.mxu0 %v2104
  %3119 = vmatprep.subr.bf16.mxu0 %v2559
  %3120 = vmatpush1.bf16.msra.mxu0 %v2556
  %3121 = vmatprep.subr.bf16.mxu0 0
  %3122 = vmatpush1.bf16.msra.mxu0 0
  %3123 = vmatprep.subr.bf16.mxu0 0
  %3124 = vmatpush1.bf16.msra.mxu0 0
  %3125 = vmatprep.subr.bf16.mxu0 0
  %3126 = vmatpush1.bf16.msra.mxu0 0
  %3127 = vmatprep.subr.bf16.mxu0 0
  %3128 = vmatpush1.bf16.msra.mxu0 0
  %3129 = vmatprep.subr.bf16.mxu0 0
  %3130 = vmatpush1.bf16.msra.mxu0 0
  %3131 = vmatprep.subr.bf16.mxu0 0
  %3132 = vmatpush1.bf16.msra.mxu0 0
  %3133 = vmatprep.subr.bf16.mxu0 0
  %3134 = vmatpush1.bf16.msra.mxu0 0
  %3135 = vmatprep.subr.bf16.mxu0 0
  %3136 = vmatpush1.bf16.msra.mxu0 0
  %3137 = vmatprep.subr.bf16.mxu0 0
  %3138 = vmatpush1.bf16.msra.mxu0 0
  %3139 = vmatprep.subr.bf16.mxu0 0
  %3140 = vmatpush1.bf16.msra.mxu0 0
  %3141 = vmatprep.subr.bf16.mxu0 0
  %3142 = vmatpush1.bf16.msra.mxu0 0
  %3143 = vmatprep.subr.bf16.mxu0 0
  %3144 = vmatpush1.bf16.msra.mxu0 0
  %3145 = vmatprep.subr.bf16.mxu0 0
  %3146 = vmatpush1.bf16.msra.mxu0 0
  %3147 = vmatprep.mubr.bf16.mxu0 0
  %3148 = vmatmul.mubr.bf16.gmra.mrb[0].mxu0 %v2514
  %v3149 = vpop.f32.mrb[0].mxu0
  %v3150 = vadd.f32 %v3109, %v3149
  %v3151 = vpop.f32.mrb[0].mxu0
  %v3152 = vadd.f32 %v3111, %v3151
  %v3153 = vpop.f32.mrb[0].mxu0
  %v3154 = vpop.f32.mrb[0].mxu0
  %3155 = vdwg.mxu0
  %3156 = vmatprep.subr.bf16.mxu0 %v1750
  %3157 = vmatpush1.bf16.msra.mxu0 %v1749
  %3158 = vmatprep.subr.bf16.mxu0 %v1771
  %3159 = vmatpush1.bf16.msra.mxu0 %v1770
  %3160 = vmatprep.subr.bf16.mxu0 %v1792
  %3161 = vmatpush1.bf16.msra.mxu0 %v1791
  %3162 = vmatprep.subr.bf16.mxu0 %v1813
  %3163 = vmatpush1.bf16.msra.mxu0 %v1812
  %3164 = vmatprep.subr.bf16.mxu0 %v1834
  %3165 = vmatpush1.bf16.msra.mxu0 %v1833
  %3166 = vmatprep.subr.bf16.mxu0 %v1855
  %3167 = vmatpush1.bf16.msra.mxu0 %v1854
  %3168 = vmatprep.subr.bf16.mxu0 %v1876
  %3169 = vmatpush1.bf16.msra.mxu0 %v1875
  %3170 = vmatprep.subr.bf16.mxu0 %v1897
  %3171 = vmatpush1.bf16.msra.mxu0 %v1896
  %3172 = vmatprep.subr.bf16.mxu0 %v1918
  %3173 = vmatpush1.bf16.msra.mxu0 %v1917
  %3174 = vmatprep.subr.bf16.mxu0 %v1939
  %3175 = vmatpush1.bf16.msra.mxu0 %v1938
  %3176 = vmatprep.subr.bf16.mxu0 %v1960
  %3177 = vmatpush1.bf16.msra.mxu0 %v1959
  %3178 = vmatprep.subr.bf16.mxu0 %v1981
  %3179 = vmatpush1.bf16.msra.mxu0 %v1980
  %3180 = vmatprep.subr.bf16.mxu0 %v2002
  %3181 = vmatpush1.bf16.msra.mxu0 %v2001
  %3182 = vmatprep.subr.bf16.mxu0 %v2023
  %3183 = vmatpush1.bf16.msra.mxu0 %v2022
  %3184 = vmatprep.subr.bf16.mxu0 %v2044
  %3185 = vmatpush1.bf16.msra.mxu0 %v2043
  %3186 = vmatprep.subr.bf16.mxu0 %v2065
  %3187 = vmatpush1.bf16.msra.mxu0 %v2064
  %3188 = vmatprep.mubr.bf16.mxu0 %v31
  %3189 = vmatmul.mubr.bf16.gmra.mrb[0].mxu0 %v30
  %v3190 = vpop.f32.mrb[0].mxu0
  %v3191 = vadd.f32 %v505, %v3190
  %v3192 = vpop.f32.mrb[0].mxu0
  %v3193 = vadd.f32 %v509, %v3192
  %v3194 = vpop.f32.mrb[0].mxu0
  %v3195 = vpop.f32.mrb[0].mxu0
  %3196 = vdwg.mxu0
  %3197 = vmatprep.subr.bf16.mxu0 %v2086
  %3198 = vmatpush1.bf16.msra.mxu0 %v2085
  %3199 = vmatprep.subr.bf16.mxu0 %v2107
  %3200 = vmatpush1.bf16.msra.mxu0 %v2106
  %3201 = vmatprep.subr.bf16.mxu0 %v2565
  %3202 = vmatpush1.bf16.msra.mxu0 %v2562
  %3203 = vmatprep.subr.bf16.mxu0 0
  %3204 = vmatpush1.bf16.msra.mxu0 0
  %3205 = vmatprep.subr.bf16.mxu0 0
  %3206 = vmatpush1.bf16.msra.mxu0 0
  %3207 = vmatprep.subr.bf16.mxu0 0
  %3208 = vmatpush1.bf16.msra.mxu0 0
  %3209 = vmatprep.subr.bf16.mxu0 0
  %3210 = vmatpush1.bf16.msra.mxu0 0
  %3211 = vmatprep.subr.bf16.mxu0 0
  %3212 = vmatpush1.bf16.msra.mxu0 0
  %3213 = vmatprep.subr.bf16.mxu0 0
  %3214 = vmatpush1.bf16.msra.mxu0 0
  %3215 = vmatprep.subr.bf16.mxu0 0
  %3216 = vmatpush1.bf16.msra.mxu0 0
  %3217 = vmatprep.subr.bf16.mxu0 0
  %3218 = vmatpush1.bf16.msra.mxu0 0
  %3219 = vmatprep.subr.bf16.mxu0 0
  %3220 = vmatpush1.bf16.msra.mxu0 0
  %3221 = vmatprep.subr.bf16.mxu0 0
  %3222 = vmatpush1.bf16.msra.mxu0 0
  %3223 = vmatprep.subr.bf16.mxu0 0
  %3224 = vmatpush1.bf16.msra.mxu0 0
  %3225 = vmatprep.subr.bf16.mxu0 0
  %3226 = vmatpush1.bf16.msra.mxu0 0
  %3227 = vmatprep.subr.bf16.mxu0 0
  %3228 = vmatpush1.bf16.msra.mxu0 0
  %3229 = vmatprep.mubr.bf16.mxu0 0
  %3230 = vmatmul.mubr.bf16.gmra.mrb[0].mxu0 %v2514
  %v3231 = vpop.f32.mrb[0].mxu0
  %v3232 = vadd.f32 %v3191, %v3231
  %v3233 = vpop.f32.mrb[0].mxu0
  %v3234 = vadd.f32 %v3193, %v3233
  %v3235 = vpop.f32.mrb[0].mxu0
  %v3236 = vpop.f32.mrb[0].mxu0
  %3237 = vdwg.mxu0
  %3238 = vmatprep.subr.bf16.mxu0 %v1752
  %3239 = vmatpush1.bf16.msra.mxu0 %v1751
  %3240 = vmatprep.subr.bf16.mxu0 %v1773
  %3241 = vmatpush1.bf16.msra.mxu0 %v1772
  %3242 = vmatprep.subr.bf16.mxu0 %v1794
  %3243 = vmatpush1.bf16.msra.mxu0 %v1793
  %3244 = vmatprep.subr.bf16.mxu0 %v1815
  %3245 = vmatpush1.bf16.msra.mxu0 %v1814
  %3246 = vmatprep.subr.bf16.mxu0 %v1836
  %3247 = vmatpush1.bf16.msra.mxu0 %v1835
  %3248 = vmatprep.subr.bf16.mxu0 %v1857
  %3249 = vmatpush1.bf16.msra.mxu0 %v1856
  %3250 = vmatprep.subr.bf16.mxu0 %v1878
  %3251 = vmatpush1.bf16.msra.mxu0 %v1877
  %3252 = vmatprep.subr.bf16.mxu0 %v1899
  %3253 = vmatpush1.bf16.msra.mxu0 %v1898
  %3254 = vmatprep.subr.bf16.mxu0 %v1920
  %3255 = vmatpush1.bf16.msra.mxu0 %v1919
  %3256 = vmatprep.subr.bf16.mxu0 %v1941
  %3257 = vmatpush1.bf16.msra.mxu0 %v1940
  %3258 = vmatprep.subr.bf16.mxu0 %v1962
  %3259 = vmatpush1.bf16.msra.mxu0 %v1961
  %3260 = vmatprep.subr.bf16.mxu0 %v1983
  %3261 = vmatpush1.bf16.msra.mxu0 %v1982
  %3262 = vmatprep.subr.bf16.mxu0 %v2004
  %3263 = vmatpush1.bf16.msra.mxu0 %v2003
  %3264 = vmatprep.subr.bf16.mxu0 %v2025
  %3265 = vmatpush1.bf16.msra.mxu0 %v2024
  %3266 = vmatprep.subr.bf16.mxu0 %v2046
  %3267 = vmatpush1.bf16.msra.mxu0 %v2045
  %3268 = vmatprep.subr.bf16.mxu0 %v2067
  %3269 = vmatpush1.bf16.msra.mxu0 %v2066
  %3270 = vmatprep.mubr.bf16.mxu0 %v31
  %3271 = vmatmul.mubr.bf16.gmra.mrb[0].mxu0 %v30
  %v3272 = vpop.f32.mrb[0].mxu0
  %v3273 = vadd.f32 %v513, %v3272
  %v3274 = vpop.f32.mrb[0].mxu0
  %v3275 = vadd.f32 %v517, %v3274
  %v3276 = vpop.f32.mrb[0].mxu0
  %v3277 = vpop.f32.mrb[0].mxu0
  %3278 = vdwg.mxu0
  %3279 = vmatprep.subr.bf16.mxu0 %v2088
  %3280 = vmatpush1.bf16.msra.mxu0 %v2087
  %3281 = vmatprep.subr.bf16.mxu0 %v2109
  %3282 = vmatpush1.bf16.msra.mxu0 %v2108
  %3283 = vmatprep.subr.bf16.mxu0 %v2571
  %3284 = vmatpush1.bf16.msra.mxu0 %v2568
  %3285 = vmatprep.subr.bf16.mxu0 0
  %3286 = vmatpush1.bf16.msra.mxu0 0
  %3287 = vmatprep.subr.bf16.mxu0 0
  %3288 = vmatpush1.bf16.msra.mxu0 0
  %3289 = vmatprep.subr.bf16.mxu0 0
  %3290 = vmatpush1.bf16.msra.mxu0 0
  %3291 = vmatprep.subr.bf16.mxu0 0
  %3292 = vmatpush1.bf16.msra.mxu0 0
  %3293 = vmatprep.subr.bf16.mxu0 0
  %3294 = vmatpush1.bf16.msra.mxu0 0
  %3295 = vmatprep.subr.bf16.mxu0 0
  %3296 = vmatpush1.bf16.msra.mxu0 0
  %3297 = vmatprep.subr.bf16.mxu0 0
  %3298 = vmatpush1.bf16.msra.mxu0 0
  %3299 = vmatprep.subr.bf16.mxu0 0
  %3300 = vmatpush1.bf16.msra.mxu0 0
  %3301 = vmatprep.subr.bf16.mxu0 0
  %3302 = vmatpush1.bf16.msra.mxu0 0
  %3303 = vmatprep.subr.bf16.mxu0 0
  %3304 = vmatpush1.bf16.msra.mxu0 0
  %3305 = vmatprep.subr.bf16.mxu0 0
  %3306 = vmatpush1.bf16.msra.mxu0 0
  %3307 = vmatprep.subr.bf16.mxu0 0
  %3308 = vmatpush1.bf16.msra.mxu0 0
  %3309 = vmatprep.subr.bf16.mxu0 0
  %3310 = vmatpush1.bf16.msra.mxu0 0
  %3311 = vmatprep.mubr.bf16.mxu0 0
  %3312 = vmatmul.mubr.bf16.gmra.mrb[0].mxu0 %v2514
  %v3313 = vpop.f32.mrb[0].mxu0
  %v3314 = vadd.f32 %v3273, %v3313
  %v3315 = vpop.f32.mrb[0].mxu0
  %v3316 = vadd.f32 %v3275, %v3315
  %v3317 = vpop.f32.mrb[0].mxu0
  %v3318 = vpop.f32.mrb[0].mxu0
  %3319 = vdwg.mxu0
  %3320 = vmatprep.subr.bf16.mxu0 %v1754
  %3321 = vmatpush1.bf16.msra.mxu0 %v1753
  %3322 = vmatprep.subr.bf16.mxu0 %v1775
  %3323 = vmatpush1.bf16.msra.mxu0 %v1774
  %3324 = vmatprep.subr.bf16.mxu0 %v1796
  %3325 = vmatpush1.bf16.msra.mxu0 %v1795
  %3326 = vmatprep.subr.bf16.mxu0 %v1817
  %3327 = vmatpush1.bf16.msra.mxu0 %v1816
  %3328 = vmatprep.subr.bf16.mxu0 %v1838
  %3329 = vmatpush1.bf16.msra.mxu0 %v1837
  %3330 = vmatprep.subr.bf16.mxu0 %v1859
  %3331 = vmatpush1.bf16.msra.mxu0 %v1858
  %3332 = vmatprep.subr.bf16.mxu0 %v1880
  %3333 = vmatpush1.bf16.msra.mxu0 %v1879
  %3334 = vmatprep.subr.bf16.mxu0 %v1901
  %3335 = vmatpush1.bf16.msra.mxu0 %v1900
  %3336 = vmatprep.subr.bf16.mxu0 %v1922
  %3337 = vmatpush1.bf16.msra.mxu0 %v1921
  %3338 = vmatprep.subr.bf16.mxu0 %v1943
  %3339 = vmatpush1.bf16.msra.mxu0 %v1942
  %3340 = vmatprep.subr.bf16.mxu0 %v1964
  %3341 = vmatpush1.bf16.msra.mxu0 %v1963
  %3342 = vmatprep.subr.bf16.mxu0 %v1985
  %3343 = vmatpush1.bf16.msra.mxu0 %v1984
  %3344 = vmatprep.subr.bf16.mxu0 %v2006
  %3345 = vmatpush1.bf16.msra.mxu0 %v2005
  %3346 = vmatprep.subr.bf16.mxu0 %v2027
  %3347 = vmatpush1.bf16.msra.mxu0 %v2026
  %3348 = vmatprep.subr.bf16.mxu0 %v2048
  %3349 = vmatpush1.bf16.msra.mxu0 %v2047
  %3350 = vmatprep.subr.bf16.mxu0 %v2069
  %3351 = vmatpush1.bf16.msra.mxu0 %v2068
  %3352 = vmatprep.mubr.bf16.mxu0 %v31
  %3353 = vmatmul.mubr.bf16.gmra.mrb[0].mxu0 %v30
  %v3354 = vpop.f32.mrb[0].mxu0
  %v3355 = vadd.f32 %v521, %v3354
  %v3356 = vpop.f32.mrb[0].mxu0
  %v3357 = vadd.f32 %v525, %v3356
  %v3358 = vpop.f32.mrb[0].mxu0
  %v3359 = vpop.f32.mrb[0].mxu0
  %3360 = vdwg.mxu0
  %3361 = vmatprep.subr.bf16.mxu0 %v2090
  %3362 = vmatpush1.bf16.msra.mxu0 %v2089
  %3363 = vmatprep.subr.bf16.mxu0 %v2111
  %3364 = vmatpush1.bf16.msra.mxu0 %v2110
  %3365 = vmatprep.subr.bf16.mxu0 %v2577
  %3366 = vmatpush1.bf16.msra.mxu0 %v2574
  %3367 = vmatprep.subr.bf16.mxu0 0
  %3368 = vmatpush1.bf16.msra.mxu0 0
  %3369 = vmatprep.subr.bf16.mxu0 0
  %3370 = vmatpush1.bf16.msra.mxu0 0
  %3371 = vmatprep.subr.bf16.mxu0 0
  %3372 = vmatpush1.bf16.msra.mxu0 0
  %3373 = vmatprep.subr.bf16.mxu0 0
  %3374 = vmatpush1.bf16.msra.mxu0 0
  %3375 = vmatprep.subr.bf16.mxu0 0
  %3376 = vmatpush1.bf16.msra.mxu0 0
  %3377 = vmatprep.subr.bf16.mxu0 0
  %3378 = vmatpush1.bf16.msra.mxu0 0
  %3379 = vmatprep.subr.bf16.mxu0 0
  %3380 = vmatpush1.bf16.msra.mxu0 0
  %3381 = vmatprep.subr.bf16.mxu0 0
  %3382 = vmatpush1.bf16.msra.mxu0 0
  %3383 = vmatprep.subr.bf16.mxu0 0
  %3384 = vmatpush1.bf16.msra.mxu0 0
  %3385 = vmatprep.subr.bf16.mxu0 0
  %3386 = vmatpush1.bf16.msra.mxu0 0
  %3387 = vmatprep.subr.bf16.mxu0 0
  %3388 = vmatpush1.bf16.msra.mxu0 0
  %3389 = vmatprep.subr.bf16.mxu0 0
  %3390 = vmatpush1.bf16.msra.mxu0 0
  %3391 = vmatprep.subr.bf16.mxu0 0
  %3392 = vmatpush1.bf16.msra.mxu0 0
  %3393 = vmatprep.mubr.bf16.mxu0 0
  %3394 = vmatmul.mubr.bf16.gmra.mrb[0].mxu0 %v2514
  %v3395 = vpop.f32.mrb[0].mxu0
  %v3396 = vadd.f32 %v3355, %v3395
  %v3397 = vpop.f32.mrb[0].mxu0
  %v3398 = vadd.f32 %v3357, %v3397
  %v3399 = vpop.f32.mrb[0].mxu0
  %v3400 = vpop.f32.mrb[0].mxu0
  %3401 = vdwg.mxu0
  %3402 = vmatprep.subr.bf16.mxu0 0
  %3403 = vmatpush1.bf16.msra.mxu0 %v1755
  %3404 = vmatprep.subr.bf16.mxu0 0
  %3405 = vmatpush1.bf16.msra.mxu0 %v1776
  %3406 = vmatprep.subr.bf16.mxu0 0
  %3407 = vmatpush1.bf16.msra.mxu0 %v1797
  %3408 = vmatprep.subr.bf16.mxu0 0
  %3409 = vmatpush1.bf16.msra.mxu0 %v1818
  %3410 = vmatprep.subr.bf16.mxu0 0
  %3411 = vmatpush1.bf16.msra.mxu0 %v1839
  %3412 = vmatprep.subr.bf16.mxu0 0
  %3413 = vmatpush1.bf16.msra.mxu0 %v1860
  %3414 = vmatprep.subr.bf16.mxu0 0
  %3415 = vmatpush1.bf16.msra.mxu0 %v1881
  %3416 = vmatprep.subr.bf16.mxu0 0
  %3417 = vmatpush1.bf16.msra.mxu0 %v1902
  %3418 = vmatprep.subr.bf16.mxu0 0
  %3419 = vmatpush1.bf16.msra.mxu0 %v1923
  %3420 = vmatprep.subr.bf16.mxu0 0
  %3421 = vmatpush1.bf16.msra.mxu0 %v1944
  %3422 = vmatprep.subr.bf16.mxu0 0
  %3423 = vmatpush1.bf16.msra.mxu0 %v1965
  %3424 = vmatprep.subr.bf16.mxu0 0
  %3425 = vmatpush1.bf16.msra.mxu0 %v1986
  %3426 = vmatprep.subr.bf16.mxu0 0
  %3427 = vmatpush1.bf16.msra.mxu0 %v2007
  %3428 = vmatprep.subr.bf16.mxu0 0
  %3429 = vmatpush1.bf16.msra.mxu0 %v2028
  %3430 = vmatprep.subr.bf16.mxu0 0
  %3431 = vmatpush1.bf16.msra.mxu0 %v2049
  %3432 = vmatprep.subr.bf16.mxu0 0
  %3433 = vmatpush1.bf16.msra.mxu0 %v2070
  %3434 = vmatprep.mubr.bf16.mxu0 %v31
  %3435 = vmatmul.mubr.bf16.gmra.mrb[0].mxu0 %v30
  %v3436 = vpop.f32.mrb[0].mxu0
  %v3437 = vadd.f32 %v529, %v3436
  %v3438 = vpop.f32.mrb[0].mxu0
  %v3439 = vpop.f32.mrb[0].mxu0
  %v3440 = vpop.f32.mrb[0].mxu0
  %3441 = vdwg.mxu0
  %3442 = vmatprep.subr.bf16.mxu0 0
  %3443 = vmatpush1.bf16.msra.mxu0 %v2091
  %3444 = vmatprep.subr.bf16.mxu0 0
  %3445 = vmatpush1.bf16.msra.mxu0 %v2112
  %3446 = vmatprep.subr.bf16.mxu0 0
  %3447 = vmatpush1.bf16.msra.mxu0 %v2580
  %3448 = vmatprep.subr.bf16.mxu0 0
  %3449 = vmatpush1.bf16.msra.mxu0 0
  %3450 = vmatprep.subr.bf16.mxu0 0
  %3451 = vmatpush1.bf16.msra.mxu0 0
  %3452 = vmatprep.subr.bf16.mxu0 0
  %3453 = vmatpush1.bf16.msra.mxu0 0
  %3454 = vmatprep.subr.bf16.mxu0 0
  %3455 = vmatpush1.bf16.msra.mxu0 0
  %3456 = vmatprep.subr.bf16.mxu0 0
  %3457 = vmatpush1.bf16.msra.mxu0 0
  %3458 = vmatprep.subr.bf16.mxu0 0
  %3459 = vmatpush1.bf16.msra.mxu0 0
  %3460 = vmatprep.subr.bf16.mxu0 0
  %3461 = vmatpush1.bf16.msra.mxu0 0
  %3462 = vmatprep.subr.bf16.mxu0 0
  %3463 = vmatpush1.bf16.msra.mxu0 0
  %3464 = vmatprep.subr.bf16.mxu0 0
  %3465 = vmatpush1.bf16.msra.mxu0 0
  %3466 = vmatprep.subr.bf16.mxu0 0
  %3467 = vmatpush1.bf16.msra.mxu0 0
  %3468 = vmatprep.subr.bf16.mxu0 0
  %3469 = vmatpush1.bf16.msra.mxu0 0
  %3470 = vmatprep.subr.bf16.mxu0 0
  %3471 = vmatpush1.bf16.msra.mxu0 0
  %3472 = vmatprep.subr.bf16.mxu0 0
  %3473 = vmatpush1.bf16.msra.mxu0 0
  %3474 = vmatprep.mubr.bf16.mxu0 0
  %3475 = vmatmul.mubr.bf16.gmra.mrb[0].mxu0 %v2514
  %v3476 = vpop.f32.mrb[0].mxu0
  %v3477 = vadd.f32 %v3437, %v3476
  %v3478 = vpop.f32.mrb[0].mxu0
  %v3479 = vpop.f32.mrb[0].mxu0
  %v3480 = vpop.f32.mrb[0].mxu0
  %3481 = vdwg.mxu0
  %v3482 = vmax.f32 %v2658, 0.0
  %v3483 = vmax.f32 %v2660, 0.0
  %v3484 = vmax.f32 %v2740, 0.0
  %v3485 = vmax.f32 %v2742, 0.0
  %v3486 = vmax.f32 %v2822, 0.0
  %v3487 = vmax.f32 %v2824, 0.0
  %v3488 = vmax.f32 %v2904, 0.0
  %v3489 = vmax.f32 %v2906, 0.0
  %v3490 = vmax.f32 %v2986, 0.0
  %v3491 = vmax.f32 %v2988, 0.0
  %v3492 = vmax.f32 %v3068, 0.0
  %v3493 = vmax.f32 %v3070, 0.0
  %v3494 = vmax.f32 %v3150, 0.0
  %v3495 = vmax.f32 %v3152, 0.0
  %v3496 = vmax.f32 %v3232, 0.0
  %v3497 = vmax.f32 %v3234, 0.0
  %v3498 = vmax.f32 %v3314, 0.0
  %v3499 = vmax.f32 %v3316, 0.0
  %v3500 = vmax.f32 %v3396, 0.0
  %v3501 = vmax.f32 %v3398, 0.0
  %v3502 = vmax.f32 %v3477, 0.0
  %v3503 = vpack.c.bf16 %v3482, %v3482
  %v3504 = vpack.c.bf16 %v3483, %v3483
  %v3505 = vpack.c.bf16 %v3484, %v3484
  %v3506 = vpack.c.bf16 %v3485, %v3485
  %v3507 = vpack.c.bf16 %v3486, %v3486
  %v3508 = vpack.c.bf16 %v3487, %v3487
  %v3509 = vpack.c.bf16 %v3488, %v3488
  %v3510 = vpack.c.bf16 %v3489, %v3489
  %v3511 = vpack.c.bf16 %v3490, %v3490
  %v3512 = vpack.c.bf16 %v3491, %v3491
  %v3513 = vpack.c.bf16 %v3492, %v3492
  %v3514 = vpack.c.bf16 %v3493, %v3493
  %v3515 = vpack.c.bf16 %v3494, %v3494
  %v3516 = vpack.c.bf16 %v3495, %v3495
  %v3517 = vpack.c.bf16 %v3496, %v3496
  %v3518 = vpack.c.bf16 %v3497, %v3497
  %v3519 = vpack.c.bf16 %v3498, %v3498
  %v3520 = vpack.c.bf16 %v3499, %v3499
  %v3521 = vpack.c.bf16 %v3500, %v3500
  %v3522 = vpack.c.bf16 %v3501, %v3501
  %v3523 = vpack.c.bf16 %v3502, %v3502
  %3525 = vrot.lane.b32.xlu0 %v3505, 64
  %v3526 = vpop.permute.xlu0 %3525
  %vm3527 = vcmask 261120
  %vm3529 = vcmask 523264
  %v3530 = vsel %vm3529, 0, 0
  %vm3531 = vcmask 785408
  %v3532 = vsel %vm3531, %v3530, 0
  %v3534 = vsel %vm3529, %v3503, 0
  %v3536 = vsel %vm3531, %v3534, %v3526
  %3538 = vrot.lane.b32.xlu0 %v3503, 64
  %v3539 = vpop.permute.xlu0 %3538
  %v3541 = vsel %vm3531, %v3530, %v3539
  %v3543 = vsel %vm3529, %v3539, %v3505
  %v3544 = vsel %vm3531, %v3543, %v3505
  %3546 = vrot.lane.b32.xlu0 %v3506, 64
  %v3547 = vpop.permute.xlu0 %3546
  %v3548 = vsel %vm3531, %v3530, %v3503
  %v3551 = vsel %vm3529, %v3504, %v3547
  %v3552 = vsel %vm3531, %v3551, %v3547
  %3554 = vrot.lane.b32.xlu0 %v3504, 64
  %v3555 = vpop.permute.xlu0 %3554
  %v3557 = vsel %vm3531, %v3530, %v3555
  %v3559 = vsel %vm3529, %v3555, %v3506
  %v3560 = vsel %vm3531, %v3559, %v3506
  %3562 = vrot.lane.b32.xlu0 %v3507, 64
  %v3563 = vpop.permute.xlu0 %3562
  %v3564 = vsel %vm3531, %v3530, %v3504
  %v3565 = vsel %vm3527, %v3505, 0
  %v3567 = vsel %vm3529, %v3565, %v3563
  %v3568 = vsel %vm3531, %v3567, %v3563
  %v3569 = vsel %vm3527, 0, %v3505
  %v3570 = vsel %vm3529, %v3569, %v3505
  %v3571 = vsel %vm3531, %v3570, 0
  %v3572 = vsel %vm3529, %v3563, 0
  %v3574 = vsel %vm3531, %v3572, %v3509
  %3576 = vrot.lane.b32.xlu0 %v3510, 64
  %v3577 = vpop.permute.xlu0 %3576
  %v3578 = vsel %vm3529, %v3526, %v3547
  %v3580 = vsel %vm3531, %v3578, %v3507
  %v3583 = vsel %vm3529, %v3508, %v3577
  %v3584 = vsel %vm3531, %v3583, %v3577
  %3586 = vrot.lane.b32.xlu0 %v3508, 64
  %v3587 = vpop.permute.xlu0 %3586
  %v3588 = vsel %vm3529, %v3506, %v3506
  %v3590 = vsel %vm3531, %v3588, %v3587
  %v3592 = vsel %vm3529, %v3587, %v3510
  %v3593 = vsel %vm3531, %v3592, %v3510
  %3595 = vrot.lane.b32.xlu0 %v3511, 64
  %v3596 = vpop.permute.xlu0 %3595
  %v3597 = vsel %vm3529, %v3547, %v3563
  %v3598 = vsel %vm3531, %v3597, %v3508
  %v3600 = vsel %vm3529, %v3509, %v3596
  %v3601 = vsel %vm3531, %v3600, %v3596
  %3603 = vrot.lane.b32.xlu0 %v3509, 64
  %v3604 = vpop.permute.xlu0 %3603
  %v3605 = vsel %vm3529, %v3507, 0
  %v3607 = vsel %vm3531, %v3605, %v3604
  %v3608 = vsel %vm3527, %v3604, 0
  %v3610 = vsel %vm3529, %v3608, %v3511
  %v3611 = vsel %vm3531, %v3610, %v3511
  %3613 = vrot.lane.b32.xlu0 %v3514, 64
  %v3614 = vpop.permute.xlu0 %3613
  %v3615 = vsel %vm3527, 0, %v3604
  %v3616 = vsel %vm3529, %v3615, %v3577
  %v3617 = vsel %vm3531, %v3616, 0
  %v3619 = vsel %vm3529, %v3512, 0
  %v3621 = vsel %vm3531, %v3619, %v3614
  %3623 = vrot.lane.b32.xlu0 %v3512, 64
  %v3624 = vpop.permute.xlu0 %3623
  %v3625 = vsel %vm3529, %v3510, %v3510
  %v3627 = vsel %vm3531, %v3625, %v3624
  %v3629 = vsel %vm3529, %v3624, %v3514
  %v3630 = vsel %vm3531, %v3629, %v3514
  %3632 = vrot.lane.b32.xlu0 %v3515, 64
  %v3633 = vpop.permute.xlu0 %3632
  %v3634 = vsel %vm3529, %v3577, %v3596
  %v3635 = vsel %vm3531, %v3634, %v3512
  %v3638 = vsel %vm3529, %v3513, %v3633
  %v3639 = vsel %vm3531, %v3638, %v3633
  %3641 = vrot.lane.b32.xlu0 %v3513, 64
  %v3642 = vpop.permute.xlu0 %3641
  %v3643 = vsel %vm3529, %v3511, %v3511
  %v3645 = vsel %vm3531, %v3643, %v3642
  %v3647 = vsel %vm3529, %v3642, %v3515
  %v3648 = vsel %vm3531, %v3647, %v3515
  %3650 = vrot.lane.b32.xlu0 %v3516, 64
  %v3651 = vpop.permute.xlu0 %3650
  %v3652 = vsel %vm3529, %v3596, 0
  %v3653 = vsel %vm3531, %v3652, %v3513
  %v3654 = vsel %vm3527, %v3514, 0
  %v3656 = vsel %vm3529, %v3654, %v3651
  %v3657 = vsel %vm3531, %v3656, %v3651
  %v3658 = vsel %vm3527, 0, %v3514
  %v3659 = vsel %vm3529, %v3658, %v3514
  %v3660 = vsel %vm3531, %v3659, 0
  %v3661 = vsel %vm3529, %v3651, 0
  %v3663 = vsel %vm3531, %v3661, %v3518
  %3665 = vrot.lane.b32.xlu0 %v3519, 64
  %v3666 = vpop.permute.xlu0 %3665
  %v3667 = vsel %vm3529, %v3614, %v3633
  %v3669 = vsel %vm3531, %v3667, %v3516
  %v3672 = vsel %vm3529, %v3517, %v3666
  %v3673 = vsel %vm3531, %v3672, %v3666
  %3675 = vrot.lane.b32.xlu0 %v3517, 64
  %v3676 = vpop.permute.xlu0 %3675
  %v3677 = vsel %vm3529, %v3515, %v3515
  %v3679 = vsel %vm3531, %v3677, %v3676
  %v3681 = vsel %vm3529, %v3676, %v3519
  %v3682 = vsel %vm3531, %v3681, %v3519
  %3684 = vrot.lane.b32.xlu0 %v3520, 64
  %v3685 = vpop.permute.xlu0 %3684
  %v3686 = vsel %vm3529, %v3633, %v3651
  %v3687 = vsel %vm3531, %v3686, %v3517
  %v3689 = vsel %vm3529, %v3518, %v3685
  %v3690 = vsel %vm3531, %v3689, %v3685
  %3692 = vrot.lane.b32.xlu0 %v3518, 64
  %v3693 = vpop.permute.xlu0 %3692
  %v3694 = vsel %vm3529, %v3516, 0
  %v3696 = vsel %vm3531, %v3694, %v3693
  %v3697 = vsel %vm3527, %v3693, 0
  %v3699 = vsel %vm3529, %v3697, %v3520
  %v3700 = vsel %vm3531, %v3699, %v3520
  %v3701 = vsel %vm3527, 0, %v3693
  %v3702 = vsel %vm3529, %v3701, %v3666
  %v3703 = vsel %vm3531, %v3702, 0
  %v3705 = vsel %vm3529, %v3521, 0
  %v3706 = vsel %vm3531, %v3705, 0
  %3708 = vrot.lane.b32.xlu0 %v3521, 64
  %v3709 = vpop.permute.xlu0 %3708
  %v3710 = vsel %vm3529, %v3519, %v3519
  %v3712 = vsel %vm3531, %v3710, %v3709
  %v3713 = vsel %vm3529, %v3709, 0
  %v3714 = vsel %vm3531, %v3713, 0
  %v3715 = vsel %vm3529, %v3666, %v3685
  %v3716 = vsel %vm3531, %v3715, %v3521
  %v3718 = vsel %vm3529, %v3522, 0
  %v3719 = vsel %vm3531, %v3718, 0
  %3721 = vrot.lane.b32.xlu0 %v3522, 64
  %v3722 = vpop.permute.xlu0 %3721
  %v3723 = vsel %vm3529, %v3520, %v3520
  %v3725 = vsel %vm3531, %v3723, %v3722
  %v3726 = vsel %vm3529, %v3722, 0
  %v3727 = vsel %vm3531, %v3726, 0
  %v3728 = vsel %vm3529, %v3685, 0
  %v3729 = vsel %vm3531, %v3728, %v3522
  %v3732 = vsel %vm3527, %v3523, 0
  %v3733 = vsel %vm3529, %v3732, 0
  %v3734 = vsel %vm3531, %v3733, 0
  %v3738 = vrot.slane %v3541, 4
  %v3739 = vrot.slane %v3544, 4
  %v3740 = vrot.slane %v3506, 4
  %v3743 = vrot.slane %v3557, 4
  %v3744 = vrot.slane %v3560, 4
  %v3745 = vrot.slane %v3507, 4
  %v3748 = vrot.slane %v3571, 4
  %v3749 = vrot.slane %v3574, 4
  %v3750 = vrot.slane %v3510, 4
  %v3753 = vrot.slane %v3590, 4
  %v3754 = vrot.slane %v3593, 4
  %v3755 = vrot.slane %v3511, 4
  %v3759 = vrot.slane %v3607, 4
  %v3760 = vrot.slane %v3611, 4
  %v3761 = vrot.slane 0, 4
  %v3764 = vrot.slane %v3627, 4
  %v3765 = vrot.slane %v3630, 4
  %v3766 = vrot.slane %v3515, 4
  %v3769 = vrot.slane %v3645, 4
  %v3770 = vrot.slane %v3648, 4
  %v3771 = vrot.slane %v3516, 4
  %v3774 = vrot.slane %v3660, 4
  %v3775 = vrot.slane %v3663, 4
  %v3776 = vrot.slane %v3519, 4
  %vm3777 = vcmask 1043456
  %v3779 = vsel %vm3777, %v3532, %v3738
  %v3782 = vsel %vm3777, %v3536, %v3739
  %v3785 = vsel %vm3777, %v3526, %v3740
  %v3787 = vsel %vm3777, %v3548, %v3743
  %v3790 = vsel %vm3777, %v3552, %v3744
  %v3793 = vsel %vm3777, %v3547, %v3745
  %v3795 = vsel %vm3777, %v3564, %v3748
  %v3798 = vsel %vm3777, %v3568, %v3749
  %v3801 = vsel %vm3777, 0, %v3750
  %v3803 = vsel %vm3777, %v3580, %v3753
  %v3806 = vsel %vm3777, %v3584, %v3754
  %v3809 = vsel %vm3777, %v3577, %v3755
  %v3811 = vsel %vm3777, %v3598, %v3759
  %v3814 = vsel %vm3777, %v3601, %v3760
  %v3817 = vsel %vm3777, %v3596, %v3761
  %v3819 = vsel %vm3777, %v3617, %v3764
  %v3822 = vsel %vm3777, %v3621, %v3765
  %v3825 = vsel %vm3777, %v3614, %v3766
  %v3827 = vsel %vm3777, %v3635, %v3769
  %v3830 = vsel %vm3777, %v3639, %v3770
  %v3833 = vsel %vm3777, %v3633, %v3771
  %v3835 = vsel %vm3777, %v3653, %v3774
  %v3838 = vsel %vm3777, %v3657, %v3775
  %v3841 = vsel %vm3777, 0, %v3776
  %v3844 = vrot.slane %v3679, 4
  %v3845 = vrot.slane %v3682, 4
  %v3846 = vrot.slane %v3520, 4
  %v3849 = vrot.slane %v3696, 4
  %v3850 = vrot.slane %v3700, 4
  %v3853 = vrot.slane %v3712, 4
  %v3854 = vrot.slane %v3714, 4
  %v3857 = vrot.slane %v3725, 4
  %v3858 = vrot.slane %v3727, 4
  %v3860 = vsel %vm3777, %v3669, %v3844
  %v3863 = vsel %vm3777, %v3673, %v3845
  %v3866 = vsel %vm3777, %v3666, %v3846
  %v3868 = vsel %vm3777, %v3687, %v3849
  %v3871 = vsel %vm3777, %v3690, %v3850
  %v3873 = vsel %vm3777, %v3685, %v3761
  %v3875 = vsel %vm3777, %v3703, %v3853
  %v3878 = vsel %vm3777, %v3706, %v3854
  %v3880 = vsel %vm3777, 0, %v3761
  %v3882 = vsel %vm3777, %v3716, %v3857
  %v3885 = vsel %vm3777, %v3719, %v3858
  %v3887 = vld [vmem:[%s3] sm:$0xf]
  %v3888 = vld [vmem:[%s3 + $0x4] sm:$0xf]
  %v3889 = vld [vmem:[%s3 + $0x8] sm:$0xf]
  %v3890 = vld [vmem:[%s3 + $0xc] sm:$0xf]
  %v3891 = vld [vmem:[%s3 + $0x10] sm:$0xf]
  %v3892 = vld [vmem:[%s3 + $0x14] sm:$0xf]
  %v3893 = vld [vmem:[%s3 + $0x18] sm:$0xf]
  %v3894 = vld [vmem:[%s3 + $0x1c] sm:$0xf]
  %v3895 = vld [vmem:[%s3 + $0x20] sm:$0xf]
  %v3896 = vld [vmem:[%s3 + $0x24] sm:$0xf]
  %v3897 = vld [vmem:[%s3 + $0x28] sm:$0xf]
  %v3898 = vld [vmem:[%s3 + $0x2c] sm:$0xf]
  %v3899 = vld [vmem:[%s3 + $0x30] sm:$0xf]
  %v3900 = vld [vmem:[%s3 + $0x34] sm:$0xf]
  %v3901 = vld [vmem:[%s3 + $0x38] sm:$0xf]
  %v3902 = vld [vmem:[%s3 + $0x3c] sm:$0xf]
  %v3903 = vld [vmem:[%s3 + $0x40] sm:$0xf]
  %v3904 = vld [vmem:[%s3 + $0x44] sm:$0xf]
  %v3905 = vld [vmem:[%s3 + $0x48] sm:$0xf]
  %v3906 = vld [vmem:[%s3 + $0x4c] sm:$0xf]
  %v3907 = vld [vmem:[%s3 + $0x50] sm:$0xf]
  %v3908 = vld [vmem:[%s3 + $0x54] sm:$0xf]
  %v3909 = vld [vmem:[%s3 + $0x58] sm:$0xf]
  %v3910 = vld [vmem:[%s3 + $0x5c] sm:$0xf]
  %v3911 = vld [vmem:[%s3 + $0x60] sm:$0xf]
  %v3912 = vld [vmem:[%s3 + $0x64] sm:$0xf]
  %v3913 = vld [vmem:[%s3 + $0x68] sm:$0xf]
  %v3914 = vld [vmem:[%s3 + $0x6c] sm:$0xf]
  %v3915 = vld [vmem:[%s3 + $0x70] sm:$0xf]
  %v3916 = vld [vmem:[%s3 + $0x74] sm:$0xf]
  %v3917 = vld [vmem:[%s3 + $0x78] sm:$0xf]
  %v3918 = vld [vmem:[%s3 + $0x7c] sm:$0xf]
  %v3919 = vld [vmem:[%s3 + $0x80] sm:$0xf]
  %v3920 = vld [vmem:[%s3 + $0x84] sm:$0xf]
  %v3921 = vld [vmem:[%s3 + $0x88] sm:$0xf]
  %v3922 = vld [vmem:[%s3 + $0x8c] sm:$0xf]
  %v3923 = vld [vmem:[%s4] sm:$0x1]
  %v3925 = vlaneseq
  %v3926 = vshrl.u32 %v3925, 7
  %v3927 = vsub.s32 0, %v3926
  %v3928 = vrot.slane %v3923, %v3927
  %v3966 = vunpack.c.l.b16 %v3887
  %v3967 = vunpack.c.l.b16 %v3888
  %v3968 = vunpack.c.l.b16 %v3889
  %v3969 = vunpack.c.l.b16 %v3890
  %v3970 = vunpack.c.l.b16 %v3891
  %v3971 = vunpack.c.l.b16 %v3892
  %v3972 = vunpack.c.l.b16 %v3893
  %v3973 = vunpack.c.l.b16 %v3894
  %v3974 = vunpack.c.l.b16 %v3895
  %v3975 = vunpack.c.l.b16 %v3896
  %v3976 = vunpack.c.l.b16 %v3897
  %v3977 = vunpack.c.l.b16 %v3898
  %v3978 = vunpack.c.l.b16 %v3899
  %v3979 = vunpack.c.l.b16 %v3900
  %v3980 = vunpack.c.l.b16 %v3901
  %v3981 = vunpack.c.l.b16 %v3902
  %v3982 = vunpack.c.l.b16 %v3903
  %v3983 = vunpack.c.l.b16 %v3904
  %v3984 = vunpack.c.l.b16 %v3905
  %v3985 = vunpack.c.l.b16 %v3906
  %v3986 = vunpack.c.l.b16 %v3907
  %v3987 = vunpack.c.l.b16 %v3908
  %v3988 = vunpack.c.l.b16 %v3909
  %v3989 = vunpack.c.l.b16 %v3910
  %v3990 = vunpack.c.l.b16 %v3911
  %v3991 = vunpack.c.l.b16 %v3912
  %v3992 = vunpack.c.l.b16 %v3913
  %v3993 = vunpack.c.l.b16 %v3914
  %v3994 = vunpack.c.l.b16 %v3915
  %v3995 = vunpack.c.l.b16 %v3916
  %v3996 = vunpack.c.l.b16 %v3917
  %v3997 = vunpack.c.l.b16 %v3918
  %v3998 = vunpack.c.l.b16 %v3919
  %v3999 = vunpack.c.l.b16 %v3920
  %v4000 = vunpack.c.l.b16 %v3921
  %v4001 = vunpack.c.l.b16 %v3922
  %v4002 = vpack.c.b16 %v3967, %v3966
  %v4003 = vpack.c.b16 %v3969, %v3968
  %v4004 = vpack.c.b16 %v3971, %v3970
  %v4005 = vpack.c.b16 %v3973, %v3972
  %v4006 = vpack.c.b16 %v3975, %v3974
  %v4007 = vpack.c.b16 %v3977, %v3976
  %v4008 = vpack.c.b16 %v3979, %v3978
  %v4009 = vpack.c.b16 %v3981, %v3980
  %v4010 = vpack.c.b16 %v3983, %v3982
  %v4011 = vpack.c.b16 %v3985, %v3984
  %v4012 = vpack.c.b16 %v3987, %v3986
  %v4013 = vpack.c.b16 %v3989, %v3988
  %v4014 = vpack.c.b16 %v3991, %v3990
  %v4015 = vpack.c.b16 %v3993, %v3992
  %v4016 = vpack.c.b16 %v3995, %v3994
  %v4017 = vpack.c.b16 %v3997, %v3996
  %v4018 = vpack.c.b16 %v3999, %v3998
  %v4019 = vpack.c.b16 %v4001, %v4000
  %v4038 = vsel %vm3527, %v3785, 0
  %v4040 = vsel %vm3527, %v3793, 0
  %v4042 = vsel %vm3527, %v3801, 0
  %v4044 = vsel %vm3527, %v3809, 0
  %v4046 = vsel %vm3527, %v3817, 0
  %v4048 = vsel %vm3527, %v3825, 0
  %v4050 = vsel %vm3527, %v3833, 0
  %v4052 = vsel %vm3527, %v3841, 0
  %v4054 = vsel %vm3527, %v3866, 0
  %v4056 = vsel %vm3527, %v3873, 0
  %v4058 = vsel %vm3527, %v3880, 0
  %v4060 = vsel %vm3527, 0, 0
  %4062 = vmatprep.subr.bf16.mxu0 0
  %4063 = vmatpush1.bf16.msra.mxu0 %v4002
  %4064 = vmatprep.subr.bf16.mxu0 0
  %4065 = vmatpush1.bf16.msra.mxu0 %v4003
  %4066 = vmatprep.subr.bf16.mxu0 0
  %4067 = vmatpush1.bf16.msra.mxu0 %v4004
  %4068 = vmatprep.subr.bf16.mxu0 0
  %4069 = vmatpush1.bf16.msra.mxu0 %v4005
  %4070 = vmatprep.subr.bf16.mxu0 0
  %4071 = vmatpush1.bf16.msra.mxu0 %v4006
  %4072 = vmatprep.subr.bf16.mxu0 0
  %4073 = vmatpush1.bf16.msra.mxu0 %v4007
  %4074 = vmatprep.subr.bf16.mxu0 0
  %4075 = vmatpush1.bf16.msra.mxu0 %v4008
  %4076 = vmatprep.subr.bf16.mxu0 0
  %4077 = vmatpush1.bf16.msra.mxu0 %v4009
  %4078 = vmatprep.subr.bf16.mxu0 0
  %4079 = vmatpush1.bf16.msra.mxu0 %v4010
  %4080 = vmatprep.subr.bf16.mxu0 0
  %4081 = vmatpush1.bf16.msra.mxu0 %v4011
  %4082 = vmatprep.subr.bf16.mxu0 0
  %4083 = vmatpush1.bf16.msra.mxu0 %v4012
  %4084 = vmatprep.subr.bf16.mxu0 0
  %4085 = vmatpush1.bf16.msra.mxu0 %v4013
  %4086 = vmatprep.subr.bf16.mxu0 0
  %4087 = vmatpush1.bf16.msra.mxu0 %v4014
  %4088 = vmatprep.subr.bf16.mxu0 0
  %4089 = vmatpush1.bf16.msra.mxu0 %v4015
  %4090 = vmatprep.subr.bf16.mxu0 0
  %4091 = vmatpush1.bf16.msra.mxu0 %v4016
  %4092 = vmatprep.subr.bf16.mxu0 0
  %4093 = vmatpush1.bf16.msra.mxu0 %v4017
  %4094 = vmatprep.mubr.bf16.mxu0 %v3782
  %4095 = vmatmul.mubr.bf16.gmra.mrb[0].mxu0 %v3779
  %v4096 = vpop.f32.mrb[0].mxu0
  %v4097 = vadd.f32 %v3928, %v4096
  %v4098 = vpop.f32.mrb[0].mxu0
  %v4099 = vpop.f32.mrb[0].mxu0
  %v4100 = vadd.f32 %v3928, %v4099
  %v4101 = vpop.f32.mrb[0].mxu0
  %4102 = vmatprep.mubr.bf16.mxu0 %v3790
  %4103 = vmatmul.mubr.bf16.gmra.mrb[0].mxu0 %v3787
  %v4104 = vpop.f32.mrb[0].mxu0
  %v4105 = vadd.f32 %v3928, %v4104
  %v4106 = vpop.f32.mrb[0].mxu0
  %v4107 = vpop.f32.mrb[0].mxu0
  %v4108 = vadd.f32 %v3928, %v4107
  %v4109 = vpop.f32.mrb[0].mxu0
  %4110 = vmatprep.mubr.bf16.mxu0 %v3798
  %4111 = vmatmul.mubr.bf16.gmra.mrb[0].mxu0 %v3795
  %v4112 = vpop.f32.mrb[0].mxu0
  %v4113 = vadd.f32 %v3928, %v4112
  %v4114 = vpop.f32.mrb[0].mxu0
  %v4115 = vpop.f32.mrb[0].mxu0
  %v4116 = vadd.f32 %v3928, %v4115
  %v4117 = vpop.f32.mrb[0].mxu0
  %4118 = vmatprep.mubr.bf16.mxu0 %v3806
  %4119 = vmatmul.mubr.bf16.gmra.mrb[0].mxu0 %v3803
  %v4120 = vpop.f32.mrb[0].mxu0
  %v4121 = vadd.f32 %v3928, %v4120
  %v4122 = vpop.f32.mrb[0].mxu0
  %v4123 = vpop.f32.mrb[0].mxu0
  %v4124 = vadd.f32 %v3928, %v4123
  %v4125 = vpop.f32.mrb[0].mxu0
  %4126 = vmatprep.mubr.bf16.mxu0 %v3814
  %4127 = vmatmul.mubr.bf16.gmra.mrb[0].mxu0 %v3811
  %v4128 = vpop.f32.mrb[0].mxu0
  %v4129 = vadd.f32 %v3928, %v4128
  %v4130 = vpop.f32.mrb[0].mxu0
  %v4131 = vpop.f32.mrb[0].mxu0
  %v4132 = vadd.f32 %v3928, %v4131
  %v4133 = vpop.f32.mrb[0].mxu0
  %4134 = vmatprep.mubr.bf16.mxu0 %v3822
  %4135 = vmatmul.mubr.bf16.gmra.mrb[0].mxu0 %v3819
  %v4136 = vpop.f32.mrb[0].mxu0
  %v4137 = vadd.f32 %v3928, %v4136
  %v4138 = vpop.f32.mrb[0].mxu0
  %v4139 = vpop.f32.mrb[0].mxu0
  %v4140 = vadd.f32 %v3928, %v4139
  %v4141 = vpop.f32.mrb[0].mxu0
  %4142 = vmatprep.mubr.bf16.mxu0 %v3830
  %4143 = vmatmul.mubr.bf16.gmra.mrb[0].mxu0 %v3827
  %v4144 = vpop.f32.mrb[0].mxu0
  %v4145 = vadd.f32 %v3928, %v4144
  %v4146 = vpop.f32.mrb[0].mxu0
  %v4147 = vpop.f32.mrb[0].mxu0
  %v4148 = vadd.f32 %v3928, %v4147
  %v4149 = vpop.f32.mrb[0].mxu0
  %4150 = vmatprep.mubr.bf16.mxu0 %v3838
  %4151 = vmatmul.mubr.bf16.gmra.mrb[0].mxu0 %v3835
  %v4152 = vpop.f32.mrb[0].mxu0
  %v4153 = vadd.f32 %v3928, %v4152
  %v4154 = vpop.f32.mrb[0].mxu0
  %v4155 = vpop.f32.mrb[0].mxu0
  %v4156 = vadd.f32 %v3928, %v4155
  %v4157 = vpop.f32.mrb[0].mxu0
  %4158 = vmatprep.mubr.bf16.mxu0 %v3863
  %4159 = vmatmul.mubr.bf16.gmra.mrb[0].mxu0 %v3860
  %v4160 = vpop.f32.mrb[0].mxu0
  %v4161 = vadd.f32 %v3928, %v4160
  %v4162 = vpop.f32.mrb[0].mxu0
  %v4163 = vpop.f32.mrb[0].mxu0
  %v4164 = vadd.f32 %v3928, %v4163
  %v4165 = vpop.f32.mrb[0].mxu0
  %4166 = vmatprep.mubr.bf16.mxu0 %v3871
  %4167 = vmatmul.mubr.bf16.gmra.mrb[0].mxu0 %v3868
  %v4168 = vpop.f32.mrb[0].mxu0
  %v4169 = vadd.f32 %v3928, %v4168
  %v4170 = vpop.f32.mrb[0].mxu0
  %v4171 = vpop.f32.mrb[0].mxu0
  %v4172 = vadd.f32 %v3928, %v4171
  %v4173 = vpop.f32.mrb[0].mxu0
  %4174 = vmatprep.mubr.bf16.mxu0 %v3878
  %4175 = vmatmul.mubr.bf16.gmra.mrb[0].mxu0 %v3875
  %v4176 = vpop.f32.mrb[0].mxu0
  %v4177 = vadd.f32 %v3928, %v4176
  %v4178 = vpop.f32.mrb[0].mxu0
  %v4179 = vpop.f32.mrb[0].mxu0
  %v4180 = vadd.f32 %v3928, %v4179
  %v4181 = vpop.f32.mrb[0].mxu0
  %4182 = vmatprep.mubr.bf16.mxu0 %v3885
  %4183 = vmatmul.mubr.bf16.gmra.mrb[0].mxu0 %v3882
  %v4184 = vpop.f32.mrb[0].mxu0
  %v4185 = vadd.f32 %v3928, %v4184
  %v4186 = vpop.f32.mrb[0].mxu0
  %v4187 = vpop.f32.mrb[0].mxu0
  %v4188 = vadd.f32 %v3928, %v4187
  %v4189 = vpop.f32.mrb[0].mxu0
  %4190 = vmatprep.mubr.bf16.mxu0 %v3734
  %4191 = vmatmul.mubr.bf16.gmra.mrb[0].mxu0 %v3729
  %v4192 = vpop.f32.mrb[0].mxu0
  %v4193 = vadd.f32 %v3928, %v4192
  %v4194 = vpop.f32.mrb[0].mxu0
  %v4195 = vpop.f32.mrb[0].mxu0
  %v4196 = vpop.f32.mrb[0].mxu0
  %4197 = vdwg.mxu0
  %4198 = vmatprep.subr.bf16.mxu0 0
  %4199 = vmatpush1.bf16.msra.mxu0 %v4018
  %4200 = vmatprep.subr.bf16.mxu0 0
  %4201 = vmatpush1.bf16.msra.mxu0 %v4019
  %4202 = vmatprep.subr.bf16.mxu0 0
  %4203 = vmatpush1.bf16.msra.mxu0 0
  %4204 = vmatprep.subr.bf16.mxu0 0
  %4205 = vmatpush1.bf16.msra.mxu0 0
  %4206 = vmatprep.subr.bf16.mxu0 0
  %4207 = vmatpush1.bf16.msra.mxu0 0
  %4208 = vmatprep.subr.bf16.mxu0 0
  %4209 = vmatpush1.bf16.msra.mxu0 0
  %4210 = vmatprep.subr.bf16.mxu0 0
  %4211 = vmatpush1.bf16.msra.mxu0 0
  %4212 = vmatprep.subr.bf16.mxu0 0
  %4213 = vmatpush1.bf16.msra.mxu0 0
  %4214 = vmatprep.subr.bf16.mxu0 0
  %4215 = vmatpush1.bf16.msra.mxu0 0
  %4216 = vmatprep.subr.bf16.mxu0 0
  %4217 = vmatpush1.bf16.msra.mxu0 0
  %4218 = vmatprep.subr.bf16.mxu0 0
  %4219 = vmatpush1.bf16.msra.mxu0 0
  %4220 = vmatprep.subr.bf16.mxu0 0
  %4221 = vmatpush1.bf16.msra.mxu0 0
  %4222 = vmatprep.subr.bf16.mxu0 0
  %4223 = vmatpush1.bf16.msra.mxu0 0
  %4224 = vmatprep.subr.bf16.mxu0 0
  %4225 = vmatpush1.bf16.msra.mxu0 0
  %4226 = vmatprep.subr.bf16.mxu0 0
  %4227 = vmatpush1.bf16.msra.mxu0 0
  %4228 = vmatprep.subr.bf16.mxu0 0
  %4229 = vmatpush1.bf16.msra.mxu0 0
  %4230 = vmatprep.mubr.bf16.mxu0 0
  %4231 = vmatmul.mubr.bf16.gmra.mrb[0].mxu0 %v4038
  %v4232 = vpop.f32.mrb[0].mxu0
  %v4233 = vadd.f32 %v4097, %v4232
  %v4234 = vpop.f32.mrb[0].mxu0
  %v4235 = vpop.f32.mrb[0].mxu0
  %v4236 = vadd.f32 %v4100, %v4235
  %v4237 = vpop.f32.mrb[0].mxu0
  %4238 = vmatprep.mubr.bf16.mxu0 0
  %4239 = vmatmul.mubr.bf16.gmra.mrb[0].mxu0 %v4040
  %v4240 = vpop.f32.mrb[0].mxu0
  %v4241 = vadd.f32 %v4105, %v4240
  %v4242 = vpop.f32.mrb[0].mxu0
  %v4243 = vpop.f32.mrb[0].mxu0
  %v4244 = vadd.f32 %v4108, %v4243
  %v4245 = vpop.f32.mrb[0].mxu0
  %4246 = vmatprep.mubr.bf16.mxu0 0
  %4247 = vmatmul.mubr.bf16.gmra.mrb[0].mxu0 %v4042
  %v4248 = vpop.f32.mrb[0].mxu0
  %v4249 = vadd.f32 %v4113, %v4248
  %v4250 = vpop.f32.mrb[0].mxu0
  %v4251 = vpop.f32.mrb[0].mxu0
  %v4252 = vadd.f32 %v4116, %v4251
  %v4253 = vpop.f32.mrb[0].mxu0
  %4254 = vmatprep.mubr.bf16.mxu0 0
  %4255 = vmatmul.mubr.bf16.gmra.mrb[0].mxu0 %v4044
  %v4256 = vpop.f32.mrb[0].mxu0
  %v4257 = vadd.f32 %v4121, %v4256
  %v4258 = vpop.f32.mrb[0].mxu0
  %v4259 = vpop.f32.mrb[0].mxu0
  %v4260 = vadd.f32 %v4124, %v4259
  %v4261 = vpop.f32.mrb[0].mxu0
  %4262 = vmatprep.mubr.bf16.mxu0 0
  %4263 = vmatmul.mubr.bf16.gmra.mrb[0].mxu0 %v4046
  %v4264 = vpop.f32.mrb[0].mxu0
  %v4265 = vadd.f32 %v4129, %v4264
  %v4266 = vpop.f32.mrb[0].mxu0
  %v4267 = vpop.f32.mrb[0].mxu0
  %v4268 = vadd.f32 %v4132, %v4267
  %v4269 = vpop.f32.mrb[0].mxu0
  %4270 = vmatprep.mubr.bf16.mxu0 0
  %4271 = vmatmul.mubr.bf16.gmra.mrb[0].mxu0 %v4048
  %v4272 = vpop.f32.mrb[0].mxu0
  %v4273 = vadd.f32 %v4137, %v4272
  %v4274 = vpop.f32.mrb[0].mxu0
  %v4275 = vpop.f32.mrb[0].mxu0
  %v4276 = vadd.f32 %v4140, %v4275
  %v4277 = vpop.f32.mrb[0].mxu0
  %4278 = vmatprep.mubr.bf16.mxu0 0
  %4279 = vmatmul.mubr.bf16.gmra.mrb[0].mxu0 %v4050
  %v4280 = vpop.f32.mrb[0].mxu0
  %v4281 = vadd.f32 %v4145, %v4280
  %v4282 = vpop.f32.mrb[0].mxu0
  %v4283 = vpop.f32.mrb[0].mxu0
  %v4284 = vadd.f32 %v4148, %v4283
  %v4285 = vpop.f32.mrb[0].mxu0
  %4286 = vmatprep.mubr.bf16.mxu0 0
  %4287 = vmatmul.mubr.bf16.gmra.mrb[0].mxu0 %v4052
  %v4288 = vpop.f32.mrb[0].mxu0
  %v4289 = vadd.f32 %v4153, %v4288
  %v4290 = vpop.f32.mrb[0].mxu0
  %v4291 = vpop.f32.mrb[0].mxu0
  %v4292 = vadd.f32 %v4156, %v4291
  %v4293 = vpop.f32.mrb[0].mxu0
  %4294 = vmatprep.mubr.bf16.mxu0 0
  %4295 = vmatmul.mubr.bf16.gmra.mrb[0].mxu0 %v4054
  %v4296 = vpop.f32.mrb[0].mxu0
  %v4297 = vadd.f32 %v4161, %v4296
  %v4298 = vpop.f32.mrb[0].mxu0
  %v4299 = vpop.f32.mrb[0].mxu0
  %v4300 = vadd.f32 %v4164, %v4299
  %v4301 = vpop.f32.mrb[0].mxu0
  %4302 = vmatprep.mubr.bf16.mxu0 0
  %4303 = vmatmul.mubr.bf16.gmra.mrb[0].mxu0 %v4056
  %v4304 = vpop.f32.mrb[0].mxu0
  %v4305 = vadd.f32 %v4169, %v4304
  %v4306 = vpop.f32.mrb[0].mxu0
  %v4307 = vpop.f32.mrb[0].mxu0
  %v4308 = vadd.f32 %v4172, %v4307
  %v4309 = vpop.f32.mrb[0].mxu0
  %4310 = vmatprep.mubr.bf16.mxu0 0
  %4311 = vmatmul.mubr.bf16.gmra.mrb[0].mxu0 %v4058
  %v4312 = vpop.f32.mrb[0].mxu0
  %v4313 = vadd.f32 %v4177, %v4312
  %v4314 = vpop.f32.mrb[0].mxu0
  %v4315 = vpop.f32.mrb[0].mxu0
  %v4316 = vadd.f32 %v4180, %v4315
  %v4317 = vpop.f32.mrb[0].mxu0
  %4318 = vmatprep.mubr.bf16.mxu0 0
  %4319 = vmatmul.mubr.bf16.gmra.mrb[0].mxu0 %v4058
  %v4320 = vpop.f32.mrb[0].mxu0
  %v4321 = vadd.f32 %v4185, %v4320
  %v4322 = vpop.f32.mrb[0].mxu0
  %v4323 = vpop.f32.mrb[0].mxu0
  %v4324 = vadd.f32 %v4188, %v4323
  %v4325 = vpop.f32.mrb[0].mxu0
  %4326 = vmatprep.mubr.bf16.mxu0 0
  %4327 = vmatmul.mubr.bf16.gmra.mrb[0].mxu0 %v4060
  %v4328 = vpop.f32.mrb[0].mxu0
  %v4329 = vadd.f32 %v4193, %v4328
  %v4330 = vpop.f32.mrb[0].mxu0
  %v4331 = vpop.f32.mrb[0].mxu0
  %v4332 = vpop.f32.mrb[0].mxu0
  %4333 = vdwg.mxu0
  %v4334 = vmax.f32 %v4233, 0.0
  %v4335 = vmax.f32 %v4236, 0.0
  %v4336 = vmax.f32 %v4241, 0.0
  %v4337 = vmax.f32 %v4244, 0.0
  %v4338 = vmax.f32 %v4249, 0.0
  %v4339 = vmax.f32 %v4252, 0.0
  %v4340 = vmax.f32 %v4257, 0.0
  %v4341 = vmax.f32 %v4260, 0.0
  %v4342 = vmax.f32 %v4265, 0.0
  %v4343 = vmax.f32 %v4268, 0.0
  %v4344 = vmax.f32 %v4273, 0.0
  %v4345 = vmax.f32 %v4276, 0.0
  %v4346 = vmax.f32 %v4281, 0.0
  %v4347 = vmax.f32 %v4284, 0.0
  %v4348 = vmax.f32 %v4289, 0.0
  %v4349 = vmax.f32 %v4292, 0.0
  %v4350 = vmax.f32 %v4297, 0.0
  %v4351 = vmax.f32 %v4300, 0.0
  %v4352 = vmax.f32 %v4305, 0.0
  %v4353 = vmax.f32 %v4308, 0.0
  %v4354 = vmax.f32 %v4313, 0.0
  %v4355 = vmax.f32 %v4316, 0.0
  %v4356 = vmax.f32 %v4321, 0.0
  %v4357 = vmax.f32 %v4324, 0.0
  %v4358 = vmax.f32 %v4329, 0.0
  %v4359 = vpack.c.bf16 %v4335, %v4334
  %v4360 = vpack.c.bf16 %v4337, %v4336
  %v4361 = vpack.c.bf16 %v4339, %v4338
  %v4362 = vpack.c.bf16 %v4341, %v4340
  %v4363 = vpack.c.bf16 %v4343, %v4342
  %v4364 = vpack.c.bf16 %v4345, %v4344
  %v4365 = vpack.c.bf16 %v4347, %v4346
  %v4366 = vpack.c.bf16 %v4349, %v4348
  %v4367 = vpack.c.bf16 %v4351, %v4350
  %v4368 = vpack.c.bf16 %v4353, %v4352
  %v4369 = vpack.c.bf16 %v4355, %v4354
  %v4370 = vpack.c.bf16 %v4357, %v4356
  %v4371 = vpack.c.bf16 %v4358, %v4358
  %v4385 = vunpack.c.l.b16 %v4359
  %v4386 = vunpack.c.h.b16 %v4359
  %v4387 = vunpack.c.l.b16 %v4360
  %v4388 = vunpack.c.h.b16 %v4360
  %v4389 = vunpack.c.l.b16 %v4361
  %v4390 = vunpack.c.h.b16 %v4361
  %v4391 = vunpack.c.l.b16 %v4362
  %v4392 = vunpack.c.h.b16 %v4362
  %v4393 = vunpack.c.l.b16 %v4363
  %v4394 = vunpack.c.h.b16 %v4363
  %v4395 = vunpack.c.l.b16 %v4364
  %v4396 = vunpack.c.h.b16 %v4364
  %v4397 = vunpack.c.l.b16 %v4365
  %v4398 = vunpack.c.h.b16 %v4365
  %v4399 = vunpack.c.l.b16 %v4366
  %v4400 = vunpack.c.h.b16 %v4366
  %v4401 = vunpack.c.l.b16 %v4367
  %v4402 = vunpack.c.h.b16 %v4367
  %v4403 = vunpack.c.l.b16 %v4368
  %v4404 = vunpack.c.h.b16 %v4368
  %v4405 = vunpack.c.l.b16 %v4369
  %v4406 = vunpack.c.h.b16 %v4369
  %v4407 = vunpack.c.l.b16 %v4370
  %v4408 = vunpack.c.h.b16 %v4370
  %v4409 = vunpack.c.l.b16 %v4371
  %v4410 = vpack.c.b16 %v4385, %v4385
  %v4411 = vpack.c.b16 %v4387, %v4387
  %v4412 = vpack.c.b16 %v4389, %v4389
  %v4413 = vpack.c.b16 %v4391, %v4391
  %v4414 = vpack.c.b16 %v4393, %v4393
  %v4415 = vpack.c.b16 %v4395, %v4395
  %v4416 = vpack.c.b16 %v4397, %v4397
  %v4417 = vpack.c.b16 %v4399, %v4399
  %v4418 = vpack.c.b16 %v4401, %v4401
  %v4419 = vpack.c.b16 %v4403, %v4403
  %v4420 = vpack.c.b16 %v4405, %v4405
  %v4421 = vpack.c.b16 %v4407, %v4407
  %v4422 = vpack.c.b16 %v4409, %v4409
  %v4423 = vpack.c.b16 %v4386, %v4386
  %4424 = vrot.lane.b32.xlu0 %v4423, 64
  %v4425 = vpop.permute.xlu0 %4424
  %v4426 = vpack.c.b16 %v4388, %v4388
  %4427 = vrot.lane.b32.xlu0 %v4426, 64
  %v4428 = vpop.permute.xlu0 %4427
  %v4429 = vpack.c.b16 %v4390, %v4390
  %4430 = vrot.lane.b32.xlu0 %v4429, 64
  %v4431 = vpop.permute.xlu0 %4430
  %v4432 = vpack.c.b16 %v4392, %v4392
  %4433 = vrot.lane.b32.xlu0 %v4432, 64
  %v4434 = vpop.permute.xlu0 %4433
  %v4435 = vpack.c.b16 %v4394, %v4394
  %4436 = vrot.lane.b32.xlu0 %v4435, 64
  %v4437 = vpop.permute.xlu0 %4436
  %v4438 = vpack.c.b16 %v4396, %v4396
  %4439 = vrot.lane.b32.xlu0 %v4438, 64
  %v4440 = vpop.permute.xlu0 %4439
  %v4441 = vpack.c.b16 %v4398, %v4398
  %4442 = vrot.lane.b32.xlu0 %v4441, 64
  %v4443 = vpop.permute.xlu0 %4442
  %v4444 = vpack.c.b16 %v4400, %v4400
  %4445 = vrot.lane.b32.xlu0 %v4444, 64
  %v4446 = vpop.permute.xlu0 %4445
  %v4449 = vsel %vm3529, %v4410, %v4425
  %v4453 = vsel %vm3529, %v4411, %v4428
  %v4457 = vsel %vm3529, %v4412, %v4431
  %v4461 = vsel %vm3529, %v4413, %v4434
  %v4465 = vsel %vm3529, %v4414, %v4437
  %v4469 = vsel %vm3529, %v4415, %v4440
  %v4473 = vsel %vm3529, %v4416, %v4443
  %v4477 = vsel %vm3529, %v4417, %v4446
  %v4479 = vpack.c.b16 %v4402, %v4402
  %4480 = vrot.lane.b32.xlu0 %v4479, 64
  %v4481 = vpop.permute.xlu0 %4480
  %v4482 = vpack.c.b16 %v4404, %v4404
  %4483 = vrot.lane.b32.xlu0 %v4482, 64
  %v4484 = vpop.permute.xlu0 %4483
  %v4485 = vpack.c.b16 %v4406, %v4406
  %4486 = vrot.lane.b32.xlu0 %v4485, 64
  %v4487 = vpop.permute.xlu0 %4486
  %v4488 = vpack.c.b16 %v4408, %v4408
  %4489 = vrot.lane.b32.xlu0 %v4488, 64
  %v4490 = vpop.permute.xlu0 %4489
  %v4493 = vsel %vm3529, %v4418, %v4481
  %v4497 = vsel %vm3529, %v4419, %v4484
  %v4501 = vsel %vm3529, %v4420, %v4487
  %v4505 = vsel %vm3529, %v4421, %v4490
  %v4507 = vld [vmem:[%s5] sm:$0xf]
  %v4508 = vld [vmem:[%s5 + $0x4] sm:$0xf]
  %v4509 = vld [vmem:[%s5 + $0x8] sm:$0xf]
  %v4510 = vld [vmem:[%s5 + $0xc] sm:$0xf]
  %v4511 = vld [vmem:[%s5 + $0x10] sm:$0xf]
  %v4512 = vld [vmem:[%s5 + $0x14] sm:$0xf]
  %v4513 = vld [vmem:[%s5 + $0x18] sm:$0xf]
  %v4514 = vld [vmem:[%s5 + $0x1c] sm:$0xf]
  %v4515 = vld [vmem:[%s5 + $0x20] sm:$0xf]
  %v4516 = vld [vmem:[%s5 + $0x24] sm:$0xf]
  %v4517 = vld [vmem:[%s5 + $0x28] sm:$0xf]
  %v4518 = vld [vmem:[%s5 + $0x2c] sm:$0xf]
  %v4519 = vld [vmem:[%s5 + $0x30] sm:$0xf]
  %v4520 = vld [vmem:[%s5 + $0x34] sm:$0xf]
  %v4521 = vld [vmem:[%s5 + $0x38] sm:$0xf]
  %v4522 = vld [vmem:[%s5 + $0x3c] sm:$0xf]
  %v4523 = vld [vmem:[%s5 + $0x40] sm:$0xf]
  %v4524 = vld [vmem:[%s5 + $0x44] sm:$0xf]
  %v4525 = vld [vmem:[%s5 + $0x48] sm:$0xf]
  %v4526 = vld [vmem:[%s5 + $0x4c] sm:$0xf]
  %v4527 = vld [vmem:[%s5 + $0x50] sm:$0xf]
  %v4528 = vld [vmem:[%s5 + $0x54] sm:$0xf]
  %v4529 = vld [vmem:[%s5 + $0x58] sm:$0xf]
  %v4530 = vld [vmem:[%s5 + $0x5c] sm:$0xf]
  %v4531 = vld [vmem:[%s5 + $0x60] sm:$0xf]
  %v4532 = vld [vmem:[%s5 + $0x64] sm:$0xf]
  %v4533 = vld [vmem:[%s5 + $0x68] sm:$0xf]
  %v4534 = vld [vmem:[%s5 + $0x6c] sm:$0xf]
  %v4535 = vld [vmem:[%s5 + $0x70] sm:$0xf]
  %v4536 = vld [vmem:[%s5 + $0x74] sm:$0xf]
  %v4537 = vld [vmem:[%s5 + $0x78] sm:$0xf]
  %v4538 = vld [vmem:[%s5 + $0x7c] sm:$0xf]
  %v4539 = vld [vmem:[%s5 + $0x80] sm:$0xf]
  %v4540 = vld [vmem:[%s5 + $0x84] sm:$0xf]
  %v4541 = vld [vmem:[%s5 + $0x88] sm:$0xf]
  %v4542 = vld [vmem:[%s5 + $0x8c] sm:$0xf]
  %v4543 = vld [vmem:[%s5 + $0x90] sm:$0xf]
  %v4544 = vld [vmem:[%s5 + $0x94] sm:$0xf]
  %v4545 = vld [vmem:[%s5 + $0x98] sm:$0xf]
  %v4546 = vld [vmem:[%s5 + $0x9c] sm:$0xf]
  %v4547 = vld [vmem:[%s5 + $0xa0] sm:$0xf]
  %v4548 = vld [vmem:[%s5 + $0xa4] sm:$0xf]
  %v4549 = vld [vmem:[%s5 + $0xa8] sm:$0xf]
  %v4550 = vld [vmem:[%s5 + $0xac] sm:$0xf]
  %v4551 = vld [vmem:[%s5 + $0xb0] sm:$0xf]
  %v4552 = vld [vmem:[%s5 + $0xb4] sm:$0xf]
  %v4553 = vld [vmem:[%s5 + $0xb8] sm:$0xf]
  %v4554 = vld [vmem:[%s5 + $0xbc] sm:$0xf]
  %v4555 = vld [vmem:[%s5 + $0xc0] sm:$0xf]
  %v4556 = vld [vmem:[%s5 + $0xc4] sm:$0xf]
  %v4557 = vld [vmem:[%s5 + $0xc8] sm:$0xf]
  %v4558 = vld [vmem:[%s5 + $0xcc] sm:$0xf]
  %v4559 = vld [vmem:[%s5 + $0xd0] sm:$0xf]
  %v4560 = vld [vmem:[%s5 + $0xd4] sm:$0xf]
  %v4561 = vld [vmem:[%s5 + $0xd8] sm:$0xf]
  %v4562 = vld [vmem:[%s5 + $0xdc] sm:$0xf]
  %v4563 = vld [vmem:[%s5 + $0xe0] sm:$0xf]
  %v4564 = vld [vmem:[%s5 + $0xe4] sm:$0xf]
  %v4565 = vld [vmem:[%s5 + $0xe8] sm:$0xf]
  %v4566 = vld [vmem:[%s5 + $0xec] sm:$0xf]
  %v4567 = vld [vmem:[%s5 + $0xf0] sm:$0xf]
  %v4568 = vld [vmem:[%s5 + $0xf4] sm:$0xf]
  %v4569 = vld [vmem:[%s5 + $0xf8] sm:$0xf]
  %v4570 = vld [vmem:[%s5 + $0xfc] sm:$0xf]
  %v4571 = vld [vmem:[%s5 + $0x100] sm:$0xf]
  %v4572 = vld [vmem:[%s5 + $0x104] sm:$0xf]
  %v4573 = vld [vmem:[%s5 + $0x108] sm:$0xf]
  %v4574 = vld [vmem:[%s5 + $0x10c] sm:$0xf]
  %v4575 = vld [vmem:[%s5 + $0x110] sm:$0xf]
  %v4576 = vld [vmem:[%s5 + $0x114] sm:$0xf]
  %v4577 = vld [vmem:[%s5 + $0x118] sm:$0xf]
  %v4578 = vld [vmem:[%s5 + $0x11c] sm:$0xf]
  %v4579 = vld [vmem:[%s5 + $0x120] sm:$0xf]
  %v4580 = vld [vmem:[%s5 + $0x124] sm:$0xf]
  %v4581 = vld [vmem:[%s5 + $0x128] sm:$0xf]
  %v4582 = vld [vmem:[%s5 + $0x12c] sm:$0xf]
  %v4583 = vld [vmem:[%s5 + $0x130] sm:$0xf]
  %v4584 = vld [vmem:[%s5 + $0x134] sm:$0xf]
  %v4585 = vld [vmem:[%s5 + $0x138] sm:$0xf]
  %v4586 = vld [vmem:[%s5 + $0x13c] sm:$0xf]
  %v4587 = vld [vmem:[%s5 + $0x140] sm:$0xf]
  %v4588 = vld [vmem:[%s5 + $0x144] sm:$0xf]
  %v4589 = vld [vmem:[%s5 + $0x148] sm:$0xf]
  %v4590 = vld [vmem:[%s5 + $0x14c] sm:$0xf]
  %v4591 = vld [vmem:[%s5 + $0x150] sm:$0xf]
  %v4592 = vld [vmem:[%s5 + $0x154] sm:$0xf]
  %v4593 = vld [vmem:[%s5 + $0x158] sm:$0xf]
  %v4594 = vld [vmem:[%s5 + $0x15c] sm:$0xf]
  %v4595 = vld [vmem:[%s5 + $0x160] sm:$0xf]
  %v4596 = vld [vmem:[%s5 + $0x164] sm:$0xf]
  %v4597 = vld [vmem:[%s5 + $0x168] sm:$0xf]
  %v4598 = vld [vmem:[%s5 + $0x16c] sm:$0xf]
  %v4599 = vld [vmem:[%s5 + $0x170] sm:$0xf]
  %v4600 = vld [vmem:[%s5 + $0x174] sm:$0xf]
  %v4601 = vld [vmem:[%s5 + $0x178] sm:$0xf]
  %v4602 = vld [vmem:[%s5 + $0x17c] sm:$0xf]
  %v4603 = vld [vmem:[%s5 + $0x180] sm:$0xf]
  %v4604 = vld [vmem:[%s5 + $0x184] sm:$0xf]
  %v4605 = vld [vmem:[%s5 + $0x188] sm:$0xf]
  %v4606 = vld [vmem:[%s5 + $0x18c] sm:$0xf]
  %v4607 = vld [vmem:[%s5 + $0x190] sm:$0xf]
  %v4608 = vld [vmem:[%s5 + $0x194] sm:$0xf]
  %v4609 = vld [vmem:[%s5 + $0x198] sm:$0xf]
  %v4610 = vld [vmem:[%s5 + $0x19c] sm:$0xf]
  %v4611 = vld [vmem:[%s5 + $0x1a0] sm:$0xf]
  %v4612 = vld [vmem:[%s5 + $0x1a4] sm:$0xf]
  %v4613 = vld [vmem:[%s5 + $0x1a8] sm:$0xf]
  %v4614 = vld [vmem:[%s5 + $0x1ac] sm:$0xf]
  %v4615 = vld [vmem:[%s5 + $0x1b0] sm:$0xf]
  %v4616 = vld [vmem:[%s5 + $0x1b4] sm:$0xf]
  %v4617 = vld [vmem:[%s5 + $0x1b8] sm:$0xf]
  %v4618 = vld [vmem:[%s5 + $0x1bc] sm:$0xf]
  %v4619 = vld [vmem:[%s5 + $0x1c0] sm:$0xf]
  %v4620 = vld [vmem:[%s5 + $0x1c4] sm:$0xf]
  %v4621 = vld [vmem:[%s5 + $0x1c8] sm:$0xf]
  %v4622 = vld [vmem:[%s5 + $0x1cc] sm:$0xf]
  %v4623 = vld [vmem:[%s5 + $0x1d0] sm:$0xf]
  %v4624 = vld [vmem:[%s5 + $0x1d4] sm:$0xf]
  %v4625 = vld [vmem:[%s5 + $0x1d8] sm:$0xf]
  %v4626 = vld [vmem:[%s5 + $0x1dc] sm:$0xf]
  %v4627 = vld [vmem:[%s5 + $0x1e0] sm:$0xf]
  %v4628 = vld [vmem:[%s5 + $0x1e4] sm:$0xf]
  %v4629 = vld [vmem:[%s5 + $0x1e8] sm:$0xf]
  %v4630 = vld [vmem:[%s5 + $0x1ec] sm:$0xf]
  %v4631 = vld [vmem:[%s5 + $0x1f0] sm:$0xf]
  %v4632 = vld [vmem:[%s5 + $0x1f4] sm:$0xf]
  %v4633 = vld [vmem:[%s5 + $0x1f8] sm:$0xf]
  %v4634 = vld [vmem:[%s5 + $0x1fc] sm:$0xf]
  %v4635 = vld [vmem:[%s5 + $0x200] sm:$0xf]
  %v4636 = vld [vmem:[%s5 + $0x204] sm:$0xf]
  %v4637 = vld [vmem:[%s5 + $0x208] sm:$0xf]
  %v4638 = vld [vmem:[%s5 + $0x20c] sm:$0xf]
  %v4639 = vld [vmem:[%s5 + $0x210] sm:$0xf]
  %v4640 = vld [vmem:[%s5 + $0x214] sm:$0xf]
  %v4641 = vld [vmem:[%s5 + $0x218] sm:$0xf]
  %v4642 = vld [vmem:[%s5 + $0x21c] sm:$0xf]
  %v4643 = vld [vmem:[%s5 + $0x220] sm:$0xf]
  %v4644 = vld [vmem:[%s5 + $0x224] sm:$0xf]
  %v4645 = vld [vmem:[%s5 + $0x228] sm:$0xf]
  %v4646 = vld [vmem:[%s5 + $0x22c] sm:$0xf]
  %v4647 = vld [vmem:[%s5 + $0x230] sm:$0xf]
  %v4648 = vld [vmem:[%s5 + $0x234] sm:$0xf]
  %v4649 = vld [vmem:[%s5 + $0x238] sm:$0xf]
  %v4650 = vld [vmem:[%s5 + $0x23c] sm:$0xf]
  %v4651 = vld [vmem:[%s5 + $0x240] sm:$0xf]
  %v4652 = vld [vmem:[%s5 + $0x244] sm:$0xf]
  %v4653 = vld [vmem:[%s5 + $0x248] sm:$0xf]
  %v4654 = vld [vmem:[%s5 + $0x24c] sm:$0xf]
  %v4655 = vld [vmem:[%s5 + $0x250] sm:$0xf]
  %v4656 = vld [vmem:[%s5 + $0x254] sm:$0xf]
  %v4657 = vld [vmem:[%s5 + $0x258] sm:$0xf]
  %v4658 = vld [vmem:[%s5 + $0x25c] sm:$0xf]
  %v4659 = vld [vmem:[%s5 + $0x260] sm:$0xf]
  %v4660 = vld [vmem:[%s5 + $0x264] sm:$0xf]
  %v4661 = vld [vmem:[%s5 + $0x268] sm:$0xf]
  %v4662 = vld [vmem:[%s5 + $0x26c] sm:$0xf]
  %v4663 = vld [vmem:[%s5 + $0x270] sm:$0xf]
  %v4664 = vld [vmem:[%s5 + $0x274] sm:$0xf]
  %v4665 = vld [vmem:[%s5 + $0x278] sm:$0xf]
  %v4666 = vld [vmem:[%s5 + $0x27c] sm:$0xf]
  %v4667 = vld [vmem:[%s5 + $0x280] sm:$0xf]
  %v4668 = vld [vmem:[%s5 + $0x284] sm:$0xf]
  %v4669 = vld [vmem:[%s5 + $0x288] sm:$0xf]
  %v4670 = vld [vmem:[%s5 + $0x28c] sm:$0xf]
  %v4671 = vld [vmem:[%s5 + $0x290] sm:$0xf]
  %v4672 = vld [vmem:[%s5 + $0x294] sm:$0xf]
  %v4673 = vld [vmem:[%s5 + $0x298] sm:$0xf]
  %v4674 = vld [vmem:[%s5 + $0x29c] sm:$0xf]
  %v4675 = vld [vmem:[%s5 + $0x2a0] sm:$0xf]
  %v4676 = vld [vmem:[%s5 + $0x2a4] sm:$0xf]
  %v4677 = vld [vmem:[%s5 + $0x2a8] sm:$0xf]
  %v4678 = vld [vmem:[%s5 + $0x2ac] sm:$0xf]
  %v4679 = vld [vmem:[%s5 + $0x2b0] sm:$0xf]
  %v4680 = vld [vmem:[%s5 + $0x2b4] sm:$0xf]
  %v4681 = vld [vmem:[%s5 + $0x2b8] sm:$0xf]
  %v4682 = vld [vmem:[%s5 + $0x2bc] sm:$0xf]
  %v4683 = vld [vmem:[%s5 + $0x2c0] sm:$0xf]
  %v4684 = vld [vmem:[%s5 + $0x2c4] sm:$0xf]
  %v4685 = vld [vmem:[%s5 + $0x2c8] sm:$0xf]
  %v4686 = vld [vmem:[%s5 + $0x2cc] sm:$0xf]
  %v4687 = vld [vmem:[%s5 + $0x2d0] sm:$0xf]
  %v4688 = vld [vmem:[%s5 + $0x2d4] sm:$0xf]
  %v4689 = vld [vmem:[%s5 + $0x2d8] sm:$0xf]
  %v4690 = vld [vmem:[%s5 + $0x2dc] sm:$0xf]
  %v4691 = vld [vmem:[%s5 + $0x2e0] sm:$0xf]
  %v4692 = vld [vmem:[%s5 + $0x2e4] sm:$0xf]
  %v4693 = vld [vmem:[%s5 + $0x2e8] sm:$0xf]
  %v4694 = vld [vmem:[%s5 + $0x2ec] sm:$0xf]
  %v4695 = vld [vmem:[%s5 + $0x2f0] sm:$0xf]
  %v4696 = vld [vmem:[%s5 + $0x2f4] sm:$0xf]
  %v4697 = vld [vmem:[%s5 + $0x2f8] sm:$0xf]
  %v4698 = vld [vmem:[%s5 + $0x2fc] sm:$0xf]
  %v4699 = vld [vmem:[%s5 + $0x300] sm:$0xf]
  %v4700 = vld [vmem:[%s5 + $0x304] sm:$0xf]
  %v4701 = vld [vmem:[%s5 + $0x308] sm:$0xf]
  %v4702 = vld [vmem:[%s5 + $0x30c] sm:$0xf]
  %v4703 = vld [vmem:[%s5 + $0x310] sm:$0xf]
  %v4704 = vld [vmem:[%s5 + $0x314] sm:$0xf]
  %v4705 = vld [vmem:[%s5 + $0x318] sm:$0xf]
  %v4706 = vld [vmem:[%s5 + $0x31c] sm:$0xf]
  %v4707 = vld [vmem:[%s6] sm:$0x1]
  %v4709 = vlaneseq
  %v4710 = vshrl.u32 %v4709, 7
  %v4711 = vsub.s32 0, %v4710
  %v4712 = vrot.slane %v4707, %v4711
  %v4914 = vunpack.c.l.b16 %v4507
  %v4915 = vunpack.c.l.b16 %v4508
  %v4916 = vunpack.c.l.b16 %v4509
  %v4917 = vunpack.c.l.b16 %v4510
  %v4918 = vunpack.c.l.b16 %v4511
  %v4919 = vunpack.c.l.b16 %v4512
  %v4920 = vunpack.c.l.b16 %v4513
  %v4921 = vunpack.c.l.b16 %v4514
  %v4922 = vunpack.c.l.b16 %v4515
  %v4923 = vunpack.c.l.b16 %v4516
  %v4924 = vunpack.c.l.b16 %v4517
  %v4925 = vunpack.c.l.b16 %v4518
  %v4926 = vunpack.c.l.b16 %v4519
  %v4927 = vunpack.c.l.b16 %v4520
  %v4928 = vunpack.c.l.b16 %v4521
  %v4929 = vunpack.c.l.b16 %v4522
  %v4930 = vunpack.c.l.b16 %v4523
  %v4931 = vunpack.c.l.b16 %v4524
  %v4932 = vunpack.c.l.b16 %v4525
  %v4933 = vunpack.c.l.b16 %v4526
  %v4934 = vunpack.c.l.b16 %v4527
  %v4935 = vunpack.c.l.b16 %v4528
  %v4936 = vunpack.c.l.b16 %v4529
  %v4937 = vunpack.c.l.b16 %v4530
  %v4938 = vunpack.c.l.b16 %v4531
  %v4939 = vunpack.c.l.b16 %v4532
  %v4940 = vunpack.c.l.b16 %v4533
  %v4941 = vunpack.c.l.b16 %v4534
  %v4942 = vunpack.c.l.b16 %v4535
  %v4943 = vunpack.c.l.b16 %v4536
  %v4944 = vunpack.c.l.b16 %v4537
  %v4945 = vunpack.c.l.b16 %v4538
  %v4946 = vunpack.c.l.b16 %v4539
  %v4947 = vunpack.c.l.b16 %v4540
  %v4948 = vunpack.c.l.b16 %v4541
  %v4949 = vunpack.c.l.b16 %v4542
  %v4950 = vunpack.c.l.b16 %v4543
  %v4951 = vunpack.c.l.b16 %v4544
  %v4952 = vunpack.c.l.b16 %v4545
  %v4953 = vunpack.c.l.b16 %v4546
  %v4954 = vunpack.c.l.b16 %v4547
  %v4955 = vunpack.c.l.b16 %v4548
  %v4956 = vunpack.c.l.b16 %v4549
  %v4957 = vunpack.c.l.b16 %v4550
  %v4958 = vunpack.c.l.b16 %v4551
  %v4959 = vunpack.c.l.b16 %v4552
  %v4960 = vunpack.c.l.b16 %v4553
  %v4961 = vunpack.c.l.b16 %v4554
  %v4962 = vunpack.c.l.b16 %v4555
  %v4963 = vunpack.c.l.b16 %v4556
  %v4964 = vunpack.c.l.b16 %v4557
  %v4965 = vunpack.c.l.b16 %v4558
  %v4966 = vunpack.c.l.b16 %v4559
  %v4967 = vunpack.c.l.b16 %v4560
  %v4968 = vunpack.c.l.b16 %v4561
  %v4969 = vunpack.c.l.b16 %v4562
  %v4970 = vunpack.c.l.b16 %v4563
  %v4971 = vunpack.c.l.b16 %v4564
  %v4972 = vunpack.c.l.b16 %v4565
  %v4973 = vunpack.c.l.b16 %v4566
  %v4974 = vunpack.c.l.b16 %v4567
  %v4975 = vunpack.c.l.b16 %v4568
  %v4976 = vunpack.c.l.b16 %v4569
  %v4977 = vunpack.c.l.b16 %v4570
  %v4978 = vunpack.c.l.b16 %v4571
  %v4979 = vunpack.c.l.b16 %v4572
  %v4980 = vunpack.c.l.b16 %v4573
  %v4981 = vunpack.c.l.b16 %v4574
  %v4982 = vunpack.c.l.b16 %v4575
  %v4983 = vunpack.c.l.b16 %v4576
  %v4984 = vunpack.c.l.b16 %v4577
  %v4985 = vunpack.c.l.b16 %v4578
  %v4986 = vunpack.c.l.b16 %v4579
  %v4987 = vunpack.c.l.b16 %v4580
  %v4988 = vunpack.c.l.b16 %v4581
  %v4989 = vunpack.c.l.b16 %v4582
  %v4990 = vunpack.c.l.b16 %v4583
  %v4991 = vunpack.c.l.b16 %v4584
  %v4992 = vunpack.c.l.b16 %v4585
  %v4993 = vunpack.c.l.b16 %v4586
  %v4994 = vunpack.c.l.b16 %v4587
  %v4995 = vunpack.c.l.b16 %v4588
  %v4996 = vunpack.c.l.b16 %v4589
  %v4997 = vunpack.c.l.b16 %v4590
  %v4998 = vunpack.c.l.b16 %v4591
  %v4999 = vunpack.c.l.b16 %v4592
  %v5000 = vunpack.c.l.b16 %v4593
  %v5001 = vunpack.c.l.b16 %v4594
  %v5002 = vunpack.c.l.b16 %v4595
  %v5003 = vunpack.c.l.b16 %v4596
  %v5004 = vunpack.c.l.b16 %v4597
  %v5005 = vunpack.c.l.b16 %v4598
  %v5006 = vunpack.c.l.b16 %v4599
  %v5007 = vunpack.c.l.b16 %v4600
  %v5008 = vunpack.c.l.b16 %v4601
  %v5009 = vunpack.c.l.b16 %v4602
  %v5010 = vunpack.c.l.b16 %v4603
  %v5011 = vunpack.c.l.b16 %v4604
  %v5012 = vunpack.c.l.b16 %v4605
  %v5013 = vunpack.c.l.b16 %v4606
  %v5014 = vunpack.c.l.b16 %v4607
  %v5015 = vunpack.c.l.b16 %v4608
  %v5016 = vunpack.c.l.b16 %v4609
  %v5017 = vunpack.c.l.b16 %v4610
  %v5018 = vunpack.c.l.b16 %v4611
  %v5019 = vunpack.c.l.b16 %v4612
  %v5020 = vunpack.c.l.b16 %v4613
  %v5021 = vunpack.c.l.b16 %v4614
  %v5022 = vunpack.c.l.b16 %v4615
  %v5023 = vunpack.c.l.b16 %v4616
  %v5024 = vunpack.c.l.b16 %v4617
  %v5025 = vunpack.c.l.b16 %v4618
  %v5026 = vunpack.c.l.b16 %v4619
  %v5027 = vunpack.c.l.b16 %v4620
  %v5028 = vunpack.c.l.b16 %v4621
  %v5029 = vunpack.c.l.b16 %v4622
  %v5030 = vunpack.c.l.b16 %v4623
  %v5031 = vunpack.c.l.b16 %v4624
  %v5032 = vunpack.c.l.b16 %v4625
  %v5033 = vunpack.c.l.b16 %v4626
  %v5034 = vunpack.c.l.b16 %v4627
  %v5035 = vunpack.c.l.b16 %v4628
  %v5036 = vunpack.c.l.b16 %v4629
  %v5037 = vunpack.c.l.b16 %v4630
  %v5038 = vunpack.c.l.b16 %v4631
  %v5039 = vunpack.c.l.b16 %v4632
  %v5040 = vunpack.c.l.b16 %v4633
  %v5041 = vunpack.c.l.b16 %v4634
  %v5042 = vunpack.c.l.b16 %v4635
  %v5043 = vunpack.c.l.b16 %v4636
  %v5044 = vunpack.c.l.b16 %v4637
  %v5045 = vunpack.c.l.b16 %v4638
  %v5046 = vunpack.c.l.b16 %v4639
  %v5047 = vunpack.c.l.b16 %v4640
  %v5048 = vunpack.c.l.b16 %v4641
  %v5049 = vunpack.c.l.b16 %v4642
  %v5050 = vunpack.c.l.b16 %v4643
  %v5051 = vunpack.c.l.b16 %v4644
  %v5052 = vunpack.c.l.b16 %v4645
  %v5053 = vunpack.c.l.b16 %v4646
  %v5054 = vunpack.c.l.b16 %v4647
  %v5055 = vunpack.c.l.b16 %v4648
  %v5056 = vunpack.c.l.b16 %v4649
  %v5057 = vunpack.c.l.b16 %v4650
  %v5058 = vunpack.c.l.b16 %v4651
  %v5059 = vunpack.c.l.b16 %v4652
  %v5060 = vunpack.c.l.b16 %v4653
  %v5061 = vunpack.c.l.b16 %v4654
  %v5062 = vunpack.c.l.b16 %v4655
  %v5063 = vunpack.c.l.b16 %v4656
  %v5064 = vunpack.c.l.b16 %v4657
  %v5065 = vunpack.c.l.b16 %v4658
  %v5066 = vunpack.c.l.b16 %v4659
  %v5067 = vunpack.c.l.b16 %v4660
  %v5068 = vunpack.c.l.b16 %v4661
  %v5069 = vunpack.c.l.b16 %v4662
  %v5070 = vunpack.c.l.b16 %v4663
  %v5071 = vunpack.c.l.b16 %v4664
  %v5072 = vunpack.c.l.b16 %v4665
  %v5073 = vunpack.c.l.b16 %v4666
  %v5074 = vunpack.c.l.b16 %v4667
  %v5075 = vunpack.c.l.b16 %v4668
  %v5076 = vunpack.c.l.b16 %v4669
  %v5077 = vunpack.c.l.b16 %v4670
  %v5078 = vunpack.c.l.b16 %v4671
  %v5079 = vunpack.c.l.b16 %v4672
  %v5080 = vunpack.c.l.b16 %v4673
  %v5081 = vunpack.c.l.b16 %v4674
  %v5082 = vunpack.c.l.b16 %v4675
  %v5083 = vunpack.c.l.b16 %v4676
  %v5084 = vunpack.c.l.b16 %v4677
  %v5085 = vunpack.c.l.b16 %v4678
  %v5086 = vunpack.c.l.b16 %v4679
  %v5087 = vunpack.c.l.b16 %v4680
  %v5088 = vunpack.c.l.b16 %v4681
  %v5089 = vunpack.c.l.b16 %v4682
  %v5090 = vunpack.c.l.b16 %v4683
  %v5091 = vunpack.c.l.b16 %v4684
  %v5092 = vunpack.c.l.b16 %v4685
  %v5093 = vunpack.c.l.b16 %v4686
  %v5094 = vunpack.c.l.b16 %v4687
  %v5095 = vunpack.c.l.b16 %v4688
  %v5096 = vunpack.c.l.b16 %v4689
  %v5097 = vunpack.c.l.b16 %v4690
  %v5098 = vunpack.c.l.b16 %v4691
  %v5099 = vunpack.c.l.b16 %v4692
  %v5100 = vunpack.c.l.b16 %v4693
  %v5101 = vunpack.c.l.b16 %v4694
  %v5102 = vunpack.c.l.b16 %v4695
  %v5103 = vunpack.c.l.b16 %v4696
  %v5104 = vunpack.c.l.b16 %v4697
  %v5105 = vunpack.c.l.b16 %v4698
  %v5106 = vunpack.c.l.b16 %v4699
  %v5107 = vunpack.c.l.b16 %v4700
  %v5108 = vunpack.c.l.b16 %v4701
  %v5109 = vunpack.c.l.b16 %v4702
  %v5110 = vunpack.c.l.b16 %v4703
  %v5111 = vunpack.c.l.b16 %v4704
  %v5112 = vunpack.c.l.b16 %v4705
  %v5113 = vunpack.c.l.b16 %v4706
  %v5114 = vpack.c.b16 %v4915, %v4914
  %v5115 = vpack.c.b16 %v4917, %v4916
  %v5116 = vpack.c.b16 %v4919, %v4918
  %v5117 = vpack.c.b16 %v4921, %v4920
  %v5118 = vpack.c.b16 %v4923, %v4922
  %v5119 = vpack.c.b16 %v4925, %v4924
  %v5120 = vpack.c.b16 %v4927, %v4926
  %v5121 = vpack.c.b16 %v4929, %v4928
  %v5122 = vpack.c.b16 %v4931, %v4930
  %v5123 = vpack.c.b16 %v4933, %v4932
  %v5124 = vpack.c.b16 %v4935, %v4934
  %v5125 = vpack.c.b16 %v4937, %v4936
  %v5126 = vpack.c.b16 %v4939, %v4938
  %v5127 = vpack.c.b16 %v4941, %v4940
  %v5128 = vpack.c.b16 %v4943, %v4942
  %v5129 = vpack.c.b16 %v4945, %v4944
  %v5130 = vpack.c.b16 %v4947, %v4946
  %v5131 = vpack.c.b16 %v4949, %v4948
  %v5132 = vpack.c.b16 %v4951, %v4950
  %v5133 = vpack.c.b16 %v4953, %v4952
  %v5134 = vpack.c.b16 %v4955, %v4954
  %v5135 = vpack.c.b16 %v4957, %v4956
  %v5136 = vpack.c.b16 %v4959, %v4958
  %v5137 = vpack.c.b16 %v4961, %v4960
  %v5138 = vpack.c.b16 %v4963, %v4962
  %v5139 = vpack.c.b16 %v4965, %v4964
  %v5140 = vpack.c.b16 %v4967, %v4966
  %v5141 = vpack.c.b16 %v4969, %v4968
  %v5142 = vpack.c.b16 %v4971, %v4970
  %v5143 = vpack.c.b16 %v4973, %v4972
  %v5144 = vpack.c.b16 %v4975, %v4974
  %v5145 = vpack.c.b16 %v4977, %v4976
  %v5146 = vpack.c.b16 %v4979, %v4978
  %v5147 = vpack.c.b16 %v4981, %v4980
  %v5148 = vpack.c.b16 %v4983, %v4982
  %v5149 = vpack.c.b16 %v4985, %v4984
  %v5150 = vpack.c.b16 %v4987, %v4986
  %v5151 = vpack.c.b16 %v4989, %v4988
  %v5152 = vpack.c.b16 %v4991, %v4990
  %v5153 = vpack.c.b16 %v4993, %v4992
  %v5154 = vpack.c.b16 %v4995, %v4994
  %v5155 = vpack.c.b16 %v4997, %v4996
  %v5156 = vpack.c.b16 %v4999, %v4998
  %v5157 = vpack.c.b16 %v5001, %v5000
  %v5158 = vpack.c.b16 %v5003, %v5002
  %v5159 = vpack.c.b16 %v5005, %v5004
  %v5160 = vpack.c.b16 %v5007, %v5006
  %v5161 = vpack.c.b16 %v5009, %v5008
  %v5162 = vpack.c.b16 %v5011, %v5010
  %v5163 = vpack.c.b16 %v5013, %v5012
  %v5164 = vpack.c.b16 %v5015, %v5014
  %v5165 = vpack.c.b16 %v5017, %v5016
  %v5166 = vpack.c.b16 %v5019, %v5018
  %v5167 = vpack.c.b16 %v5021, %v5020
  %v5168 = vpack.c.b16 %v5023, %v5022
  %v5169 = vpack.c.b16 %v5025, %v5024
  %v5170 = vpack.c.b16 %v5027, %v5026
  %v5171 = vpack.c.b16 %v5029, %v5028
  %v5172 = vpack.c.b16 %v5031, %v5030
  %v5173 = vpack.c.b16 %v5033, %v5032
  %v5174 = vpack.c.b16 %v5035, %v5034
  %v5175 = vpack.c.b16 %v5037, %v5036
  %v5176 = vpack.c.b16 %v5039, %v5038
  %v5177 = vpack.c.b16 %v5041, %v5040
  %v5178 = vpack.c.b16 %v5043, %v5042
  %v5179 = vpack.c.b16 %v5045, %v5044
  %v5180 = vpack.c.b16 %v5047, %v5046
  %v5181 = vpack.c.b16 %v5049, %v5048
  %v5182 = vpack.c.b16 %v5051, %v5050
  %v5183 = vpack.c.b16 %v5053, %v5052
  %v5184 = vpack.c.b16 %v5055, %v5054
  %v5185 = vpack.c.b16 %v5057, %v5056
  %v5186 = vpack.c.b16 %v5059, %v5058
  %v5187 = vpack.c.b16 %v5061, %v5060
  %v5188 = vpack.c.b16 %v5063, %v5062
  %v5189 = vpack.c.b16 %v5065, %v5064
  %v5190 = vpack.c.b16 %v5067, %v5066
  %v5191 = vpack.c.b16 %v5069, %v5068
  %v5192 = vpack.c.b16 %v5071, %v5070
  %v5193 = vpack.c.b16 %v5073, %v5072
  %v5194 = vpack.c.b16 %v5075, %v5074
  %v5195 = vpack.c.b16 %v5077, %v5076
  %v5196 = vpack.c.b16 %v5079, %v5078
  %v5197 = vpack.c.b16 %v5081, %v5080
  %v5198 = vpack.c.b16 %v5083, %v5082
  %v5199 = vpack.c.b16 %v5085, %v5084
  %v5200 = vpack.c.b16 %v5087, %v5086
  %v5201 = vpack.c.b16 %v5089, %v5088
  %v5202 = vpack.c.b16 %v5091, %v5090
  %v5203 = vpack.c.b16 %v5093, %v5092
  %v5204 = vpack.c.b16 %v5095, %v5094
  %v5205 = vpack.c.b16 %v5097, %v5096
  %v5206 = vpack.c.b16 %v5099, %v5098
  %v5207 = vpack.c.b16 %v5101, %v5100
  %v5208 = vpack.c.b16 %v5103, %v5102
  %v5209 = vpack.c.b16 %v5105, %v5104
  %v5210 = vpack.c.b16 %v5107, %v5106
  %v5211 = vpack.c.b16 %v5109, %v5108
  %v5212 = vpack.c.b16 %v5111, %v5110
  %v5213 = vpack.c.b16 %v5113, %v5112
  %v5315 = vsel %vm3529, %v4422, 0
  %5317 = vmatprep.subr.bf16.mxu0 0
  %5318 = vmatpush1.bf16.msra.mxu0 %v5114
  %5319 = vmatprep.subr.bf16.mxu0 0
  %5320 = vmatpush1.bf16.msra.mxu0 %v5115
  %5321 = vmatprep.subr.bf16.mxu0 0
  %5322 = vmatpush1.bf16.msra.mxu0 %v5116
  %5323 = vmatprep.subr.bf16.mxu0 0
  %5324 = vmatpush1.bf16.msra.mxu0 %v5117
  %5325 = vmatprep.subr.bf16.mxu0 0
  %5326 = vmatpush1.bf16.msra.mxu0 %v5118
  %5327 = vmatprep.subr.bf16.mxu0 0
  %5328 = vmatpush1.bf16.msra.mxu0 %v5119
  %5329 = vmatprep.subr.bf16.mxu0 0
  %5330 = vmatpush1.bf16.msra.mxu0 %v5120
  %5331 = vmatprep.subr.bf16.mxu0 0
  %5332 = vmatpush1.bf16.msra.mxu0 %v5121
  %5333 = vmatprep.subr.bf16.mxu0 0
  %5334 = vmatpush1.bf16.msra.mxu0 %v5122
  %5335 = vmatprep.subr.bf16.mxu0 0
  %5336 = vmatpush1.bf16.msra.mxu0 %v5123
  %5337 = vmatprep.subr.bf16.mxu0 0
  %5338 = vmatpush1.bf16.msra.mxu0 %v5124
  %5339 = vmatprep.subr.bf16.mxu0 0
  %5340 = vmatpush1.bf16.msra.mxu0 %v5125
  %5341 = vmatprep.subr.bf16.mxu0 0
  %5342 = vmatpush1.bf16.msra.mxu0 %v5126
  %5343 = vmatprep.subr.bf16.mxu0 0
  %5344 = vmatpush1.bf16.msra.mxu0 %v5127
  %5345 = vmatprep.subr.bf16.mxu0 0
  %5346 = vmatpush1.bf16.msra.mxu0 %v5128
  %5347 = vmatprep.subr.bf16.mxu0 0
  %5348 = vmatpush1.bf16.msra.mxu0 %v5129
  %5349 = vmatprep.mubr.bf16.mxu0 %v4453
  %5350 = vmatmul.mubr.bf16.gmra.mrb[0].mxu0 %v4449
  %v5351 = vpop.f32.mrb[0].mxu0
  %v5352 = vadd.f32 %v4712, %v5351
  %v5353 = vpop.f32.mrb[0].mxu0
  %v5354 = vpop.f32.mrb[0].mxu0
  %v5355 = vpop.f32.mrb[0].mxu0
  %5356 = vdwg.mxu0
  %5357 = vmatprep.subr.bf16.mxu0 0
  %5358 = vmatpush1.bf16.msra.mxu0 %v5130
  %5359 = vmatprep.subr.bf16.mxu0 0
  %5360 = vmatpush1.bf16.msra.mxu0 %v5131
  %5361 = vmatprep.subr.bf16.mxu0 0
  %5362 = vmatpush1.bf16.msra.mxu0 %v5132
  %5363 = vmatprep.subr.bf16.mxu0 0
  %5364 = vmatpush1.bf16.msra.mxu0 %v5133
  %5365 = vmatprep.subr.bf16.mxu0 0
  %5366 = vmatpush1.bf16.msra.mxu0 %v5134
  %5367 = vmatprep.subr.bf16.mxu0 0
  %5368 = vmatpush1.bf16.msra.mxu0 %v5135
  %5369 = vmatprep.subr.bf16.mxu0 0
  %5370 = vmatpush1.bf16.msra.mxu0 %v5136
  %5371 = vmatprep.subr.bf16.mxu0 0
  %5372 = vmatpush1.bf16.msra.mxu0 %v5137
  %5373 = vmatprep.subr.bf16.mxu0 0
  %5374 = vmatpush1.bf16.msra.mxu0 %v5138
  %5375 = vmatprep.subr.bf16.mxu0 0
  %5376 = vmatpush1.bf16.msra.mxu0 %v5139
  %5377 = vmatprep.subr.bf16.mxu0 0
  %5378 = vmatpush1.bf16.msra.mxu0 %v5140
  %5379 = vmatprep.subr.bf16.mxu0 0
  %5380 = vmatpush1.bf16.msra.mxu0 %v5141
  %5381 = vmatprep.subr.bf16.mxu0 0
  %5382 = vmatpush1.bf16.msra.mxu0 %v5142
  %5383 = vmatprep.subr.bf16.mxu0 0
  %5384 = vmatpush1.bf16.msra.mxu0 %v5143
  %5385 = vmatprep.subr.bf16.mxu0 0
  %5386 = vmatpush1.bf16.msra.mxu0 %v5144
  %5387 = vmatprep.subr.bf16.mxu0 0
  %5388 = vmatpush1.bf16.msra.mxu0 %v5145
  %5389 = vmatprep.mubr.bf16.mxu0 %v4461
  %5390 = vmatmul.mubr.bf16.gmra.mrb[0].mxu0 %v4457
  %v5391 = vpop.f32.mrb[0].mxu0
  %v5392 = vadd.f32 %v5352, %v5391
  %v5393 = vpop.f32.mrb[0].mxu0
  %v5394 = vpop.f32.mrb[0].mxu0
  %v5395 = vpop.f32.mrb[0].mxu0
  %5396 = vdwg.mxu0
  %5397 = vmatprep.subr.bf16.mxu0 0
  %5398 = vmatpush1.bf16.msra.mxu0 %v5146
  %5399 = vmatprep.subr.bf16.mxu0 0
  %5400 = vmatpush1.bf16.msra.mxu0 %v5147
  %5401 = vmatprep.subr.bf16.mxu0 0
  %5402 = vmatpush1.bf16.msra.mxu0 %v5148
  %5403 = vmatprep.subr.bf16.mxu0 0
  %5404 = vmatpush1.bf16.msra.mxu0 %v5149
  %5405 = vmatprep.subr.bf16.mxu0 0
  %5406 = vmatpush1.bf16.msra.mxu0 %v5150
  %5407 = vmatprep.subr.bf16.mxu0 0
  %5408 = vmatpush1.bf16.msra.mxu0 %v5151
  %5409 = vmatprep.subr.bf16.mxu0 0
  %5410 = vmatpush1.bf16.msra.mxu0 %v5152
  %5411 = vmatprep.subr.bf16.mxu0 0
  %5412 = vmatpush1.bf16.msra.mxu0 %v5153
  %5413 = vmatprep.subr.bf16.mxu0 0
  %5414 = vmatpush1.bf16.msra.mxu0 %v5154
  %5415 = vmatprep.subr.bf16.mxu0 0
  %5416 = vmatpush1.bf16.msra.mxu0 %v5155
  %5417 = vmatprep.subr.bf16.mxu0 0
  %5418 = vmatpush1.bf16.msra.mxu0 %v5156
  %5419 = vmatprep.subr.bf16.mxu0 0
  %5420 = vmatpush1.bf16.msra.mxu0 %v5157
  %5421 = vmatprep.subr.bf16.mxu0 0
  %5422 = vmatpush1.bf16.msra.mxu0 %v5158
  %5423 = vmatprep.subr.bf16.mxu0 0
  %5424 = vmatpush1.bf16.msra.mxu0 %v5159
  %5425 = vmatprep.subr.bf16.mxu0 0
  %5426 = vmatpush1.bf16.msra.mxu0 %v5160
  %5427 = vmatprep.subr.bf16.mxu0 0
  %5428 = vmatpush1.bf16.msra.mxu0 %v5161
  %5429 = vmatprep.mubr.bf16.mxu0 %v4469
  %5430 = vmatmul.mubr.bf16.gmra.mrb[0].mxu0 %v4465
  %v5431 = vpop.f32.mrb[0].mxu0
  %v5432 = vadd.f32 %v5392, %v5431
  %v5433 = vpop.f32.mrb[0].mxu0
  %v5434 = vpop.f32.mrb[0].mxu0
  %v5435 = vpop.f32.mrb[0].mxu0
  %5436 = vdwg.mxu0
  %5437 = vmatprep.subr.bf16.mxu0 0
  %5438 = vmatpush1.bf16.msra.mxu0 %v5162
  %5439 = vmatprep.subr.bf16.mxu0 0
  %5440 = vmatpush1.bf16.msra.mxu0 %v5163
  %5441 = vmatprep.subr.bf16.mxu0 0
  %5442 = vmatpush1.bf16.msra.mxu0 %v5164
  %5443 = vmatprep.subr.bf16.mxu0 0
  %5444 = vmatpush1.bf16.msra.mxu0 %v5165
  %5445 = vmatprep.subr.bf16.mxu0 0
  %5446 = vmatpush1.bf16.msra.mxu0 %v5166
  %5447 = vmatprep.subr.bf16.mxu0 0
  %5448 = vmatpush1.bf16.msra.mxu0 %v5167
  %5449 = vmatprep.subr.bf16.mxu0 0
  %5450 = vmatpush1.bf16.msra.mxu0 %v5168
  %5451 = vmatprep.subr.bf16.mxu0 0
  %5452 = vmatpush1.bf16.msra.mxu0 %v5169
  %5453 = vmatprep.subr.bf16.mxu0 0
  %5454 = vmatpush1.bf16.msra.mxu0 %v5170
  %5455 = vmatprep.subr.bf16.mxu0 0
  %5456 = vmatpush1.bf16.msra.mxu0 %v5171
  %5457 = vmatprep.subr.bf16.mxu0 0
  %5458 = vmatpush1.bf16.msra.mxu0 %v5172
  %5459 = vmatprep.subr.bf16.mxu0 0
  %5460 = vmatpush1.bf16.msra.mxu0 %v5173
  %5461 = vmatprep.subr.bf16.mxu0 0
  %5462 = vmatpush1.bf16.msra.mxu0 %v5174
  %5463 = vmatprep.subr.bf16.mxu0 0
  %5464 = vmatpush1.bf16.msra.mxu0 %v5175
  %5465 = vmatprep.subr.bf16.mxu0 0
  %5466 = vmatpush1.bf16.msra.mxu0 %v5176
  %5467 = vmatprep.subr.bf16.mxu0 0
  %5468 = vmatpush1.bf16.msra.mxu0 %v5177
  %5469 = vmatprep.mubr.bf16.mxu0 %v4477
  %5470 = vmatmul.mubr.bf16.gmra.mrb[0].mxu0 %v4473
  %v5471 = vpop.f32.mrb[0].mxu0
  %v5472 = vadd.f32 %v5432, %v5471
  %v5473 = vpop.f32.mrb[0].mxu0
  %v5474 = vpop.f32.mrb[0].mxu0
  %v5475 = vpop.f32.mrb[0].mxu0
  %5476 = vdwg.mxu0
  %5477 = vmatprep.subr.bf16.mxu0 0
  %5478 = vmatpush1.bf16.msra.mxu0 %v5178
  %5479 = vmatprep.subr.bf16.mxu0 0
  %5480 = vmatpush1.bf16.msra.mxu0 %v5179
  %5481 = vmatprep.subr.bf16.mxu0 0
  %5482 = vmatpush1.bf16.msra.mxu0 %v5180
  %5483 = vmatprep.subr.bf16.mxu0 0
  %5484 = vmatpush1.bf16.msra.mxu0 %v5181
  %5485 = vmatprep.subr.bf16.mxu0 0
  %5486 = vmatpush1.bf16.msra.mxu0 %v5182
  %5487 = vmatprep.subr.bf16.mxu0 0
  %5488 = vmatpush1.bf16.msra.mxu0 %v5183
  %5489 = vmatprep.subr.bf16.mxu0 0
  %5490 = vmatpush1.bf16.msra.mxu0 %v5184
  %5491 = vmatprep.subr.bf16.mxu0 0
  %5492 = vmatpush1.bf16.msra.mxu0 %v5185
  %5493 = vmatprep.subr.bf16.mxu0 0
  %5494 = vmatpush1.bf16.msra.mxu0 %v5186
  %5495 = vmatprep.subr.bf16.mxu0 0
  %5496 = vmatpush1.bf16.msra.mxu0 %v5187
  %5497 = vmatprep.subr.bf16.mxu0 0
  %5498 = vmatpush1.bf16.msra.mxu0 %v5188
  %5499 = vmatprep.subr.bf16.mxu0 0
  %5500 = vmatpush1.bf16.msra.mxu0 %v5189
  %5501 = vmatprep.subr.bf16.mxu0 0
  %5502 = vmatpush1.bf16.msra.mxu0 %v5190
  %5503 = vmatprep.subr.bf16.mxu0 0
  %5504 = vmatpush1.bf16.msra.mxu0 %v5191
  %5505 = vmatprep.subr.bf16.mxu0 0
  %5506 = vmatpush1.bf16.msra.mxu0 %v5192
  %5507 = vmatprep.subr.bf16.mxu0 0
  %5508 = vmatpush1.bf16.msra.mxu0 %v5193
  %5509 = vmatprep.mubr.bf16.mxu0 %v4497
  %5510 = vmatmul.mubr.bf16.gmra.mrb[0].mxu0 %v4493
  %v5511 = vpop.f32.mrb[0].mxu0
  %v5512 = vadd.f32 %v5472, %v5511
  %v5513 = vpop.f32.mrb[0].mxu0
  %v5514 = vpop.f32.mrb[0].mxu0
  %v5515 = vpop.f32.mrb[0].mxu0
  %5516 = vdwg.mxu0
  %5517 = vmatprep.subr.bf16.mxu0 0
  %5518 = vmatpush1.bf16.msra.mxu0 %v5194
  %5519 = vmatprep.subr.bf16.mxu0 0
  %5520 = vmatpush1.bf16.msra.mxu0 %v5195
  %5521 = vmatprep.subr.bf16.mxu0 0
  %5522 = vmatpush1.bf16.msra.mxu0 %v5196
  %5523 = vmatprep.subr.bf16.mxu0 0
  %5524 = vmatpush1.bf16.msra.mxu0 %v5197
  %5525 = vmatprep.subr.bf16.mxu0 0
  %5526 = vmatpush1.bf16.msra.mxu0 %v5198
  %5527 = vmatprep.subr.bf16.mxu0 0
  %5528 = vmatpush1.bf16.msra.mxu0 %v5199
  %5529 = vmatprep.subr.bf16.mxu0 0
  %5530 = vmatpush1.bf16.msra.mxu0 %v5200
  %5531 = vmatprep.subr.bf16.mxu0 0
  %5532 = vmatpush1.bf16.msra.mxu0 %v5201
  %5533 = vmatprep.subr.bf16.mxu0 0
  %5534 = vmatpush1.bf16.msra.mxu0 %v5202
  %5535 = vmatprep.subr.bf16.mxu0 0
  %5536 = vmatpush1.bf16.msra.mxu0 %v5203
  %5537 = vmatprep.subr.bf16.mxu0 0
  %5538 = vmatpush1.bf16.msra.mxu0 %v5204
  %5539 = vmatprep.subr.bf16.mxu0 0
  %5540 = vmatpush1.bf16.msra.mxu0 %v5205
  %5541 = vmatprep.subr.bf16.mxu0 0
  %5542 = vmatpush1.bf16.msra.mxu0 %v5206
  %5543 = vmatprep.subr.bf16.mxu0 0
  %5544 = vmatpush1.bf16.msra.mxu0 %v5207
  %5545 = vmatprep.subr.bf16.mxu0 0
  %5546 = vmatpush1.bf16.msra.mxu0 %v5208
  %5547 = vmatprep.subr.bf16.mxu0 0
  %5548 = vmatpush1.bf16.msra.mxu0 %v5209
  %5549 = vmatprep.mubr.bf16.mxu0 %v4505
  %5550 = vmatmul.mubr.bf16.gmra.mrb[0].mxu0 %v4501
  %v5551 = vpop.f32.mrb[0].mxu0
  %v5552 = vadd.f32 %v5512, %v5551
  %v5553 = vpop.f32.mrb[0].mxu0
  %v5554 = vpop.f32.mrb[0].mxu0
  %v5555 = vpop.f32.mrb[0].mxu0
  %5556 = vdwg.mxu0
  %5557 = vmatprep.subr.bf16.mxu0 0
  %5558 = vmatpush1.bf16.msra.mxu0 %v5210
  %5559 = vmatprep.subr.bf16.mxu0 0
  %5560 = vmatpush1.bf16.msra.mxu0 %v5211
  %5561 = vmatprep.subr.bf16.mxu0 0
  %5562 = vmatpush1.bf16.msra.mxu0 %v5212
  %5563 = vmatprep.subr.bf16.mxu0 0
  %5564 = vmatpush1.bf16.msra.mxu0 %v5213
  %5565 = vmatprep.subr.bf16.mxu0 0
  %5566 = vmatpush1.bf16.msra.mxu0 0
  %5567 = vmatprep.subr.bf16.mxu0 0
  %5568 = vmatpush1.bf16.msra.mxu0 0
  %5569 = vmatprep.subr.bf16.mxu0 0
  %5570 = vmatpush1.bf16.msra.mxu0 0
  %5571 = vmatprep.subr.bf16.mxu0 0
  %5572 = vmatpush1.bf16.msra.mxu0 0
  %5573 = vmatprep.subr.bf16.mxu0 0
  %5574 = vmatpush1.bf16.msra.mxu0 0
  %5575 = vmatprep.subr.bf16.mxu0 0
  %5576 = vmatpush1.bf16.msra.mxu0 0
  %5577 = vmatprep.subr.bf16.mxu0 0
  %5578 = vmatpush1.bf16.msra.mxu0 0
  %5579 = vmatprep.subr.bf16.mxu0 0
  %5580 = vmatpush1.bf16.msra.mxu0 0
  %5581 = vmatprep.subr.bf16.mxu0 0
  %5582 = vmatpush1.bf16.msra.mxu0 0
  %5583 = vmatprep.subr.bf16.mxu0 0
  %5584 = vmatpush1.bf16.msra.mxu0 0
  %5585 = vmatprep.subr.bf16.mxu0 0
  %5586 = vmatpush1.bf16.msra.mxu0 0
  %5587 = vmatprep.subr.bf16.mxu0 0
  %5588 = vmatpush1.bf16.msra.mxu0 0
  %5589 = vmatprep.mubr.bf16.mxu0 0
  %5590 = vmatmul.mubr.bf16.gmra.mrb[0].mxu0 %v5315
  %v5591 = vpop.f32.mrb[0].mxu0
  %v5592 = vadd.f32 %v5552, %v5591
  %v5593 = vpop.f32.mrb[0].mxu0
  %v5594 = vpop.f32.mrb[0].mxu0
  %v5595 = vpop.f32.mrb[0].mxu0
  %5596 = vdwg.mxu0
  %5597 = vst [vmem:[%s7] sm:$0xff] %v5592
  // Predicated region
  $region30: #{wall_encoder_forward.1} parent=0 // pred_check
    _
  $region31: #{wall_encoder_forward.1} parent=0 // pred_check_branch
    %5599 = sbr.rel (0) target = $region33
  $region32: #{wall_encoder_forward.1} parent=0 // pred_region
    _
  $region33: #{wall_encoder_forward.1} parent=0 // pred_fallthru
    _
  // Predicated region
  $region34: #{wall_encoder_forward.1} parent=0 // pred_check
    _
  $region35: #{wall_encoder_forward.1} parent=0 // pred_check_branch
    %5601 = sbr.rel (0) target = $region37
  $region36: #{wall_encoder_forward.1} parent=0 // pred_region
    _
  $region37: #{wall_encoder_forward.1} parent=0 // pred_fallthru
    _

</llo_original>
